<compile_context>
chip_gen: v7x
topology: tpu7x:2x2x1
jax: 0.10.0
libtpu: 0.0.40
codegen_flags: <defaults>
</compile_context>

<pallas_src>
import functools

import jax
import jax.numpy as jnp
from jax import lax
from jax.experimental import pallas as pl
from jax.experimental.pallas import tpu as pltpu


def _dd_kernel(x_ref, xh_ref, lab_ref, wv_ref, wi_ref, wvf_ref, wif_ref,
               loss_ref, wveff_ref, wieff_ref, acc_ref, *, tau):
    b = x_ref.shape[0]
    hb = b // 2
    C = wv_ref.shape[0]
    f32 = jnp.float32
    bf16 = jnp.bfloat16
    k = pl.program_id(0)

    @pl.when(k == 0)
    def _init():
        acc_ref[...] = jnp.zeros_like(acc_ref)

    # ---- fused EMA mix of the frozen classifiers on this K tile (f32) ------------
    wv = wv_ref[...].astype(f32)
    wi = wi_ref[...].astype(f32)
    wi_eff = wif_ref[...].astype(f32) * (1.0 - tau) + wi * tau
    wv_eff = wvf_ref[...].astype(f32) * (1.0 - tau) + wv * tau
    wveff_ref[...] = wv_eff.astype(wveff_ref.dtype)      # persisted by the caller
    wieff_ref[...] = wi_eff.astype(wieff_ref.dtype)

    # ---- single grouped matmul per K tile -----------------------------------------
    # rows:    [x (b) ; x_hat (b)]                 -> 2*b rows (16 at b=8: full bf16 packing)
    # classes: [W_v | W_i | W_i_eff | W_v_eff]     -> 4*C columns (fills the MXU N)
    # Concatenate in f32 (8-row / C-row aligned), cast once to bf16; f32 accumulation.
    lhs = jnp.concatenate([x_ref[...].astype(f32), xh_ref[...].astype(f32)],
                          axis=0).astype(bf16)                       # (2b, tk)
    rhs = jnp.concatenate([wv, wi, wi_eff, wv_eff], axis=0).astype(bf16)  # (4C, tk)
    # Contract the last dims (native (class_num, pool_dim) weight layout; any per-tile
    # RHS transpose stays hidden under the HBM-bound weight stream).
    acc_ref[...] += lax.dot_general(
        lhs, rhs, dimension_numbers=(((1,), (1,)), ((), ())),
        preferred_element_type=f32)

    # ---- softmax / KL / CE epilogue on the resident f32 logits ---------------------
    @pl.when(k == pl.num_programs(0) - 1)
    def _finalize():
        acc = acc_ref[...]                                   # (2b, 4C) f32 logits
        cols = lax.broadcasted_iota(jnp.int32, (hb, C), 1)
        total = jnp.zeros((1, 1), f32)
        for g in range(2):                                   # 0: visible half, 1: infrared half
            onehot = cols == lab_ref[g]                      # (hb, C) from (hb, 1) labels
            zc = g * C                                       # trainable-classifier columns
            ac = 2 * C + g * C                               # frozen crosswise columns
            for s in range(2):                               # 0: x rows, 1: x_hat rows
                r0 = s * b + g * hb
                rows = acc[r0:r0 + hb, :]                    # (hb, 4C)
                zx = rows[:, zc:zc + C]                      # trainable logits
                za = rows[:, ac:ac + C]                      # frozen crosswise logits
                mx = jnp.max(zx, axis=-1, keepdims=True)
                ex = jnp.exp(zx - mx)
                sx = jnp.sum(ex, axis=-1, keepdims=True)
                lpx = (zx - mx) - jnp.log(sx)                # log-softmax, reused by KL & CE
                px = ex / sx                                 # exact (no approx reciprocal)
                ma = jnp.max(za, axis=-1, keepdims=True)
                lpa = (za - ma) - jnp.log(
                    jnp.sum(jnp.exp(za - ma), axis=-1, keepdims=True))
                # KLDivLoss(reduction='batchmean'): sum px*(log px - log pa) / b
                kl = jnp.sum(jnp.sum(px * (lpx - lpa), axis=-1, keepdims=True),
                             axis=0, keepdims=True)
                # CrossEntropy: mean over hb rows of -log_softmax at the label column.
                ce = -jnp.sum(jnp.sum(jnp.where(onehot, lpx, 0.0),
                                      axis=-1, keepdims=True),
                              axis=0, keepdims=True)
                total = total + kl * (1.0 / b) + ce * (0.25 / hb)
        loss_ref[...] = jnp.broadcast_to(total, loss_ref.shape).astype(loss_ref.dtype)


def _vmem_capacity_bytes():
    try:
        info = pltpu.get_tpu_info()
        cap = getattr(info, "vmem_capacity_bytes", None)
        if cap:
            return int(cap)
    except Exception:
        pass
    return 64 << 20   # conservative: v7x per-TensorCore VMEM


def dd_forward(x, x_hat, label1, label2,
               w_visible, w_infrared, w_visible_frozen, w_infrared_frozen,
               tau=0.0, tk=None):
    """Returns (dd_loss, (new_visible_frozen, new_infrared_frozen)).

    The second element is the EMA-mixed frozen-classifier weight pair (computed inside
    the kernel); PyTorch mutates these in place under torch.no_grad(), so callers must
    carry them to the next step.
    """
    b, D = x.shape
    hb = b // 2
    C = w_visible.shape[0]

    # Labels: tiny (2, hb, 1) int32 block (one small DMA; layout cost negligible).
    labels = jnp.stack([label1, label2]).astype(jnp.int32).reshape(2, hb, 1)

    vmem_cap = _vmem_capacity_bytes()

    # Double-buffered per-step block footprint (all streams are native f32).
    def block_bytes(t):
        w_in = 4 * C * t * 4          # four f32 weight tiles
        a_in = 2 * b * t * 4          # x and x_hat tiles
        w_out = 2 * C * t * 4         # EMA-mixed weight output tiles
        return 2 * (w_in + a_in + w_out)

    # Prefer tk = D (single grid step); only tile K if the blocks would blow the budget.
    if tk is None:
        tk = D
        budget = int(0.35 * vmem_cap)
        if block_bytes(D) > budget:
            for cand in (2048, 1024, 512, 256, 128):
                if cand < D and D % cand == 0 and block_bytes(cand) <= budget:
                    tk = cand
                    break
    assert D % tk == 0, (D, tk)
    n_k = D // tk

    # In-kernel temporaries (concats, bf16 casts, EMA intermediates) + f32 accumulator.
    extra = (4 * C * tk * 4) + (4 * C * tk * 2) + (2 * C * tk * 4) \
            + (2 * b * tk * 6) + (2 * b) * (4 * C) * 4
    need = int(1.4 * (block_bytes(tk) + extra)) + (2 << 20)
    cap_lim = int(0.75 * vmem_cap)              # headroom for compiler scratch (v7x: 64 MiB/TC)
    vmem_limit = min(max(need, min(32 << 20, cap_lim)), cap_lim)

    kernel = functools.partial(_dd_kernel, tau=float(tau))
    w_dtype = w_visible_frozen.dtype

    loss_p, wv_eff, wi_eff = pl.pallas_call(
        kernel,
        out_shape=(
            jax.ShapeDtypeStruct((1, 128), jnp.float32),
            jax.ShapeDtypeStruct((C, D), w_dtype),
            jax.ShapeDtypeStruct((C, D), w_dtype),
        ),
        grid_spec=pltpu.PrefetchScalarGridSpec(
            num_scalar_prefetch=0,
            grid=(n_k,),
            in_specs=[
                pl.BlockSpec((b, tk), lambda k: (0, k)),          # x
                pl.BlockSpec((b, tk), lambda k: (0, k)),          # x_hat
                pl.BlockSpec((2, hb, 1), lambda k: (0, 0, 0)),    # labels (resident)
                pl.BlockSpec((C, tk), lambda k: (0, k)),          # W_visible
                pl.BlockSpec((C, tk), lambda k: (0, k)),          # W_infrared
                pl.BlockSpec((C, tk), lambda k: (0, k)),          # W_visible_frozen
                pl.BlockSpec((C, tk), lambda k: (0, k)),          # W_infrared_frozen
            ],
            out_specs=[
                pl.BlockSpec((1, 128), lambda k: (0, 0)),         # loss (written at last k)
                pl.BlockSpec((C, tk), lambda k: (0, k)),          # new W_visible_frozen
                pl.BlockSpec((C, tk), lambda k: (0, k)),          # new W_infrared_frozen
            ],
            scratch_shapes=[pltpu.VMEM((2 * b, 4 * C), jnp.float32)],
        ),
        compiler_params=pltpu.CompilerParams(
            dimension_semantics=("arbitrary",),
            vmem_limit_bytes=int(vmem_limit),
        ),
    )(x, x_hat, labels, w_visible, w_infrared, w_visible_frozen, w_infrared_frozen)

    return loss_p[0, 0], (wv_eff, wi_eff)


def _dd_reference(x, x_hat, l1, l2, wv, wi, wv_f, wi_f, tau, matmul_dtype=None):
    # Pure-JAX reproduction of the PyTorch forward, for correctness checking.
    # If matmul_dtype is set, matmul operands are rounded to it (f32 accumulation),
    # mirroring the kernel's bf16 MXU path.
    f32 = jnp.float32
    md = matmul_dtype or f32
    b = x.shape[0]
    hb = b // 2
    lin = lambda a, w: jnp.dot(a.astype(md), w.astype(md).T, preferred_element_type=f32)
    wi_e = wi_f * (1.0 - tau) + wi * tau
    wv_e = wv_f * (1.0 - tau) + wv * tau
    xv, xt = lin(x[:hb], wv), lin(x[hb:], wi)
    xhv, xht = lin(x_hat[:hb], wv), lin(x_hat[hb:], wi)
    av, at = lin(x[:hb], wi_e), lin(x[hb:], wv_e)
    ahv, aht = lin(x_hat[:hb], wi_e), lin(x_hat[hb:], wv_e)
    cat = lambda a, c: jnp.concatenate([a, c], 0)
    sm = jax.nn.softmax
    kld = lambda pa, px: jnp.sum(px * (jnp.log(px) - jnp.log(pa))) / b

    def ce(z, lab):
        return jnp.mean(jax.nn.logsumexp(z, axis=-1) - z[jnp.arange(z.shape[0]), lab])

    dd1 = kld(sm(cat(av, at)), sm(cat(xv, xt))) + 0.25 * (ce(xv, l1) + ce(xt, l2))
    dd2 = kld(sm(cat(ahv, aht)), sm(cat(xhv, xht))) + 0.25 * (ce(xhv, l1) + ce(xht, l2))
    return dd1 + dd2


if __name__ == "__main__":
    # Small synthetic shapes consistent with the module's forward
    # (module default pool_dim=2048; 1024 keeps the demo small).
    batch = 8
    pool_dim = 1024
    class_num = 128
    tau = 0.2          # nonzero to exercise the fused EMA path

    key = jax.random.PRNGKey(0)
    k_x, k_xh, k_l1, k_l2, k_wv, k_wi, k_wvf, k_wif = jax.random.split(key, 8)

    x = jax.random.normal(k_x, (batch, pool_dim), dtype=jnp.float32)
    x_hat = jax.random.normal(k_xh, (batch, pool_dim), dtype=jnp.float32)
    label1 = jax.random.randint(k_l1, (batch // 2,), 0, class_num, dtype=jnp.int32)
    label2 = jax.random.randint(k_l2, (batch // 2,), 0, class_num, dtype=jnp.int32)

    scale = 1.0 / jnp.sqrt(jnp.float32(pool_dim))
    w_visible = jax.random.normal(k_wv, (class_num, pool_dim), dtype=jnp.float32) * scale
    w_infrared = jax.random.normal(k_wi, (class_num, pool_dim), dtype=jnp.float32) * scale
    w_visible_frozen = jax.random.normal(k_wvf, (class_num, pool_dim), dtype=jnp.float32) * scale
    w_infrared_frozen = jax.random.normal(k_wif, (class_num, pool_dim), dtype=jnp.float32) * scale

    # Primary run: auto tile (tk = D, single grid step at these shapes).
    loss, (wv_eff, wi_eff) = dd_forward(
        x, x_hat, label1, label2,
        w_visible, w_infrared, w_visible_frozen, w_infrared_frozen, tau=tau)
    loss = jax.block_until_ready(loss)

    # EMA-mixed frozen weights produced by the kernel must match the exact f32 mix.
    wv_eff_exp = w_visible_frozen * (1.0 - tau) + w_visible * tau
    wi_eff_exp = w_infrared_frozen * (1.0 - tau) + w_infrared * tau
    assert jnp.allclose(wv_eff, wv_eff_exp, rtol=1e-6, atol=1e-6)
    assert jnp.allclose(wi_eff, wi_eff_exp, rtol=1e-6, atol=1e-6)

    # Tight check against a reference using the same bf16 matmul operands.
    ref_bf16 = _dd_reference(x, x_hat, label1, label2,
                             w_visible, w_infrared, w_visible_frozen, w_infrared_frozen,
                             tau, matmul_dtype=jnp.bfloat16)
    assert jnp.allclose(loss, ref_bf16, rtol=5e-3, atol=5e-3), (loss, ref_bf16)

    # Loose check against the full-f32 PyTorch-equivalent reference.
    ref_f32 = _dd_reference(x, x_hat, label1, label2,
                            w_visible, w_infrared, w_visible_frozen, w_infrared_frozen,
                            tau)
    assert jnp.allclose(loss, ref_f32, rtol=5e-2, atol=5e-2), (loss, ref_f32)

    # Second run with forced K tiling to exercise the multi-step accumulation path.
    loss_tiled, _ = dd_forward(
        x, x_hat, label1, label2,
        w_visible, w_infrared, w_visible_frozen, w_infrared_frozen, tau=tau, tk=256)
    loss_tiled = jax.block_until_ready(loss_tiled)
    assert jnp.allclose(loss_tiled, loss, rtol=1e-4, atol=1e-4), (loss_tiled, loss)

    print("KERNEL_OK")
</pallas_src>

<mosaic_0001>
module attributes {stable_mosaic.version = 11 : i64} {
  func.func @_dd_kernel(%arg0: i32, %arg1: memref<8x1024xf32, #tpu.memory_space<vmem>>, %arg2: memref<8x1024xf32, #tpu.memory_space<vmem>>, %arg3: memref<2x4x1xi32, #tpu.memory_space<vmem>>, %arg4: memref<128x1024xf32, #tpu.memory_space<vmem>>, %arg5: memref<128x1024xf32, #tpu.memory_space<vmem>>, %arg6: memref<128x1024xf32, #tpu.memory_space<vmem>>, %arg7: memref<128x1024xf32, #tpu.memory_space<vmem>>, %arg8: memref<1x128xf32, #tpu.memory_space<vmem>>, %arg9: memref<128x1024xf32, #tpu.memory_space<vmem>>, %arg10: memref<128x1024xf32, #tpu.memory_space<vmem>>, %arg11: memref<16x512xf32, #tpu.memory_space<vmem>>) attributes {dimension_semantics = [#tpu.dimension_semantics<arbitrary>], iteration_bounds = array<i64: 1>, scalar_prefetch = 0 : i64, scratch_operands = 1 : i64, tpu.core_type = #tpu.core_type<tc>, window_params = [{transform_indices = @transform_0, window_bounds = array<i64: 8, 1024>}, {transform_indices = @transform_1, window_bounds = array<i64: 8, 1024>}, {pipeline_mode = #tpu.pipeline_mode<synchronous>, transform_indices = @transform_2, window_bounds = array<i64: 2, 4, 1>}, {transform_indices = @transform_3, window_bounds = array<i64: 128, 1024>}, {transform_indices = @transform_4, window_bounds = array<i64: 128, 1024>}, {transform_indices = @transform_5, window_bounds = array<i64: 128, 1024>}, {transform_indices = @transform_6, window_bounds = array<i64: 128, 1024>}, {pipeline_mode = #tpu.pipeline_mode<synchronous>, transform_indices = @transform_7, window_bounds = array<i64: 1, 128>}, {transform_indices = @transform_8, window_bounds = array<i64: 128, 1024>}, {transform_indices = @transform_9, window_bounds = array<i64: 128, 1024>}]} {
    %c0_i32 = arith.constant 0 : i32
    %0 = arith.cmpi eq, %arg0, %c0_i32 : i32
    %1 = arith.extui %0 : i1 to i32
    %c0_i32_0 = arith.constant 0 : i32
    %2 = arith.cmpi ne, %1, %c0_i32_0 : i32
    scf.if %2 {
      %cst_26 = arith.constant 0.000000e+00 : f32
      %32 = vector.broadcast %cst_26 : f32 to vector<16x512xf32>
      %c0_27 = arith.constant 0 : index
      %c0_28 = arith.constant 0 : index
      %33 = vector.load %arg11[%c0_27, %c0_28] : memref<16x512xf32, #tpu.memory_space<vmem>>, vector<16x512xf32>
      tpu.vector_store %arg11[%c0_27, %c0_28], %32 {strides = array<i32>} : memref<16x512xf32, #tpu.memory_space<vmem>>, vector<16x512xf32>,
    } else {
    }
    %c0 = arith.constant 0 : index
    %c0_1 = arith.constant 0 : index
    %3 = vector.load %arg4[%c0, %c0_1] : memref<128x1024xf32, #tpu.memory_space<vmem>>, vector<128x1024xf32>
    %c0_2 = arith.constant 0 : index
    %c0_3 = arith.constant 0 : index
    %4 = vector.load %arg5[%c0_2, %c0_3] : memref<128x1024xf32, #tpu.memory_space<vmem>>, vector<128x1024xf32>
    %c0_4 = arith.constant 0 : index
    %c0_5 = arith.constant 0 : index
    %5 = vector.load %arg7[%c0_4, %c0_5] : memref<128x1024xf32, #tpu.memory_space<vmem>>, vector<128x1024xf32>
    %cst = arith.constant 8.000000e-01 : f32
    %6 = vector.broadcast %cst : f32 to vector<128x1024xf32>
    %7 = arith.mulf %5, %6 : vector<128x1024xf32>
    %cst_6 = arith.constant 2.000000e-01 : f32
    %8 = vector.broadcast %cst_6 : f32 to vector<128x1024xf32>
    %9 = arith.mulf %4, %8 : vector<128x1024xf32>
    %10 = arith.addf %7, %9 : vector<128x1024xf32>
    %c0_7 = arith.constant 0 : index
    %c0_8 = arith.constant 0 : index
    %11 = vector.load %arg6[%c0_7, %c0_8] : memref<128x1024xf32, #tpu.memory_space<vmem>>, vector<128x1024xf32>
    %cst_9 = arith.constant 8.000000e-01 : f32
    %12 = vector.broadcast %cst_9 : f32 to vector<128x1024xf32>
    %13 = arith.mulf %11, %12 : vector<128x1024xf32>
    %cst_10 = arith.constant 2.000000e-01 : f32
    %14 = vector.broadcast %cst_10 : f32 to vector<128x1024xf32>
    %15 = arith.mulf %3, %14 : vector<128x1024xf32>
    %16 = arith.addf %13, %15 : vector<128x1024xf32>
    %c0_11 = arith.constant 0 : index
    %c0_12 = arith.constant 0 : index
    %17 = vector.load %arg9[%c0_11, %c0_12] : memref<128x1024xf32, #tpu.memory_space<vmem>>, vector<128x1024xf32>
    tpu.vector_store %arg9[%c0_11, %c0_12], %16 {strides = array<i32>} : memref<128x1024xf32, #tpu.memory_space<vmem>>, vector<128x1024xf32>,
    %c0_13 = arith.constant 0 : index
    %c0_14 = arith.constant 0 : index
    %18 = vector.load %arg10[%c0_13, %c0_14] : memref<128x1024xf32, #tpu.memory_space<vmem>>, vector<128x1024xf32>
    tpu.vector_store %arg10[%c0_13, %c0_14], %10 {strides = array<i32>} : memref<128x1024xf32, #tpu.memory_space<vmem>>, vector<128x1024xf32>,
    %c0_15 = arith.constant 0 : index
    %c0_16 = arith.constant 0 : index
    %19 = vector.load %arg1[%c0_15, %c0_16] : memref<8x1024xf32, #tpu.memory_space<vmem>>, vector<8x1024xf32>
    %c0_17 = arith.constant 0 : index
    %c0_18 = arith.constant 0 : index
    %20 = vector.load %arg2[%c0_17, %c0_18] : memref<8x1024xf32, #tpu.memory_space<vmem>>, vector<8x1024xf32>
    %21 = tpu.concatenate %19, %20 in 0 : vector<8x1024xf32>, vector<8x1024xf32> -> vector<16x1024xf32>
    %22 = arith.truncf %21 : vector<16x1024xf32> to vector<16x1024xbf16>
    %23 = tpu.concatenate %3, %4, %10, %16 in 0 : vector<128x1024xf32>, vector<128x1024xf32>, vector<128x1024xf32>, vector<128x1024xf32> -> vector<512x1024xf32>
    %24 = arith.truncf %23 : vector<512x1024xf32> to vector<512x1024xbf16>
    %c0_19 = arith.constant 0 : index
    %c0_20 = arith.constant 0 : index
    %25 = vector.load %arg11[%c0_19, %c0_20] : memref<16x512xf32, #tpu.memory_space<vmem>>, vector<16x512xf32>
    %cst_21 = arith.constant dense<0.000000e+00> : vector<16x512xf32>
    %26 = tpu.matmul %22, %24, %cst_21 {dimension_numbers = #tpu.dot_dimension_numbers<[1], [1], [0], [0], [0, 0, 1, 0], [], []>} : vector<16x1024xbf16>, vector<512x1024xbf16>, vector<16x512xf32> -> vector<16x512xf32>
    %27 = arith.addf %25, %26 : vector<16x512xf32>
    %c0_22 = arith.constant 0 : index
    %c0_23 = arith.constant 0 : index
    %28 = vector.load %arg11[%c0_22, %c0_23] : memref<16x512xf32, #tpu.memory_space<vmem>>, vector<16x512xf32>
    tpu.vector_store %arg11[%c0_22, %c0_23], %27 {strides = array<i32>} : memref<16x512xf32, #tpu.memory_space<vmem>>, vector<16x512xf32>,
    %c0_i32_24 = arith.constant 0 : i32
    %29 = arith.cmpi eq, %arg0, %c0_i32_24 : i32
    %30 = arith.extui %29 : i1 to i32
    %c0_i32_25 = arith.constant 0 : i32
    %31 = arith.cmpi ne, %30, %c0_i32_25 : i32
    scf.if %31 {
      %c0_26 = arith.constant 0 : index
      %c0_27 = arith.constant 0 : index
      %32 = vector.load %arg11[%c0_26, %c0_27] : memref<16x512xf32, #tpu.memory_space<vmem>>, vector<16x512xf32>
      %33 = tpu.iota {dimensions = array<i32: 1>} : vector<4x128xi32>
      %cst_28 = arith.constant 0.000000e+00 : f32
      %34 = vector.broadcast %cst_28 : f32 to vector<1x1xf32>
      %c0_29 = arith.constant 0 : index
      %c0_30 = arith.constant 0 : index
      %c0_31 = arith.constant 0 : index
      %35 = vector.load %arg3[%c0_29, %c0_30, %c0_31] : memref<2x4x1xi32, #tpu.memory_space<vmem>>, vector<1x4x1xi32>
      %36 = vector.shape_cast %35 : vector<1x4x1xi32> to vector<4x1xi32>
      %37 = vector.broadcast %36 : vector<4x1xi32> to vector<4x128xi32>
      %38 = arith.cmpi eq, %33, %37 : vector<4x128xi32>
      %39 = vector.extract_strided_slice %32 {offsets = [0, 0], sizes = [4, 512], strides = [1, 1]} : vector<16x512xf32> to vector<4x512xf32>
      %40 = vector.extract_strided_slice %39 {offsets = [0, 0], sizes = [4, 128], strides = [1, 1]} : vector<4x512xf32> to vector<4x128xf32>
      %41 = vector.extract_strided_slice %39 {offsets = [0, 256], sizes = [4, 128], strides = [1, 1]} : vector<4x512xf32> to vector<4x128xf32>
      %cst_32 = arith.constant dense<0xFF800000> : vector<4xf32>
      %42 = vector.multi_reduction <maximumf>, %40, %cst_32 [1] : vector<4x128xf32> to vector<4xf32>
      %43 = vector.shape_cast %42 : vector<4xf32> to vector<4x1xf32>
      %44 = vector.broadcast %43 : vector<4x1xf32> to vector<4x128xf32>
      %45 = arith.subf %40, %44 : vector<4x128xf32>
      %46 = math.exp %45 : vector<4x128xf32>
      %cst_33 = arith.constant dense<0.000000e+00> : vector<4xf32>
      %47 = vector.multi_reduction <add>, %46, %cst_33 [1] : vector<4x128xf32> to vector<4xf32>
      %48 = vector.shape_cast %47 : vector<4xf32> to vector<4x1xf32>
      %49 = vector.broadcast %43 : vector<4x1xf32> to vector<4x128xf32>
      %50 = arith.subf %40, %49 : vector<4x128xf32>
      %51 = math.log %48 : vector<4x1xf32>
      %52 = vector.broadcast %51 : vector<4x1xf32> to vector<4x128xf32>
      %53 = arith.subf %50, %52 : vector<4x128xf32>
      %54 = vector.broadcast %48 : vector<4x1xf32> to vector<4x128xf32>
      %55 = arith.divf %46, %54 : vector<4x128xf32>
      %cst_34 = arith.constant dense<0xFF800000> : vector<4xf32>
      %56 = vector.multi_reduction <maximumf>, %41, %cst_34 [1] : vector<4x128xf32> to vector<4xf32>
      %57 = vector.shape_cast %56 : vector<4xf32> to vector<4x1xf32>
      %58 = vector.broadcast %57 : vector<4x1xf32> to vector<4x128xf32>
      %59 = arith.subf %41, %58 : vector<4x128xf32>
      %60 = vector.broadcast %57 : vector<4x1xf32> to vector<4x128xf32>
      %61 = arith.subf %41, %60 : vector<4x128xf32>
      %62 = math.exp %61 : vector<4x128xf32>
      %cst_35 = arith.constant dense<0.000000e+00> : vector<4xf32>
      %63 = vector.multi_reduction <add>, %62, %cst_35 [1] : vector<4x128xf32> to vector<4xf32>
      %64 = vector.shape_cast %63 : vector<4xf32> to vector<4x1xf32>
      %65 = math.log %64 : vector<4x1xf32>
      %66 = vector.broadcast %65 : vector<4x1xf32> to vector<4x128xf32>
      %67 = arith.subf %59, %66 : vector<4x128xf32>
      %68 = arith.subf %53, %67 : vector<4x128xf32>
      %69 = arith.mulf %55, %68 : vector<4x128xf32>
      %cst_36 = arith.constant dense<0.000000e+00> : vector<4xf32>
      %70 = vector.multi_reduction <add>, %69, %cst_36 [1] : vector<4x128xf32> to vector<4xf32>
      %71 = vector.shape_cast %70 : vector<4xf32> to vector<4x1xf32>
      %cst_37 = arith.constant dense<0.000000e+00> : vector<1xf32>
      %72 = vector.multi_reduction <add>, %71, %cst_37 [0] : vector<4x1xf32> to vector<1xf32>
      %73 = vector.shape_cast %72 : vector<1xf32> to vector<1x1xf32>
      %cst_38 = arith.constant 0.000000e+00 : f32
      %74 = vector.broadcast %cst_38 : f32 to vector<4x128xf32>
      %75 = arith.select %38, %53, %74 : vector<4x128xi1>, vector<4x128xf32>
      %cst_39 = arith.constant dense<0.000000e+00> : vector<4xf32>
      %76 = vector.multi_reduction <add>, %75, %cst_39 [1] : vector<4x128xf32> to vector<4xf32>
      %77 = vector.shape_cast %76 : vector<4xf32> to vector<4x1xf32>
      %cst_40 = arith.constant dense<0.000000e+00> : vector<1xf32>
      %78 = vector.multi_reduction <add>, %77, %cst_40 [0] : vector<4x1xf32> to vector<1xf32>
      %79 = vector.shape_cast %78 : vector<1xf32> to vector<1x1xf32>
      %cst_41 = arith.constant 0.000000e+00 : f32
      %80 = vector.broadcast %cst_41 : f32 to vector<1x1xf32>
      %81 = arith.subf %80, %79 : vector<1x1xf32>
      %cst_42 = arith.constant 1.250000e-01 : f32
      %82 = vector.broadcast %cst_42 : f32 to vector<1x1xf32>
      %83 = arith.mulf %73, %82 : vector<1x1xf32>
      %84 = arith.addf %34, %83 : vector<1x1xf32>
      %cst_43 = arith.constant 6.250000e-02 : f32
      %85 = vector.broadcast %cst_43 : f32 to vector<1x1xf32>
      %86 = arith.mulf %81, %85 : vector<1x1xf32>
      %87 = arith.addf %84, %86 : vector<1x1xf32>
      %88 = vector.extract_strided_slice %32 {offsets = [8, 0], sizes = [4, 512], strides = [1, 1]} : vector<16x512xf32> to vector<4x512xf32>
      %89 = vector.extract_strided_slice %88 {offsets = [0, 0], sizes = [4, 128], strides = [1, 1]} : vector<4x512xf32> to vector<4x128xf32>
      %90 = vector.extract_strided_slice %88 {offsets = [0, 256], sizes = [4, 128], strides = [1, 1]} : vector<4x512xf32> to vector<4x128xf32>
      %cst_44 = arith.constant dense<0xFF800000> : vector<4xf32>
      %91 = vector.multi_reduction <maximumf>, %89, %cst_44 [1] : vector<4x128xf32> to vector<4xf32>
      %92 = vector.shape_cast %91 : vector<4xf32> to vector<4x1xf32>
      %93 = vector.broadcast %92 : vector<4x1xf32> to vector<4x128xf32>
      %94 = arith.subf %89, %93 : vector<4x128xf32>
      %95 = math.exp %94 : vector<4x128xf32>
      %cst_45 = arith.constant dense<0.000000e+00> : vector<4xf32>
      %96 = vector.multi_reduction <add>, %95, %cst_45 [1] : vector<4x128xf32> to vector<4xf32>
      %97 = vector.shape_cast %96 : vector<4xf32> to vector<4x1xf32>
      %98 = vector.broadcast %92 : vector<4x1xf32> to vector<4x128xf32>
      %99 = arith.subf %89, %98 : vector<4x128xf32>
      %100 = math.log %97 : vector<4x1xf32>
      %101 = vector.broadcast %100 : vector<4x1xf32> to vector<4x128xf32>
      %102 = arith.subf %99, %101 : vector<4x128xf32>
      %103 = vector.broadcast %97 : vector<4x1xf32> to vector<4x128xf32>
      %104 = arith.divf %95, %103 : vector<4x128xf32>
      %cst_46 = arith.constant dense<0xFF800000> : vector<4xf32>
      %105 = vector.multi_reduction <maximumf>, %90, %cst_46 [1] : vector<4x128xf32> to vector<4xf32>
      %106 = vector.shape_cast %105 : vector<4xf32> to vector<4x1xf32>
      %107 = vector.broadcast %106 : vector<4x1xf32> to vector<4x128xf32>
      %108 = arith.subf %90, %107 : vector<4x128xf32>
      %109 = vector.broadcast %106 : vector<4x1xf32> to vector<4x128xf32>
      %110 = arith.subf %90, %109 : vector<4x128xf32>
      %111 = math.exp %110 : vector<4x128xf32>
      %cst_47 = arith.constant dense<0.000000e+00> : vector<4xf32>
      %112 = vector.multi_reduction <add>, %111, %cst_47 [1] : vector<4x128xf32> to vector<4xf32>
      %113 = vector.shape_cast %112 : vector<4xf32> to vector<4x1xf32>
      %114 = math.log %113 : vector<4x1xf32>
      %115 = vector.broadcast %114 : vector<4x1xf32> to vector<4x128xf32>
      %116 = arith.subf %108, %115 : vector<4x128xf32>
      %117 = arith.subf %102, %116 : vector<4x128xf32>
      %118 = arith.mulf %104, %117 : vector<4x128xf32>
      %cst_48 = arith.constant dense<0.000000e+00> : vector<4xf32>
      %119 = vector.multi_reduction <add>, %118, %cst_48 [1] : vector<4x128xf32> to vector<4xf32>
      %120 = vector.shape_cast %119 : vector<4xf32> to vector<4x1xf32>
      %cst_49 = arith.constant dense<0.000000e+00> : vector<1xf32>
      %121 = vector.multi_reduction <add>, %120, %cst_49 [0] : vector<4x1xf32> to vector<1xf32>
      %122 = vector.shape_cast %121 : vector<1xf32> to vector<1x1xf32>
      %cst_50 = arith.constant 0.000000e+00 : f32
      %123 = vector.broadcast %cst_50 : f32 to vector<4x128xf32>
      %124 = arith.select %38, %102, %123 : vector<4x128xi1>, vector<4x128xf32>
      %cst_51 = arith.constant dense<0.000000e+00> : vector<4xf32>
      %125 = vector.multi_reduction <add>, %124, %cst_51 [1] : vector<4x128xf32> to vector<4xf32>
      %126 = vector.shape_cast %125 : vector<4xf32> to vector<4x1xf32>
      %cst_52 = arith.constant dense<0.000000e+00> : vector<1xf32>
      %127 = vector.multi_reduction <add>, %126, %cst_52 [0] : vector<4x1xf32> to vector<1xf32>
      %128 = vector.shape_cast %127 : vector<1xf32> to vector<1x1xf32>
      %cst_53 = arith.constant 0.000000e+00 : f32
      %129 = vector.broadcast %cst_53 : f32 to vector<1x1xf32>
      %130 = arith.subf %129, %128 : vector<1x1xf32>
      %cst_54 = arith.constant 1.250000e-01 : f32
      %131 = vector.broadcast %cst_54 : f32 to vector<1x1xf32>
      %132 = arith.mulf %122, %131 : vector<1x1xf32>
      %133 = arith.addf %87, %132 : vector<1x1xf32>
      %cst_55 = arith.constant 6.250000e-02 : f32
      %134 = vector.broadcast %cst_55 : f32 to vector<1x1xf32>
      %135 = arith.mulf %130, %134 : vector<1x1xf32>
      %136 = arith.addf %133, %135 : vector<1x1xf32>
      %c1 = arith.constant 1 : index
      %c0_56 = arith.constant 0 : index
      %c0_57 = arith.constant 0 : index
      %137 = vector.load %arg3[%c1, %c0_56, %c0_57] : memref<2x4x1xi32, #tpu.memory_space<vmem>>, vector<1x4x1xi32>
      %138 = vector.shape_cast %137 : vector<1x4x1xi32> to vector<4x1xi32>
      %139 = vector.broadcast %138 : vector<4x1xi32> to vector<4x128xi32>
      %140 = arith.cmpi eq, %33, %139 : vector<4x128xi32>
      %141 = vector.extract_strided_slice %32 {offsets = [4, 0], sizes = [4, 512], strides = [1, 1]} : vector<16x512xf32> to vector<4x512xf32>
      %142 = vector.extract_strided_slice %141 {offsets = [0, 128], sizes = [4, 128], strides = [1, 1]} : vector<4x512xf32> to vector<4x128xf32>
      %143 = vector.extract_strided_slice %141 {offsets = [0, 384], sizes = [4, 128], strides = [1, 1]} : vector<4x512xf32> to vector<4x128xf32>
      %cst_58 = arith.constant dense<0xFF800000> : vector<4xf32>
      %144 = vector.multi_reduction <maximumf>, %142, %cst_58 [1] : vector<4x128xf32> to vector<4xf32>
      %145 = vector.shape_cast %144 : vector<4xf32> to vector<4x1xf32>
      %146 = vector.broadcast %145 : vector<4x1xf32> to vector<4x128xf32>
      %147 = arith.subf %142, %146 : vector<4x128xf32>
      %148 = math.exp %147 : vector<4x128xf32>
      %cst_59 = arith.constant dense<0.000000e+00> : vector<4xf32>
      %149 = vector.multi_reduction <add>, %148, %cst_59 [1] : vector<4x128xf32> to vector<4xf32>
      %150 = vector.shape_cast %149 : vector<4xf32> to vector<4x1xf32>
      %151 = vector.broadcast %145 : vector<4x1xf32> to vector<4x128xf32>
      %152 = arith.subf %142, %151 : vector<4x128xf32>
      %153 = math.log %150 : vector<4x1xf32>
      %154 = vector.broadcast %153 : vector<4x1xf32> to vector<4x128xf32>
      %155 = arith.subf %152, %154 : vector<4x128xf32>
      %156 = vector.broadcast %150 : vector<4x1xf32> to vector<4x128xf32>
      %157 = arith.divf %148, %156 : vector<4x128xf32>
      %cst_60 = arith.constant dense<0xFF800000> : vector<4xf32>
      %158 = vector.multi_reduction <maximumf>, %143, %cst_60 [1] : vector<4x128xf32> to vector<4xf32>
      %159 = vector.shape_cast %158 : vector<4xf32> to vector<4x1xf32>
      %160 = vector.broadcast %159 : vector<4x1xf32> to vector<4x128xf32>
      %161 = arith.subf %143, %160 : vector<4x128xf32>
      %162 = vector.broadcast %159 : vector<4x1xf32> to vector<4x128xf32>
      %163 = arith.subf %143, %162 : vector<4x128xf32>
      %164 = math.exp %163 : vector<4x128xf32>
      %cst_61 = arith.constant dense<0.000000e+00> : vector<4xf32>
      %165 = vector.multi_reduction <add>, %164, %cst_61 [1] : vector<4x128xf32> to vector<4xf32>
      %166 = vector.shape_cast %165 : vector<4xf32> to vector<4x1xf32>
      %167 = math.log %166 : vector<4x1xf32>
      %168 = vector.broadcast %167 : vector<4x1xf32> to vector<4x128xf32>
      %169 = arith.subf %161, %168 : vector<4x128xf32>
      %170 = arith.subf %155, %169 : vector<4x128xf32>
      %171 = arith.mulf %157, %170 : vector<4x128xf32>
      %cst_62 = arith.constant dense<0.000000e+00> : vector<4xf32>
      %172 = vector.multi_reduction <add>, %171, %cst_62 [1] : vector<4x128xf32> to vector<4xf32>
      %173 = vector.shape_cast %172 : vector<4xf32> to vector<4x1xf32>
      %cst_63 = arith.constant dense<0.000000e+00> : vector<1xf32>
      %174 = vector.multi_reduction <add>, %173, %cst_63 [0] : vector<4x1xf32> to vector<1xf32>
      %175 = vector.shape_cast %174 : vector<1xf32> to vector<1x1xf32>
      %cst_64 = arith.constant 0.000000e+00 : f32
      %176 = vector.broadcast %cst_64 : f32 to vector<4x128xf32>
      %177 = arith.select %140, %155, %176 : vector<4x128xi1>, vector<4x128xf32>
      %cst_65 = arith.constant dense<0.000000e+00> : vector<4xf32>
      %178 = vector.multi_reduction <add>, %177, %cst_65 [1] : vector<4x128xf32> to vector<4xf32>
      %179 = vector.shape_cast %178 : vector<4xf32> to vector<4x1xf32>
      %cst_66 = arith.constant dense<0.000000e+00> : vector<1xf32>
      %180 = vector.multi_reduction <add>, %179, %cst_66 [0] : vector<4x1xf32> to vector<1xf32>
      %181 = vector.shape_cast %180 : vector<1xf32> to vector<1x1xf32>
      %cst_67 = arith.constant 0.000000e+00 : f32
      %182 = vector.broadcast %cst_67 : f32 to vector<1x1xf32>
      %183 = arith.subf %182, %181 : vector<1x1xf32>
      %cst_68 = arith.constant 1.250000e-01 : f32
      %184 = vector.broadcast %cst_68 : f32 to vector<1x1xf32>
      %185 = arith.mulf %175, %184 : vector<1x1xf32>
      %186 = arith.addf %136, %185 : vector<1x1xf32>
      %cst_69 = arith.constant 6.250000e-02 : f32
      %187 = vector.broadcast %cst_69 : f32 to vector<1x1xf32>
      %188 = arith.mulf %183, %187 : vector<1x1xf32>
      %189 = arith.addf %186, %188 : vector<1x1xf32>
      %190 = vector.extract_strided_slice %32 {offsets = [12, 0], sizes = [4, 512], strides = [1, 1]} : vector<16x512xf32> to vector<4x512xf32>
      %191 = vector.extract_strided_slice %190 {offsets = [0, 128], sizes = [4, 128], strides = [1, 1]} : vector<4x512xf32> to vector<4x128xf32>
      %192 = vector.extract_strided_slice %190 {offsets = [0, 384], sizes = [4, 128], strides = [1, 1]} : vector<4x512xf32> to vector<4x128xf32>
      %cst_70 = arith.constant dense<0xFF800000> : vector<4xf32>
      %193 = vector.multi_reduction <maximumf>, %191, %cst_70 [1] : vector<4x128xf32> to vector<4xf32>
      %194 = vector.shape_cast %193 : vector<4xf32> to vector<4x1xf32>
      %195 = vector.broadcast %194 : vector<4x1xf32> to vector<4x128xf32>
      %196 = arith.subf %191, %195 : vector<4x128xf32>
      %197 = math.exp %196 : vector<4x128xf32>
      %cst_71 = arith.constant dense<0.000000e+00> : vector<4xf32>
      %198 = vector.multi_reduction <add>, %197, %cst_71 [1] : vector<4x128xf32> to vector<4xf32>
      %199 = vector.shape_cast %198 : vector<4xf32> to vector<4x1xf32>
      %200 = vector.broadcast %194 : vector<4x1xf32> to vector<4x128xf32>
      %201 = arith.subf %191, %200 : vector<4x128xf32>
      %202 = math.log %199 : vector<4x1xf32>
      %203 = vector.broadcast %202 : vector<4x1xf32> to vector<4x128xf32>
      %204 = arith.subf %201, %203 : vector<4x128xf32>
      %205 = vector.broadcast %199 : vector<4x1xf32> to vector<4x128xf32>
      %206 = arith.divf %197, %205 : vector<4x128xf32>
      %cst_72 = arith.constant dense<0xFF800000> : vector<4xf32>
      %207 = vector.multi_reduction <maximumf>, %192, %cst_72 [1] : vector<4x128xf32> to vector<4xf32>
      %208 = vector.shape_cast %207 : vector<4xf32> to vector<4x1xf32>
      %209 = vector.broadcast %208 : vector<4x1xf32> to vector<4x128xf32>
      %210 = arith.subf %192, %209 : vector<4x128xf32>
      %211 = vector.broadcast %208 : vector<4x1xf32> to vector<4x128xf32>
      %212 = arith.subf %192, %211 : vector<4x128xf32>
      %213 = math.exp %212 : vector<4x128xf32>
      %cst_73 = arith.constant dense<0.000000e+00> : vector<4xf32>
      %214 = vector.multi_reduction <add>, %213, %cst_73 [1] : vector<4x128xf32> to vector<4xf32>
      %215 = vector.shape_cast %214 : vector<4xf32> to vector<4x1xf32>
      %216 = math.log %215 : vector<4x1xf32>
      %217 = vector.broadcast %216 : vector<4x1xf32> to vector<4x128xf32>
      %218 = arith.subf %210, %217 : vector<4x128xf32>
      %219 = arith.subf %204, %218 : vector<4x128xf32>
      %220 = arith.mulf %206, %219 : vector<4x128xf32>
      %cst_74 = arith.constant dense<0.000000e+00> : vector<4xf32>
      %221 = vector.multi_reduction <add>, %220, %cst_74 [1] : vector<4x128xf32> to vector<4xf32>
      %222 = vector.shape_cast %221 : vector<4xf32> to vector<4x1xf32>
      %cst_75 = arith.constant dense<0.000000e+00> : vector<1xf32>
      %223 = vector.multi_reduction <add>, %222, %cst_75 [0] : vector<4x1xf32> to vector<1xf32>
      %224 = vector.shape_cast %223 : vector<1xf32> to vector<1x1xf32>
      %cst_76 = arith.constant 0.000000e+00 : f32
      %225 = vector.broadcast %cst_76 : f32 to vector<4x128xf32>
      %226 = arith.select %140, %204, %225 : vector<4x128xi1>, vector<4x128xf32>
      %cst_77 = arith.constant dense<0.000000e+00> : vector<4xf32>
      %227 = vector.multi_reduction <add>, %226, %cst_77 [1] : vector<4x128xf32> to vector<4xf32>
      %228 = vector.shape_cast %227 : vector<4xf32> to vector<4x1xf32>
      %cst_78 = arith.constant dense<0.000000e+00> : vector<1xf32>
      %229 = vector.multi_reduction <add>, %228, %cst_78 [0] : vector<4x1xf32> to vector<1xf32>
      %230 = vector.shape_cast %229 : vector<1xf32> to vector<1x1xf32>
      %cst_79 = arith.constant 0.000000e+00 : f32
      %231 = vector.broadcast %cst_79 : f32 to vector<1x1xf32>
      %232 = arith.subf %231, %230 : vector<1x1xf32>
      %cst_80 = arith.constant 1.250000e-01 : f32
      %233 = vector.broadcast %cst_80 : f32 to vector<1x1xf32>
      %234 = arith.mulf %224, %233 : vector<1x1xf32>
      %235 = arith.addf %189, %234 : vector<1x1xf32>
      %cst_81 = arith.constant 6.250000e-02 : f32
      %236 = vector.broadcast %cst_81 : f32 to vector<1x1xf32>
      %237 = arith.mulf %232, %236 : vector<1x1xf32>
      %238 = arith.addf %235, %237 : vector<1x1xf32>
      %239 = vector.shape_cast %238 : vector<1x1xf32> to vector<1x1xf32>
      %240 = vector.broadcast %239 : vector<1x1xf32> to vector<1x128xf32>
      %c0_82 = arith.constant 0 : index
      %c0_83 = arith.constant 0 : index
      %241 = vector.load %arg8[%c0_82, %c0_83] : memref<1x128xf32, #tpu.memory_space<vmem>>, vector<1x128xf32>
      tpu.vector_store %arg8[%c0_82, %c0_83], %240 {strides = array<i32>} : memref<1x128xf32, #tpu.memory_space<vmem>>, vector<1x128xf32>,
    } else {
    }
    return
  }
  func.func @transform_0(%arg0: i32) -> (i32, i32) {
    %c0_i32 = arith.constant 0 : i32
    %c0_i32_0 = arith.constant 0 : i32
    return %c0_i32, %arg0 : i32, i32
  }
  func.func @transform_1(%arg0: i32) -> (i32, i32) {
    %c0_i32 = arith.constant 0 : i32
    %c0_i32_0 = arith.constant 0 : i32
    return %c0_i32, %arg0 : i32, i32
  }
  func.func @transform_2(%arg0: i32) -> (i32, i32, i32) {
    %c0_i32 = arith.constant 0 : i32
    %c0_i32_0 = arith.constant 0 : i32
    %c0_i32_1 = arith.constant 0 : i32
    %c0_i32_2 = arith.constant 0 : i32
    return %c0_i32, %c0_i32_0, %c0_i32_1 : i32, i32, i32
  }
  func.func @transform_3(%arg0: i32) -> (i32, i32) {
    %c0_i32 = arith.constant 0 : i32
    %c0_i32_0 = arith.constant 0 : i32
    return %c0_i32, %arg0 : i32, i32
  }
  func.func @transform_4(%arg0: i32) -> (i32, i32) {
    %c0_i32 = arith.constant 0 : i32
    %c0_i32_0 = arith.constant 0 : i32
    return %c0_i32, %arg0 : i32, i32
  }
  func.func @transform_5(%arg0: i32) -> (i32, i32) {
    %c0_i32 = arith.constant 0 : i32
    %c0_i32_0 = arith.constant 0 : i32
    return %c0_i32, %arg0 : i32, i32
  }
  func.func @transform_6(%arg0: i32) -> (i32, i32) {
    %c0_i32 = arith.constant 0 : i32
    %c0_i32_0 = arith.constant 0 : i32
    return %c0_i32, %arg0 : i32, i32
  }
  func.func @transform_7(%arg0: i32) -> (i32, i32) {
    %c0_i32 = arith.constant 0 : i32
    %c0_i32_0 = arith.constant 0 : i32
    %c0_i32_1 = arith.constant 0 : i32
    return %c0_i32, %c0_i32_0 : i32, i32
  }
  func.func @transform_8(%arg0: i32) -> (i32, i32) {
    %c0_i32 = arith.constant 0 : i32
    %c0_i32_0 = arith.constant 0 : i32
    return %c0_i32, %arg0 : i32, i32
  }
  func.func @transform_9(%arg0: i32) -> (i32, i32) {
    %c0_i32 = arith.constant 0 : i32
    %c0_i32_0 = arith.constant 0 : i32
    return %c0_i32, %arg0 : i32, i32
  }
}

</mosaic_0001>

<llo_original>
// kernel: tpu_custom_call.1
$region0: #{tpu_custom_call.1}
  #allocation0 [shape = 'u32[]', space=smem, size = 0x4, offset = 0x4, fixed_abs, tag = 'smem constant byte address 0x4 - core index']
  #allocation1 [shape = 'u32[144,128]{1,0:T(1,128)}', space=vmem, size = 0x12000, scoped, tag = 'internal scratch']
  #allocation2 [shape = 'f32[16,512]{1,0:T(8,128)}', space=vmem, size = 0x8000, scoped, tag = 'scratch operand']
  %s0 = inlined_call_operand.hbm [shape: f32[8,1024], index: 0, kind: input, shape index: {}]
  %s1 = inlined_call_operand.hbm [shape: f32[8,1024], index: 1, kind: input, shape index: {}]
  %s2 = inlined_call_operand.vmem [shape: s32[2,4,1], index: 2, kind: input, shape index: {}]
  %s3 = inlined_call_operand.hbm [shape: f32[128,1024], index: 3, kind: input, shape index: {}]
  %s4 = inlined_call_operand.hbm [shape: f32[128,1024], index: 4, kind: input, shape index: {}]
  %s5 = inlined_call_operand.hbm [shape: f32[128,1024], index: 5, kind: input, shape index: {}]
  %s6 = inlined_call_operand.hbm [shape: f32[128,1024], index: 6, kind: input, shape index: {}]
  %s7 = inlined_call_operand.hbm [shape: f32[1,128], index: 7, kind: output, shape index: {0}]
  %s8 = inlined_call_operand.hbm [shape: f32[128,1024], index: 8, kind: output, shape index: {1}]
  %s9 = inlined_call_operand.hbm [shape: f32[128,1024], index: 9, kind: output, shape index: {2}]
  %10 = xla_tuple %s7, %s8, %s9
  %s11 = sld [smem:[#allocation0]]
  $region86: #{tpu_custom_call.1} parent=0
    _
  %s13 = ssub.s32 1, %s11
  %s14 = scalar_select 0, %s13, %s11
  $region1: #{tpu_custom_call.1} parent=0
    #allocation3 [shape = 'u8[32768]{0}', space=vmem, size = 0x8000, scoped, tag = 'input window, operand 0, single buffered']
    #allocation4 [shape = 's32[1]{0}', space=sflag, size = 0x4, scoped, tag = 'scoped memory for tpu_custom_call.1']
    #allocation5 [shape = 's32[1]{0}', space=sflag, size = 0x4, scoped, tag = 'scoped memory for tpu_custom_call.1']
    #allocation6 [shape = 'u8[32768]{0}', space=vmem, size = 0x8000, scoped, tag = 'input window, operand 1, single buffered']
    #allocation7 [shape = 's32[1]{0}', space=sflag, size = 0x4, scoped, tag = 'scoped memory for tpu_custom_call.1']
    #allocation8 [shape = 'u8[524288]{0}', space=vmem, size = 0x80000, scoped, tag = 'input window, operand 3, single buffered']
    #allocation9 [shape = 'u8[524288]{0}', space=vmem, size = 0x80000, scoped, tag = 'input window, operand 4, single buffered']
    #allocation10 [shape = 's32[1]{0}', space=sflag, size = 0x4, scoped, tag = 'scoped memory for tpu_custom_call.1']
    #allocation11 [shape = 'u8[524288]{0}', space=vmem, size = 0x80000, scoped, tag = 'input window, operand 5, single buffered']
    #allocation12 [shape = 'u8[524288]{0}', space=vmem, size = 0x80000, scoped, tag = 'input window, operand 6, single buffered']
    #allocation13 [shape = 's32[1]{0}', space=sflag, size = 0x4, scoped, tag = 'scoped memory for tpu_custom_call.1']
    #allocation14 [shape = 'u8[512]{0}', space=vmem, size = 0x400, scoped, tag = 'output window, operand 0, single buffered']
    #allocation15 [shape = 'u8[524288]{0}', space=vmem, size = 0x80000, scoped, tag = 'output window, operand 1, single buffered']
    #allocation16 [shape = 's32[1]{0}', space=sflag, size = 0x4, scoped, tag = 'scoped memory for tpu_custom_call.1']
    #allocation17 [shape = 'u8[524288]{0}', space=vmem, size = 0x80000, scoped, tag = 'output window, operand 2, single buffered']
    %15 = vsyncpa [#allocation4], 0
    %16 = vsyncpa [#allocation7], 0
    %17 = vsyncpa [#allocation10], 0
    %18 = vsyncpa [#allocation13], 0
    %19 = vsyncpa [#allocation5], 0
    %20 = vsyncpa [#allocation16], 0
    // Predicated region
    $region2: #{tpu_custom_call.1} parent=1 // pred_check
      _
    $region3: #{tpu_custom_call.1} parent=1 // pred_check_branch
      %22 = sbr.rel (0) target = $region5
    $region4: #{tpu_custom_call.1} parent=1 // pred_region
      %s24 = ssub.s32 1024, 1024
      %25 = vsyncadd [#allocation4], %s24
      %s27 = sshll.u32 [#allocation3], 4
      %s28 = int_to_ptr.vmem [resolvable:$true] %s27
      %30 = dma.hbm_to_vmem [thread:$0]  %s0, 1024, %s28, [#allocation4]
    $region5: #{tpu_custom_call.1} parent=1 // pred_fallthru
      _
    // Predicated region
    $region6: #{tpu_custom_call.1} parent=1 // pred_check
      _
    $region7: #{tpu_custom_call.1} parent=1 // pred_check_branch
      %32 = sbr.rel (0) target = $region9
    $region8: #{tpu_custom_call.1} parent=1 // pred_region
      %s34 = ssub.s32 1024, 1024
      %35 = vsyncadd [#allocation7], %s34
      %s37 = sshll.u32 [#allocation6], 4
      %s38 = int_to_ptr.vmem [resolvable:$true] %s37
      %40 = dma.hbm_to_vmem [thread:$0]  %s1, 1024, %s38, [#allocation7]
    $region9: #{tpu_custom_call.1} parent=1 // pred_fallthru
      _
    // Predicated region
    $region10: #{tpu_custom_call.1} parent=1 // pred_check
      _
    $region11: #{tpu_custom_call.1} parent=1 // pred_check_branch
      %42 = sbr.rel (0) target = $region13
    $region12: #{tpu_custom_call.1} parent=1 // pred_region
      _
    $region13: #{tpu_custom_call.1} parent=1 // pred_fallthru
      _
    // Predicated region
    $region14: #{tpu_custom_call.1} parent=1 // pred_check
      _
    $region15: #{tpu_custom_call.1} parent=1 // pred_check_branch
      %44 = sbr.rel (0) target = $region17
    $region16: #{tpu_custom_call.1} parent=1 // pred_region
      %s46 = ssub.s32 16384, 16384
      %47 = vsyncadd [#allocation7], %s46
      %s48 = sshll.u32 [#allocation8], 4
      %s49 = int_to_ptr.vmem [resolvable:$true] %s48
      %54 = dma.hbm_to_vmem [thread:$0]  %s3, 16384, %s49, [#allocation7], 1024, 1024, 64
    $region17: #{tpu_custom_call.1} parent=1 // pred_fallthru
      _
    // Predicated region
    $region18: #{tpu_custom_call.1} parent=1 // pred_check
      _
    $region19: #{tpu_custom_call.1} parent=1 // pred_check_branch
      %56 = sbr.rel (0) target = $region21
    $region20: #{tpu_custom_call.1} parent=1 // pred_region
      %s58 = ssub.s32 16384, 16384
      %59 = vsyncadd [#allocation10], %s58
      %s60 = sshll.u32 [#allocation9], 4
      %s61 = int_to_ptr.vmem [resolvable:$true] %s60
      %66 = dma.hbm_to_vmem [thread:$0]  %s4, 16384, %s61, [#allocation10], 1024, 1024, 64
    $region21: #{tpu_custom_call.1} parent=1 // pred_fallthru
      _
    // Predicated region
    $region22: #{tpu_custom_call.1} parent=1 // pred_check
      _
    $region23: #{tpu_custom_call.1} parent=1 // pred_check_branch
      %68 = sbr.rel (0) target = $region25
    $region24: #{tpu_custom_call.1} parent=1 // pred_region
      %s70 = ssub.s32 16384, 16384
      %71 = vsyncadd [#allocation10], %s70
      %s72 = sshll.u32 [#allocation11], 4
      %s73 = int_to_ptr.vmem [resolvable:$true] %s72
      %78 = dma.hbm_to_vmem [thread:$0]  %s5, 16384, %s73, [#allocation10], 1024, 1024, 64
    $region25: #{tpu_custom_call.1} parent=1 // pred_fallthru
      _
    // Predicated region
    $region26: #{tpu_custom_call.1} parent=1 // pred_check
      _
    $region27: #{tpu_custom_call.1} parent=1 // pred_check_branch
      %80 = sbr.rel (0) target = $region29
    $region28: #{tpu_custom_call.1} parent=1 // pred_region
      %s82 = ssub.s32 16384, 16384
      %83 = vsyncadd [#allocation13], %s82
      %s84 = sshll.u32 [#allocation12], 4
      %s85 = int_to_ptr.vmem [resolvable:$true] %s84
      %90 = dma.hbm_to_vmem [thread:$0]  %s6, 16384, %s85, [#allocation13], 1024, 1024, 64
    $region29: #{tpu_custom_call.1} parent=1 // pred_fallthru
      _
    // Predicated region
    $region30: #{tpu_custom_call.1} parent=1 // pred_check
      _
    $region31: #{tpu_custom_call.1} parent=1 // pred_check_branch
      %92 = sbr.rel (0) target = $region33
    $region32: #{tpu_custom_call.1} parent=1 // pred_region
      %93 = dma.done [#allocation4], 1024
    $region33: #{tpu_custom_call.1} parent=1 // pred_fallthru
      _
    // Predicated region
    $region34: #{tpu_custom_call.1} parent=1 // pred_check
      _
    $region35: #{tpu_custom_call.1} parent=1 // pred_check_branch
      %95 = sbr.rel (0) target = $region37
    $region36: #{tpu_custom_call.1} parent=1 // pred_region
      %96 = dma.done [#allocation7], 1024
    $region37: #{tpu_custom_call.1} parent=1 // pred_fallthru
      _
    // Predicated region
    $region38: #{tpu_custom_call.1} parent=1 // pred_check
      _
    $region39: #{tpu_custom_call.1} parent=1 // pred_check_branch
      %98 = sbr.rel (0) target = $region41
    $region40: #{tpu_custom_call.1} parent=1 // pred_region
      %99 = dma.done [#allocation7], 16384
    $region41: #{tpu_custom_call.1} parent=1 // pred_fallthru
      _
    // Predicated region
    $region42: #{tpu_custom_call.1} parent=1 // pred_check
      _
    $region43: #{tpu_custom_call.1} parent=1 // pred_check_branch
      %101 = sbr.rel (0) target = $region45
    $region44: #{tpu_custom_call.1} parent=1 // pred_region
      %102 = dma.done [#allocation10], 16384
    $region45: #{tpu_custom_call.1} parent=1 // pred_fallthru
      _
    // Predicated region
    $region46: #{tpu_custom_call.1} parent=1 // pred_check
      _
    $region47: #{tpu_custom_call.1} parent=1 // pred_check_branch
      %104 = sbr.rel (0) target = $region49
    $region48: #{tpu_custom_call.1} parent=1 // pred_region
      %105 = dma.done [#allocation10], 16384
    $region49: #{tpu_custom_call.1} parent=1 // pred_fallthru
      _
    // Predicated region
    $region50: #{tpu_custom_call.1} parent=1 // pred_check
      _
    $region51: #{tpu_custom_call.1} parent=1 // pred_check_branch
      %107 = sbr.rel (0) target = $region53
    $region52: #{tpu_custom_call.1} parent=1 // pred_region
      %108 = dma.done [#allocation13], 16384
    $region53: #{tpu_custom_call.1} parent=1 // pred_fallthru
      _
    %p109 = scmp.eq.s32.totalorder 0, 0
    // Predicated region
    $region54: #{tpu_custom_call.1} parent=1 // pred_check
      %p110 = pneg %p109
    $region55: #{tpu_custom_call.1} parent=1 // pred_check_branch
      %112 = sbr.rel (%p110) target = $region57
    $region56: #{tpu_custom_call.1} parent=1 // pred_region
      %113 = vst [vmem:[#allocation2] sm:$0xff] 0.0
      %114 = vst [vmem:[#allocation2 + $0x8] sm:$0xff] 0.0
      %115 = vst [vmem:[#allocation2 + $0x10] sm:$0xff] 0.0
      %116 = vst [vmem:[#allocation2 + $0x18] sm:$0xff] 0.0
      %117 = vst [vmem:[#allocation2 + $0x20] sm:$0xff] 0.0
      %118 = vst [vmem:[#allocation2 + $0x28] sm:$0xff] 0.0
      %119 = vst [vmem:[#allocation2 + $0x30] sm:$0xff] 0.0
      %120 = vst [vmem:[#allocation2 + $0x38] sm:$0xff] 0.0
    $region57: #{tpu_custom_call.1} parent=1 // pred_fallthru
      _
    %v121 = vld [vmem:[#allocation8] sm:$0xff]
    %v122 = vld [vmem:[#allocation8 + $0x8] sm:$0xff]
    %v123 = vld [vmem:[#allocation8 + $0x10] sm:$0xff]
    %v124 = vld [vmem:[#allocation8 + $0x18] sm:$0xff]
    %v125 = vld [vmem:[#allocation8 + $0x20] sm:$0xff]
    %v126 = vld [vmem:[#allocation8 + $0x28] sm:$0xff]
    %v127 = vld [vmem:[#allocation8 + $0x30] sm:$0xff]
    %v128 = vld [vmem:[#allocation8 + $0x38] sm:$0xff]
    %v129 = vld [vmem:[#allocation8 + $0x40] sm:$0xff]
    %v130 = vld [vmem:[#allocation8 + $0x48] sm:$0xff]
    %v131 = vld [vmem:[#allocation8 + $0x50] sm:$0xff]
    %v132 = vld [vmem:[#allocation8 + $0x58] sm:$0xff]
    %v133 = vld [vmem:[#allocation8 + $0x60] sm:$0xff]
    %v134 = vld [vmem:[#allocation8 + $0x68] sm:$0xff]
    %v135 = vld [vmem:[#allocation8 + $0x70] sm:$0xff]
    %v136 = vld [vmem:[#allocation8 + $0x78] sm:$0xff]
    %v137 = vld [vmem:[#allocation8 + $0x80] sm:$0xff]
    %v138 = vld [vmem:[#allocation8 + $0x88] sm:$0xff]
    %v139 = vld [vmem:[#allocation8 + $0x90] sm:$0xff]
    %v140 = vld [vmem:[#allocation8 + $0x98] sm:$0xff]
    %v141 = vld [vmem:[#allocation8 + $0xa0] sm:$0xff]
    %v142 = vld [vmem:[#allocation8 + $0xa8] sm:$0xff]
    %v143 = vld [vmem:[#allocation8 + $0xb0] sm:$0xff]
    %v144 = vld [vmem:[#allocation8 + $0xb8] sm:$0xff]
    %v145 = vld [vmem:[#allocation8 + $0xc0] sm:$0xff]
    %v146 = vld [vmem:[#allocation8 + $0xc8] sm:$0xff]
    %v147 = vld [vmem:[#allocation8 + $0xd0] sm:$0xff]
    %v148 = vld [vmem:[#allocation8 + $0xd8] sm:$0xff]
    %v149 = vld [vmem:[#allocation8 + $0xe0] sm:$0xff]
    %v150 = vld [vmem:[#allocation8 + $0xe8] sm:$0xff]
    %v151 = vld [vmem:[#allocation8 + $0xf0] sm:$0xff]
    %v152 = vld [vmem:[#allocation8 + $0xf8] sm:$0xff]
    %v153 = vld [vmem:[#allocation8 + $0x100] sm:$0xff]
    %v154 = vld [vmem:[#allocation8 + $0x108] sm:$0xff]
    %v155 = vld [vmem:[#allocation8 + $0x110] sm:$0xff]
    %v156 = vld [vmem:[#allocation8 + $0x118] sm:$0xff]
    %v157 = vld [vmem:[#allocation8 + $0x120] sm:$0xff]
    %v158 = vld [vmem:[#allocation8 + $0x128] sm:$0xff]
    %v159 = vld [vmem:[#allocation8 + $0x130] sm:$0xff]
    %v160 = vld [vmem:[#allocation8 + $0x138] sm:$0xff]
    %v161 = vld [vmem:[#allocation8 + $0x140] sm:$0xff]
    %v162 = vld [vmem:[#allocation8 + $0x148] sm:$0xff]
    %v163 = vld [vmem:[#allocation8 + $0x150] sm:$0xff]
    %v164 = vld [vmem:[#allocation8 + $0x158] sm:$0xff]
    %v165 = vld [vmem:[#allocation8 + $0x160] sm:$0xff]
    %v166 = vld [vmem:[#allocation8 + $0x168] sm:$0xff]
    %v167 = vld [vmem:[#allocation8 + $0x170] sm:$0xff]
    %v168 = vld [vmem:[#allocation8 + $0x178] sm:$0xff]
    %v169 = vld [vmem:[#allocation8 + $0x180] sm:$0xff]
    %v170 = vld [vmem:[#allocation8 + $0x188] sm:$0xff]
    %v171 = vld [vmem:[#allocation8 + $0x190] sm:$0xff]
    %v172 = vld [vmem:[#allocation8 + $0x198] sm:$0xff]
    %v173 = vld [vmem:[#allocation8 + $0x1a0] sm:$0xff]
    %v174 = vld [vmem:[#allocation8 + $0x1a8] sm:$0xff]
    %v175 = vld [vmem:[#allocation8 + $0x1b0] sm:$0xff]
    %v176 = vld [vmem:[#allocation8 + $0x1b8] sm:$0xff]
    %v177 = vld [vmem:[#allocation8 + $0x1c0] sm:$0xff]
    %v178 = vld [vmem:[#allocation8 + $0x1c8] sm:$0xff]
    %v179 = vld [vmem:[#allocation8 + $0x1d0] sm:$0xff]
    %v180 = vld [vmem:[#allocation8 + $0x1d8] sm:$0xff]
    %v181 = vld [vmem:[#allocation8 + $0x1e0] sm:$0xff]
    %v182 = vld [vmem:[#allocation8 + $0x1e8] sm:$0xff]
    %v183 = vld [vmem:[#allocation8 + $0x1f0] sm:$0xff]
    %v184 = vld [vmem:[#allocation8 + $0x1f8] sm:$0xff]
    %v185 = vld [vmem:[#allocation8 + $0x200] sm:$0xff]
    %v186 = vld [vmem:[#allocation8 + $0x208] sm:$0xff]
    %v187 = vld [vmem:[#allocation8 + $0x210] sm:$0xff]
    %v188 = vld [vmem:[#allocation8 + $0x218] sm:$0xff]
    %v189 = vld [vmem:[#allocation8 + $0x220] sm:$0xff]
    %v190 = vld [vmem:[#allocation8 + $0x228] sm:$0xff]
    %v191 = vld [vmem:[#allocation8 + $0x230] sm:$0xff]
    %v192 = vld [vmem:[#allocation8 + $0x238] sm:$0xff]
    %v193 = vld [vmem:[#allocation8 + $0x240] sm:$0xff]
    %v194 = vld [vmem:[#allocation8 + $0x248] sm:$0xff]
    %v195 = vld [vmem:[#allocation8 + $0x250] sm:$0xff]
    %v196 = vld [vmem:[#allocation8 + $0x258] sm:$0xff]
    %v197 = vld [vmem:[#allocation8 + $0x260] sm:$0xff]
    %v198 = vld [vmem:[#allocation8 + $0x268] sm:$0xff]
    %v199 = vld [vmem:[#allocation8 + $0x270] sm:$0xff]
    %v200 = vld [vmem:[#allocation8 + $0x278] sm:$0xff]
    %v201 = vld [vmem:[#allocation8 + $0x280] sm:$0xff]
    %v202 = vld [vmem:[#allocation8 + $0x288] sm:$0xff]
    %v203 = vld [vmem:[#allocation8 + $0x290] sm:$0xff]
    %v204 = vld [vmem:[#allocation8 + $0x298] sm:$0xff]
    %v205 = vld [vmem:[#allocation8 + $0x2a0] sm:$0xff]
    %v206 = vld [vmem:[#allocation8 + $0x2a8] sm:$0xff]
    %v207 = vld [vmem:[#allocation8 + $0x2b0] sm:$0xff]
    %v208 = vld [vmem:[#allocation8 + $0x2b8] sm:$0xff]
    %v209 = vld [vmem:[#allocation8 + $0x2c0] sm:$0xff]
    %v210 = vld [vmem:[#allocation8 + $0x2c8] sm:$0xff]
    %v211 = vld [vmem:[#allocation8 + $0x2d0] sm:$0xff]
    %v212 = vld [vmem:[#allocation8 + $0x2d8] sm:$0xff]
    %v213 = vld [vmem:[#allocation8 + $0x2e0] sm:$0xff]
    %v214 = vld [vmem:[#allocation8 + $0x2e8] sm:$0xff]
    %v215 = vld [vmem:[#allocation8 + $0x2f0] sm:$0xff]
    %v216 = vld [vmem:[#allocation8 + $0x2f8] sm:$0xff]
    %v217 = vld [vmem:[#allocation8 + $0x300] sm:$0xff]
    %v218 = vld [vmem:[#allocation8 + $0x308] sm:$0xff]
    %v219 = vld [vmem:[#allocation8 + $0x310] sm:$0xff]
    %v220 = vld [vmem:[#allocation8 + $0x318] sm:$0xff]
    %v221 = vld [vmem:[#allocation8 + $0x320] sm:$0xff]
    %v222 = vld [vmem:[#allocation8 + $0x328] sm:$0xff]
    %v223 = vld [vmem:[#allocation8 + $0x330] sm:$0xff]
    %v224 = vld [vmem:[#allocation8 + $0x338] sm:$0xff]
    %v225 = vld [vmem:[#allocation8 + $0x340] sm:$0xff]
    %v226 = vld [vmem:[#allocation8 + $0x348] sm:$0xff]
    %v227 = vld [vmem:[#allocation8 + $0x350] sm:$0xff]
    %v228 = vld [vmem:[#allocation8 + $0x358] sm:$0xff]
    %v229 = vld [vmem:[#allocation8 + $0x360] sm:$0xff]
    %v230 = vld [vmem:[#allocation8 + $0x368] sm:$0xff]
    %v231 = vld [vmem:[#allocation8 + $0x370] sm:$0xff]
    %v232 = vld [vmem:[#allocation8 + $0x378] sm:$0xff]
    %v233 = vld [vmem:[#allocation8 + $0x380] sm:$0xff]
    %v234 = vld [vmem:[#allocation8 + $0x388] sm:$0xff]
    %v235 = vld [vmem:[#allocation8 + $0x390] sm:$0xff]
    %v236 = vld [vmem:[#allocation8 + $0x398] sm:$0xff]
    %v237 = vld [vmem:[#allocation8 + $0x3a0] sm:$0xff]
    %v238 = vld [vmem:[#allocation8 + $0x3a8] sm:$0xff]
    %v239 = vld [vmem:[#allocation8 + $0x3b0] sm:$0xff]
    %v240 = vld [vmem:[#allocation8 + $0x3b8] sm:$0xff]
    %v241 = vld [vmem:[#allocation8 + $0x3c0] sm:$0xff]
    %v242 = vld [vmem:[#allocation8 + $0x3c8] sm:$0xff]
    %v243 = vld [vmem:[#allocation8 + $0x3d0] sm:$0xff]
    %v244 = vld [vmem:[#allocation8 + $0x3d8] sm:$0xff]
    %v245 = vld [vmem:[#allocation8 + $0x3e0] sm:$0xff]
    %v246 = vld [vmem:[#allocation8 + $0x3e8] sm:$0xff]
    %v247 = vld [vmem:[#allocation8 + $0x3f0] sm:$0xff]
    %v248 = vld [vmem:[#allocation8 + $0x3f8] sm:$0xff]
    %v249 = vld [vmem:[#allocation9] sm:$0xff]
    %v250 = vld [vmem:[#allocation9 + $0x8] sm:$0xff]
    %v251 = vld [vmem:[#allocation9 + $0x10] sm:$0xff]
    %v252 = vld [vmem:[#allocation9 + $0x18] sm:$0xff]
    %v253 = vld [vmem:[#allocation9 + $0x20] sm:$0xff]
    %v254 = vld [vmem:[#allocation9 + $0x28] sm:$0xff]
    %v255 = vld [vmem:[#allocation9 + $0x30] sm:$0xff]
    %v256 = vld [vmem:[#allocation9 + $0x38] sm:$0xff]
    %v257 = vld [vmem:[#allocation9 + $0x40] sm:$0xff]
    %v258 = vld [vmem:[#allocation9 + $0x48] sm:$0xff]
    %v259 = vld [vmem:[#allocation9 + $0x50] sm:$0xff]
    %v260 = vld [vmem:[#allocation9 + $0x58] sm:$0xff]
    %v261 = vld [vmem:[#allocation9 + $0x60] sm:$0xff]
    %v262 = vld [vmem:[#allocation9 + $0x68] sm:$0xff]
    %v263 = vld [vmem:[#allocation9 + $0x70] sm:$0xff]
    %v264 = vld [vmem:[#allocation9 + $0x78] sm:$0xff]
    %v265 = vld [vmem:[#allocation9 + $0x80] sm:$0xff]
    %v266 = vld [vmem:[#allocation9 + $0x88] sm:$0xff]
    %v267 = vld [vmem:[#allocation9 + $0x90] sm:$0xff]
    %v268 = vld [vmem:[#allocation9 + $0x98] sm:$0xff]
    %v269 = vld [vmem:[#allocation9 + $0xa0] sm:$0xff]
    %v270 = vld [vmem:[#allocation9 + $0xa8] sm:$0xff]
    %v271 = vld [vmem:[#allocation9 + $0xb0] sm:$0xff]
    %v272 = vld [vmem:[#allocation9 + $0xb8] sm:$0xff]
    %v273 = vld [vmem:[#allocation9 + $0xc0] sm:$0xff]
    %v274 = vld [vmem:[#allocation9 + $0xc8] sm:$0xff]
    %v275 = vld [vmem:[#allocation9 + $0xd0] sm:$0xff]
    %v276 = vld [vmem:[#allocation9 + $0xd8] sm:$0xff]
    %v277 = vld [vmem:[#allocation9 + $0xe0] sm:$0xff]
    %v278 = vld [vmem:[#allocation9 + $0xe8] sm:$0xff]
    %v279 = vld [vmem:[#allocation9 + $0xf0] sm:$0xff]
    %v280 = vld [vmem:[#allocation9 + $0xf8] sm:$0xff]
    %v281 = vld [vmem:[#allocation9 + $0x100] sm:$0xff]
    %v282 = vld [vmem:[#allocation9 + $0x108] sm:$0xff]
    %v283 = vld [vmem:[#allocation9 + $0x110] sm:$0xff]
    %v284 = vld [vmem:[#allocation9 + $0x118] sm:$0xff]
    %v285 = vld [vmem:[#allocation9 + $0x120] sm:$0xff]
    %v286 = vld [vmem:[#allocation9 + $0x128] sm:$0xff]
    %v287 = vld [vmem:[#allocation9 + $0x130] sm:$0xff]
    %v288 = vld [vmem:[#allocation9 + $0x138] sm:$0xff]
    %v289 = vld [vmem:[#allocation9 + $0x140] sm:$0xff]
    %v290 = vld [vmem:[#allocation9 + $0x148] sm:$0xff]
    %v291 = vld [vmem:[#allocation9 + $0x150] sm:$0xff]
    %v292 = vld [vmem:[#allocation9 + $0x158] sm:$0xff]
    %v293 = vld [vmem:[#allocation9 + $0x160] sm:$0xff]
    %v294 = vld [vmem:[#allocation9 + $0x168] sm:$0xff]
    %v295 = vld [vmem:[#allocation9 + $0x170] sm:$0xff]
    %v296 = vld [vmem:[#allocation9 + $0x178] sm:$0xff]
    %v297 = vld [vmem:[#allocation9 + $0x180] sm:$0xff]
    %v298 = vld [vmem:[#allocation9 + $0x188] sm:$0xff]
    %v299 = vld [vmem:[#allocation9 + $0x190] sm:$0xff]
    %v300 = vld [vmem:[#allocation9 + $0x198] sm:$0xff]
    %v301 = vld [vmem:[#allocation9 + $0x1a0] sm:$0xff]
    %v302 = vld [vmem:[#allocation9 + $0x1a8] sm:$0xff]
    %v303 = vld [vmem:[#allocation9 + $0x1b0] sm:$0xff]
    %v304 = vld [vmem:[#allocation9 + $0x1b8] sm:$0xff]
    %v305 = vld [vmem:[#allocation9 + $0x1c0] sm:$0xff]
    %v306 = vld [vmem:[#allocation9 + $0x1c8] sm:$0xff]
    %v307 = vld [vmem:[#allocation9 + $0x1d0] sm:$0xff]
    %v308 = vld [vmem:[#allocation9 + $0x1d8] sm:$0xff]
    %v309 = vld [vmem:[#allocation9 + $0x1e0] sm:$0xff]
    %v310 = vld [vmem:[#allocation9 + $0x1e8] sm:$0xff]
    %v311 = vld [vmem:[#allocation9 + $0x1f0] sm:$0xff]
    %v312 = vld [vmem:[#allocation9 + $0x1f8] sm:$0xff]
    %v313 = vld [vmem:[#allocation9 + $0x200] sm:$0xff]
    %v314 = vld [vmem:[#allocation9 + $0x208] sm:$0xff]
    %v315 = vld [vmem:[#allocation9 + $0x210] sm:$0xff]
    %v316 = vld [vmem:[#allocation9 + $0x218] sm:$0xff]
    %v317 = vld [vmem:[#allocation9 + $0x220] sm:$0xff]
    %v318 = vld [vmem:[#allocation9 + $0x228] sm:$0xff]
    %v319 = vld [vmem:[#allocation9 + $0x230] sm:$0xff]
    %v320 = vld [vmem:[#allocation9 + $0x238] sm:$0xff]
    %v321 = vld [vmem:[#allocation9 + $0x240] sm:$0xff]
    %v322 = vld [vmem:[#allocation9 + $0x248] sm:$0xff]
    %v323 = vld [vmem:[#allocation9 + $0x250] sm:$0xff]
    %v324 = vld [vmem:[#allocation9 + $0x258] sm:$0xff]
    %v325 = vld [vmem:[#allocation9 + $0x260] sm:$0xff]
    %v326 = vld [vmem:[#allocation9 + $0x268] sm:$0xff]
    %v327 = vld [vmem:[#allocation9 + $0x270] sm:$0xff]
    %v328 = vld [vmem:[#allocation9 + $0x278] sm:$0xff]
    %v329 = vld [vmem:[#allocation9 + $0x280] sm:$0xff]
    %v330 = vld [vmem:[#allocation9 + $0x288] sm:$0xff]
    %v331 = vld [vmem:[#allocation9 + $0x290] sm:$0xff]
    %v332 = vld [vmem:[#allocation9 + $0x298] sm:$0xff]
    %v333 = vld [vmem:[#allocation9 + $0x2a0] sm:$0xff]
    %v334 = vld [vmem:[#allocation9 + $0x2a8] sm:$0xff]
    %v335 = vld [vmem:[#allocation9 + $0x2b0] sm:$0xff]
    %v336 = vld [vmem:[#allocation9 + $0x2b8] sm:$0xff]
    %v337 = vld [vmem:[#allocation9 + $0x2c0] sm:$0xff]
    %v338 = vld [vmem:[#allocation9 + $0x2c8] sm:$0xff]
    %v339 = vld [vmem:[#allocation9 + $0x2d0] sm:$0xff]
    %v340 = vld [vmem:[#allocation9 + $0x2d8] sm:$0xff]
    %v341 = vld [vmem:[#allocation9 + $0x2e0] sm:$0xff]
    %v342 = vld [vmem:[#allocation9 + $0x2e8] sm:$0xff]
    %v343 = vld [vmem:[#allocation9 + $0x2f0] sm:$0xff]
    %v344 = vld [vmem:[#allocation9 + $0x2f8] sm:$0xff]
    %v345 = vld [vmem:[#allocation9 + $0x300] sm:$0xff]
    %v346 = vld [vmem:[#allocation9 + $0x308] sm:$0xff]
    %v347 = vld [vmem:[#allocation9 + $0x310] sm:$0xff]
    %v348 = vld [vmem:[#allocation9 + $0x318] sm:$0xff]
    %v349 = vld [vmem:[#allocation9 + $0x320] sm:$0xff]
    %v350 = vld [vmem:[#allocation9 + $0x328] sm:$0xff]
    %v351 = vld [vmem:[#allocation9 + $0x330] sm:$0xff]
    %v352 = vld [vmem:[#allocation9 + $0x338] sm:$0xff]
    %v353 = vld [vmem:[#allocation9 + $0x340] sm:$0xff]
    %v354 = vld [vmem:[#allocation9 + $0x348] sm:$0xff]
    %v355 = vld [vmem:[#allocation9 + $0x350] sm:$0xff]
    %v356 = vld [vmem:[#allocation9 + $0x358] sm:$0xff]
    %v357 = vld [vmem:[#allocation9 + $0x360] sm:$0xff]
    %v358 = vld [vmem:[#allocation9 + $0x368] sm:$0xff]
    %v359 = vld [vmem:[#allocation9 + $0x370] sm:$0xff]
    %v360 = vld [vmem:[#allocation9 + $0x378] sm:$0xff]
    %v361 = vld [vmem:[#allocation9 + $0x380] sm:$0xff]
    %v362 = vld [vmem:[#allocation9 + $0x388] sm:$0xff]
    %v363 = vld [vmem:[#allocation9 + $0x390] sm:$0xff]
    %v364 = vld [vmem:[#allocation9 + $0x398] sm:$0xff]
    %v365 = vld [vmem:[#allocation9 + $0x3a0] sm:$0xff]
    %v366 = vld [vmem:[#allocation9 + $0x3a8] sm:$0xff]
    %v367 = vld [vmem:[#allocation9 + $0x3b0] sm:$0xff]
    %v368 = vld [vmem:[#allocation9 + $0x3b8] sm:$0xff]
    %v369 = vld [vmem:[#allocation9 + $0x3c0] sm:$0xff]
    %v370 = vld [vmem:[#allocation9 + $0x3c8] sm:$0xff]
    %v371 = vld [vmem:[#allocation9 + $0x3d0] sm:$0xff]
    %v372 = vld [vmem:[#allocation9 + $0x3d8] sm:$0xff]
    %v373 = vld [vmem:[#allocation9 + $0x3e0] sm:$0xff]
    %v374 = vld [vmem:[#allocation9 + $0x3e8] sm:$0xff]
    %v375 = vld [vmem:[#allocation9 + $0x3f0] sm:$0xff]
    %v376 = vld [vmem:[#allocation9 + $0x3f8] sm:$0xff]
    %v377 = vld [vmem:[#allocation12] sm:$0xff]
    %v378 = vld [vmem:[#allocation12 + $0x8] sm:$0xff]
    %v379 = vld [vmem:[#allocation12 + $0x10] sm:$0xff]
    %v380 = vld [vmem:[#allocation12 + $0x18] sm:$0xff]
    %v381 = vld [vmem:[#allocation12 + $0x20] sm:$0xff]
    %v382 = vld [vmem:[#allocation12 + $0x28] sm:$0xff]
    %v383 = vld [vmem:[#allocation12 + $0x30] sm:$0xff]
    %v384 = vld [vmem:[#allocation12 + $0x38] sm:$0xff]
    %v385 = vld [vmem:[#allocation12 + $0x40] sm:$0xff]
    %v386 = vld [vmem:[#allocation12 + $0x48] sm:$0xff]
    %v387 = vld [vmem:[#allocation12 + $0x50] sm:$0xff]
    %v388 = vld [vmem:[#allocation12 + $0x58] sm:$0xff]
    %v389 = vld [vmem:[#allocation12 + $0x60] sm:$0xff]
    %v390 = vld [vmem:[#allocation12 + $0x68] sm:$0xff]
    %v391 = vld [vmem:[#allocation12 + $0x70] sm:$0xff]
    %v392 = vld [vmem:[#allocation12 + $0x78] sm:$0xff]
    %v393 = vld [vmem:[#allocation12 + $0x80] sm:$0xff]
    %v394 = vld [vmem:[#allocation12 + $0x88] sm:$0xff]
    %v395 = vld [vmem:[#allocation12 + $0x90] sm:$0xff]
    %v396 = vld [vmem:[#allocation12 + $0x98] sm:$0xff]
    %v397 = vld [vmem:[#allocation12 + $0xa0] sm:$0xff]
    %v398 = vld [vmem:[#allocation12 + $0xa8] sm:$0xff]
    %v399 = vld [vmem:[#allocation12 + $0xb0] sm:$0xff]
    %v400 = vld [vmem:[#allocation12 + $0xb8] sm:$0xff]
    %v401 = vld [vmem:[#allocation12 + $0xc0] sm:$0xff]
    %v402 = vld [vmem:[#allocation12 + $0xc8] sm:$0xff]
    %v403 = vld [vmem:[#allocation12 + $0xd0] sm:$0xff]
    %v404 = vld [vmem:[#allocation12 + $0xd8] sm:$0xff]
    %v405 = vld [vmem:[#allocation12 + $0xe0] sm:$0xff]
    %v406 = vld [vmem:[#allocation12 + $0xe8] sm:$0xff]
    %v407 = vld [vmem:[#allocation12 + $0xf0] sm:$0xff]
    %v408 = vld [vmem:[#allocation12 + $0xf8] sm:$0xff]
    %v409 = vld [vmem:[#allocation12 + $0x100] sm:$0xff]
    %v410 = vld [vmem:[#allocation12 + $0x108] sm:$0xff]
    %v411 = vld [vmem:[#allocation12 + $0x110] sm:$0xff]
    %v412 = vld [vmem:[#allocation12 + $0x118] sm:$0xff]
    %v413 = vld [vmem:[#allocation12 + $0x120] sm:$0xff]
    %v414 = vld [vmem:[#allocation12 + $0x128] sm:$0xff]
    %v415 = vld [vmem:[#allocation12 + $0x130] sm:$0xff]
    %v416 = vld [vmem:[#allocation12 + $0x138] sm:$0xff]
    %v417 = vld [vmem:[#allocation12 + $0x140] sm:$0xff]
    %v418 = vld [vmem:[#allocation12 + $0x148] sm:$0xff]
    %v419 = vld [vmem:[#allocation12 + $0x150] sm:$0xff]
    %v420 = vld [vmem:[#allocation12 + $0x158] sm:$0xff]
    %v421 = vld [vmem:[#allocation12 + $0x160] sm:$0xff]
    %v422 = vld [vmem:[#allocation12 + $0x168] sm:$0xff]
    %v423 = vld [vmem:[#allocation12 + $0x170] sm:$0xff]
    %v424 = vld [vmem:[#allocation12 + $0x178] sm:$0xff]
    %v425 = vld [vmem:[#allocation12 + $0x180] sm:$0xff]
    %v426 = vld [vmem:[#allocation12 + $0x188] sm:$0xff]
    %v427 = vld [vmem:[#allocation12 + $0x190] sm:$0xff]
    %v428 = vld [vmem:[#allocation12 + $0x198] sm:$0xff]
    %v429 = vld [vmem:[#allocation12 + $0x1a0] sm:$0xff]
    %v430 = vld [vmem:[#allocation12 + $0x1a8] sm:$0xff]
    %v431 = vld [vmem:[#allocation12 + $0x1b0] sm:$0xff]
    %v432 = vld [vmem:[#allocation12 + $0x1b8] sm:$0xff]
    %v433 = vld [vmem:[#allocation12 + $0x1c0] sm:$0xff]
    %v434 = vld [vmem:[#allocation12 + $0x1c8] sm:$0xff]
    %v435 = vld [vmem:[#allocation12 + $0x1d0] sm:$0xff]
    %v436 = vld [vmem:[#allocation12 + $0x1d8] sm:$0xff]
    %v437 = vld [vmem:[#allocation12 + $0x1e0] sm:$0xff]
    %v438 = vld [vmem:[#allocation12 + $0x1e8] sm:$0xff]
    %v439 = vld [vmem:[#allocation12 + $0x1f0] sm:$0xff]
    %v440 = vld [vmem:[#allocation12 + $0x1f8] sm:$0xff]
    %v441 = vld [vmem:[#allocation12 + $0x200] sm:$0xff]
    %v442 = vld [vmem:[#allocation12 + $0x208] sm:$0xff]
    %v443 = vld [vmem:[#allocation12 + $0x210] sm:$0xff]
    %v444 = vld [vmem:[#allocation12 + $0x218] sm:$0xff]
    %v445 = vld [vmem:[#allocation12 + $0x220] sm:$0xff]
    %v446 = vld [vmem:[#allocation12 + $0x228] sm:$0xff]
    %v447 = vld [vmem:[#allocation12 + $0x230] sm:$0xff]
    %v448 = vld [vmem:[#allocation12 + $0x238] sm:$0xff]
    %v449 = vld [vmem:[#allocation12 + $0x240] sm:$0xff]
    %v450 = vld [vmem:[#allocation12 + $0x248] sm:$0xff]
    %v451 = vld [vmem:[#allocation12 + $0x250] sm:$0xff]
    %v452 = vld [vmem:[#allocation12 + $0x258] sm:$0xff]
    %v453 = vld [vmem:[#allocation12 + $0x260] sm:$0xff]
    %v454 = vld [vmem:[#allocation12 + $0x268] sm:$0xff]
    %v455 = vld [vmem:[#allocation12 + $0x270] sm:$0xff]
    %v456 = vld [vmem:[#allocation12 + $0x278] sm:$0xff]
    %v457 = vld [vmem:[#allocation12 + $0x280] sm:$0xff]
    %v458 = vld [vmem:[#allocation12 + $0x288] sm:$0xff]
    %v459 = vld [vmem:[#allocation12 + $0x290] sm:$0xff]
    %v460 = vld [vmem:[#allocation12 + $0x298] sm:$0xff]
    %v461 = vld [vmem:[#allocation12 + $0x2a0] sm:$0xff]
    %v462 = vld [vmem:[#allocation12 + $0x2a8] sm:$0xff]
    %v463 = vld [vmem:[#allocation12 + $0x2b0] sm:$0xff]
    %v464 = vld [vmem:[#allocation12 + $0x2b8] sm:$0xff]
    %v465 = vld [vmem:[#allocation12 + $0x2c0] sm:$0xff]
    %v466 = vld [vmem:[#allocation12 + $0x2c8] sm:$0xff]
    %v467 = vld [vmem:[#allocation12 + $0x2d0] sm:$0xff]
    %v468 = vld [vmem:[#allocation12 + $0x2d8] sm:$0xff]
    %v469 = vld [vmem:[#allocation12 + $0x2e0] sm:$0xff]
    %v470 = vld [vmem:[#allocation12 + $0x2e8] sm:$0xff]
    %v471 = vld [vmem:[#allocation12 + $0x2f0] sm:$0xff]
    %v472 = vld [vmem:[#allocation12 + $0x2f8] sm:$0xff]
    %v473 = vld [vmem:[#allocation12 + $0x300] sm:$0xff]
    %v474 = vld [vmem:[#allocation12 + $0x308] sm:$0xff]
    %v475 = vld [vmem:[#allocation12 + $0x310] sm:$0xff]
    %v476 = vld [vmem:[#allocation12 + $0x318] sm:$0xff]
    %v477 = vld [vmem:[#allocation12 + $0x320] sm:$0xff]
    %v478 = vld [vmem:[#allocation12 + $0x328] sm:$0xff]
    %v479 = vld [vmem:[#allocation12 + $0x330] sm:$0xff]
    %v480 = vld [vmem:[#allocation12 + $0x338] sm:$0xff]
    %v481 = vld [vmem:[#allocation12 + $0x340] sm:$0xff]
    %v482 = vld [vmem:[#allocation12 + $0x348] sm:$0xff]
    %v483 = vld [vmem:[#allocation12 + $0x350] sm:$0xff]
    %v484 = vld [vmem:[#allocation12 + $0x358] sm:$0xff]
    %v485 = vld [vmem:[#allocation12 + $0x360] sm:$0xff]
    %v486 = vld [vmem:[#allocation12 + $0x368] sm:$0xff]
    %v487 = vld [vmem:[#allocation12 + $0x370] sm:$0xff]
    %v488 = vld [vmem:[#allocation12 + $0x378] sm:$0xff]
    %v489 = vld [vmem:[#allocation12 + $0x380] sm:$0xff]
    %v490 = vld [vmem:[#allocation12 + $0x388] sm:$0xff]
    %v491 = vld [vmem:[#allocation12 + $0x390] sm:$0xff]
    %v492 = vld [vmem:[#allocation12 + $0x398] sm:$0xff]
    %v493 = vld [vmem:[#allocation12 + $0x3a0] sm:$0xff]
    %v494 = vld [vmem:[#allocation12 + $0x3a8] sm:$0xff]
    %v495 = vld [vmem:[#allocation12 + $0x3b0] sm:$0xff]
    %v496 = vld [vmem:[#allocation12 + $0x3b8] sm:$0xff]
    %v497 = vld [vmem:[#allocation12 + $0x3c0] sm:$0xff]
    %v498 = vld [vmem:[#allocation12 + $0x3c8] sm:$0xff]
    %v499 = vld [vmem:[#allocation12 + $0x3d0] sm:$0xff]
    %v500 = vld [vmem:[#allocation12 + $0x3d8] sm:$0xff]
    %v501 = vld [vmem:[#allocation12 + $0x3e0] sm:$0xff]
    %v502 = vld [vmem:[#allocation12 + $0x3e8] sm:$0xff]
    %v503 = vld [vmem:[#allocation12 + $0x3f0] sm:$0xff]
    %v504 = vld [vmem:[#allocation12 + $0x3f8] sm:$0xff]
    %v505 = vmul.f32 %v377, 0.8
    %v506 = vmul.f32 %v378, 0.8
    %v507 = vmul.f32 %v379, 0.8
    %v508 = vmul.f32 %v380, 0.8
    %v509 = vmul.f32 %v381, 0.8
    %v510 = vmul.f32 %v382, 0.8
    %v511 = vmul.f32 %v383, 0.8
    %v512 = vmul.f32 %v384, 0.8
    %v513 = vmul.f32 %v385, 0.8
    %v514 = vmul.f32 %v386, 0.8
    %v515 = vmul.f32 %v387, 0.8
    %v516 = vmul.f32 %v388, 0.8
    %v517 = vmul.f32 %v389, 0.8
    %v518 = vmul.f32 %v390, 0.8
    %v519 = vmul.f32 %v391, 0.8
    %v520 = vmul.f32 %v392, 0.8
    %v521 = vmul.f32 %v393, 0.8
    %v522 = vmul.f32 %v394, 0.8
    %v523 = vmul.f32 %v395, 0.8
    %v524 = vmul.f32 %v396, 0.8
    %v525 = vmul.f32 %v397, 0.8
    %v526 = vmul.f32 %v398, 0.8
    %v527 = vmul.f32 %v399, 0.8
    %v528 = vmul.f32 %v400, 0.8
    %v529 = vmul.f32 %v401, 0.8
    %v530 = vmul.f32 %v402, 0.8
    %v531 = vmul.f32 %v403, 0.8
    %v532 = vmul.f32 %v404, 0.8
    %v533 = vmul.f32 %v405, 0.8
    %v534 = vmul.f32 %v406, 0.8
    %v535 = vmul.f32 %v407, 0.8
    %v536 = vmul.f32 %v408, 0.8
    %v537 = vmul.f32 %v409, 0.8
    %v538 = vmul.f32 %v410, 0.8
    %v539 = vmul.f32 %v411, 0.8
    %v540 = vmul.f32 %v412, 0.8
    %v541 = vmul.f32 %v413, 0.8
    %v542 = vmul.f32 %v414, 0.8
    %v543 = vmul.f32 %v415, 0.8
    %v544 = vmul.f32 %v416, 0.8
    %v545 = vmul.f32 %v417, 0.8
    %v546 = vmul.f32 %v418, 0.8
    %v547 = vmul.f32 %v419, 0.8
    %v548 = vmul.f32 %v420, 0.8
    %v549 = vmul.f32 %v421, 0.8
    %v550 = vmul.f32 %v422, 0.8
    %v551 = vmul.f32 %v423, 0.8
    %v552 = vmul.f32 %v424, 0.8
    %v553 = vmul.f32 %v425, 0.8
    %v554 = vmul.f32 %v426, 0.8
    %v555 = vmul.f32 %v427, 0.8
    %v556 = vmul.f32 %v428, 0.8
    %v557 = vmul.f32 %v429, 0.8
    %v558 = vmul.f32 %v430, 0.8
    %v559 = vmul.f32 %v431, 0.8
    %v560 = vmul.f32 %v432, 0.8
    %v561 = vmul.f32 %v433, 0.8
    %v562 = vmul.f32 %v434, 0.8
    %v563 = vmul.f32 %v435, 0.8
    %v564 = vmul.f32 %v436, 0.8
    %v565 = vmul.f32 %v437, 0.8
    %v566 = vmul.f32 %v438, 0.8
    %v567 = vmul.f32 %v439, 0.8
    %v568 = vmul.f32 %v440, 0.8
    %v569 = vmul.f32 %v441, 0.8
    %v570 = vmul.f32 %v442, 0.8
    %v571 = vmul.f32 %v443, 0.8
    %v572 = vmul.f32 %v444, 0.8
    %v573 = vmul.f32 %v445, 0.8
    %v574 = vmul.f32 %v446, 0.8
    %v575 = vmul.f32 %v447, 0.8
    %v576 = vmul.f32 %v448, 0.8
    %v577 = vmul.f32 %v449, 0.8
    %v578 = vmul.f32 %v450, 0.8
    %v579 = vmul.f32 %v451, 0.8
    %v580 = vmul.f32 %v452, 0.8
    %v581 = vmul.f32 %v453, 0.8
    %v582 = vmul.f32 %v454, 0.8
    %v583 = vmul.f32 %v455, 0.8
    %v584 = vmul.f32 %v456, 0.8
    %v585 = vmul.f32 %v457, 0.8
    %v586 = vmul.f32 %v458, 0.8
    %v587 = vmul.f32 %v459, 0.8
    %v588 = vmul.f32 %v460, 0.8
    %v589 = vmul.f32 %v461, 0.8
    %v590 = vmul.f32 %v462, 0.8
    %v591 = vmul.f32 %v463, 0.8
    %v592 = vmul.f32 %v464, 0.8
    %v593 = vmul.f32 %v465, 0.8
    %v594 = vmul.f32 %v466, 0.8
    %v595 = vmul.f32 %v467, 0.8
    %v596 = vmul.f32 %v468, 0.8
    %v597 = vmul.f32 %v469, 0.8
    %v598 = vmul.f32 %v470, 0.8
    %v599 = vmul.f32 %v471, 0.8
    %v600 = vmul.f32 %v472, 0.8
    %v601 = vmul.f32 %v473, 0.8
    %v602 = vmul.f32 %v474, 0.8
    %v603 = vmul.f32 %v475, 0.8
    %v604 = vmul.f32 %v476, 0.8
    %v605 = vmul.f32 %v477, 0.8
    %v606 = vmul.f32 %v478, 0.8
    %v607 = vmul.f32 %v479, 0.8
    %v608 = vmul.f32 %v480, 0.8
    %v609 = vmul.f32 %v481, 0.8
    %v610 = vmul.f32 %v482, 0.8
    %v611 = vmul.f32 %v483, 0.8
    %v612 = vmul.f32 %v484, 0.8
    %v613 = vmul.f32 %v485, 0.8
    %v614 = vmul.f32 %v486, 0.8
    %v615 = vmul.f32 %v487, 0.8
    %v616 = vmul.f32 %v488, 0.8
    %v617 = vmul.f32 %v489, 0.8
    %v618 = vmul.f32 %v490, 0.8
    %v619 = vmul.f32 %v491, 0.8
    %v620 = vmul.f32 %v492, 0.8
    %v621 = vmul.f32 %v493, 0.8
    %v622 = vmul.f32 %v494, 0.8
    %v623 = vmul.f32 %v495, 0.8
    %v624 = vmul.f32 %v496, 0.8
    %v625 = vmul.f32 %v497, 0.8
    %v626 = vmul.f32 %v498, 0.8
    %v627 = vmul.f32 %v499, 0.8
    %v628 = vmul.f32 %v500, 0.8
    %v629 = vmul.f32 %v501, 0.8
    %v630 = vmul.f32 %v502, 0.8
    %v631 = vmul.f32 %v503, 0.8
    %v632 = vmul.f32 %v504, 0.8
    %v633 = vmul.f32 %v249, 0.2
    %v634 = vmul.f32 %v250, 0.2
    %v635 = vmul.f32 %v251, 0.2
    %v636 = vmul.f32 %v252, 0.2
    %v637 = vmul.f32 %v253, 0.2
    %v638 = vmul.f32 %v254, 0.2
    %v639 = vmul.f32 %v255, 0.2
    %v640 = vmul.f32 %v256, 0.2
    %v641 = vmul.f32 %v257, 0.2
    %v642 = vmul.f32 %v258, 0.2
    %v643 = vmul.f32 %v259, 0.2
    %v644 = vmul.f32 %v260, 0.2
    %v645 = vmul.f32 %v261, 0.2
    %v646 = vmul.f32 %v262, 0.2
    %v647 = vmul.f32 %v263, 0.2
    %v648 = vmul.f32 %v264, 0.2
    %v649 = vmul.f32 %v265, 0.2
    %v650 = vmul.f32 %v266, 0.2
    %v651 = vmul.f32 %v267, 0.2
    %v652 = vmul.f32 %v268, 0.2
    %v653 = vmul.f32 %v269, 0.2
    %v654 = vmul.f32 %v270, 0.2
    %v655 = vmul.f32 %v271, 0.2
    %v656 = vmul.f32 %v272, 0.2
    %v657 = vmul.f32 %v273, 0.2
    %v658 = vmul.f32 %v274, 0.2
    %v659 = vmul.f32 %v275, 0.2
    %v660 = vmul.f32 %v276, 0.2
    %v661 = vmul.f32 %v277, 0.2
    %v662 = vmul.f32 %v278, 0.2
    %v663 = vmul.f32 %v279, 0.2
    %v664 = vmul.f32 %v280, 0.2
    %v665 = vmul.f32 %v281, 0.2
    %v666 = vmul.f32 %v282, 0.2
    %v667 = vmul.f32 %v283, 0.2
    %v668 = vmul.f32 %v284, 0.2
    %v669 = vmul.f32 %v285, 0.2
    %v670 = vmul.f32 %v286, 0.2
    %v671 = vmul.f32 %v287, 0.2
    %v672 = vmul.f32 %v288, 0.2
    %v673 = vmul.f32 %v289, 0.2
    %v674 = vmul.f32 %v290, 0.2
    %v675 = vmul.f32 %v291, 0.2
    %v676 = vmul.f32 %v292, 0.2
    %v677 = vmul.f32 %v293, 0.2
    %v678 = vmul.f32 %v294, 0.2
    %v679 = vmul.f32 %v295, 0.2
    %v680 = vmul.f32 %v296, 0.2
    %v681 = vmul.f32 %v297, 0.2
    %v682 = vmul.f32 %v298, 0.2
    %v683 = vmul.f32 %v299, 0.2
    %v684 = vmul.f32 %v300, 0.2
    %v685 = vmul.f32 %v301, 0.2
    %v686 = vmul.f32 %v302, 0.2
    %v687 = vmul.f32 %v303, 0.2
    %v688 = vmul.f32 %v304, 0.2
    %v689 = vmul.f32 %v305, 0.2
    %v690 = vmul.f32 %v306, 0.2
    %v691 = vmul.f32 %v307, 0.2
    %v692 = vmul.f32 %v308, 0.2
    %v693 = vmul.f32 %v309, 0.2
    %v694 = vmul.f32 %v310, 0.2
    %v695 = vmul.f32 %v311, 0.2
    %v696 = vmul.f32 %v312, 0.2
    %v697 = vmul.f32 %v313, 0.2
    %v698 = vmul.f32 %v314, 0.2
    %v699 = vmul.f32 %v315, 0.2
    %v700 = vmul.f32 %v316, 0.2
    %v701 = vmul.f32 %v317, 0.2
    %v702 = vmul.f32 %v318, 0.2
    %v703 = vmul.f32 %v319, 0.2
    %v704 = vmul.f32 %v320, 0.2
    %v705 = vmul.f32 %v321, 0.2
    %v706 = vmul.f32 %v322, 0.2
    %v707 = vmul.f32 %v323, 0.2
    %v708 = vmul.f32 %v324, 0.2
    %v709 = vmul.f32 %v325, 0.2
    %v710 = vmul.f32 %v326, 0.2
    %v711 = vmul.f32 %v327, 0.2
    %v712 = vmul.f32 %v328, 0.2
    %v713 = vmul.f32 %v329, 0.2
    %v714 = vmul.f32 %v330, 0.2
    %v715 = vmul.f32 %v331, 0.2
    %v716 = vmul.f32 %v332, 0.2
    %v717 = vmul.f32 %v333, 0.2
    %v718 = vmul.f32 %v334, 0.2
    %v719 = vmul.f32 %v335, 0.2
    %v720 = vmul.f32 %v336, 0.2
    %v721 = vmul.f32 %v337, 0.2
    %v722 = vmul.f32 %v338, 0.2
    %v723 = vmul.f32 %v339, 0.2
    %v724 = vmul.f32 %v340, 0.2
    %v725 = vmul.f32 %v341, 0.2
    %v726 = vmul.f32 %v342, 0.2
    %v727 = vmul.f32 %v343, 0.2
    %v728 = vmul.f32 %v344, 0.2
    %v729 = vmul.f32 %v345, 0.2
    %v730 = vmul.f32 %v346, 0.2
    %v731 = vmul.f32 %v347, 0.2
    %v732 = vmul.f32 %v348, 0.2
    %v733 = vmul.f32 %v349, 0.2
    %v734 = vmul.f32 %v350, 0.2
    %v735 = vmul.f32 %v351, 0.2
    %v736 = vmul.f32 %v352, 0.2
    %v737 = vmul.f32 %v353, 0.2
    %v738 = vmul.f32 %v354, 0.2
    %v739 = vmul.f32 %v355, 0.2
    %v740 = vmul.f32 %v356, 0.2
    %v741 = vmul.f32 %v357, 0.2
    %v742 = vmul.f32 %v358, 0.2
    %v743 = vmul.f32 %v359, 0.2
    %v744 = vmul.f32 %v360, 0.2
    %v745 = vmul.f32 %v361, 0.2
    %v746 = vmul.f32 %v362, 0.2
    %v747 = vmul.f32 %v363, 0.2
    %v748 = vmul.f32 %v364, 0.2
    %v749 = vmul.f32 %v365, 0.2
    %v750 = vmul.f32 %v366, 0.2
    %v751 = vmul.f32 %v367, 0.2
    %v752 = vmul.f32 %v368, 0.2
    %v753 = vmul.f32 %v369, 0.2
    %v754 = vmul.f32 %v370, 0.2
    %v755 = vmul.f32 %v371, 0.2
    %v756 = vmul.f32 %v372, 0.2
    %v757 = vmul.f32 %v373, 0.2
    %v758 = vmul.f32 %v374, 0.2
    %v759 = vmul.f32 %v375, 0.2
    %v760 = vmul.f32 %v376, 0.2
    %v761 = vadd.f32 %v505, %v633
    %v762 = vadd.f32 %v506, %v634
    %v763 = vadd.f32 %v507, %v635
    %v764 = vadd.f32 %v508, %v636
    %v765 = vadd.f32 %v509, %v637
    %v766 = vadd.f32 %v510, %v638
    %v767 = vadd.f32 %v511, %v639
    %v768 = vadd.f32 %v512, %v640
    %v769 = vadd.f32 %v513, %v641
    %v770 = vadd.f32 %v514, %v642
    %v771 = vadd.f32 %v515, %v643
    %v772 = vadd.f32 %v516, %v644
    %v773 = vadd.f32 %v517, %v645
    %v774 = vadd.f32 %v518, %v646
    %v775 = vadd.f32 %v519, %v647
    %v776 = vadd.f32 %v520, %v648
    %v777 = vadd.f32 %v521, %v649
    %v778 = vadd.f32 %v522, %v650
    %v779 = vadd.f32 %v523, %v651
    %v780 = vadd.f32 %v524, %v652
    %v781 = vadd.f32 %v525, %v653
    %v782 = vadd.f32 %v526, %v654
    %v783 = vadd.f32 %v527, %v655
    %v784 = vadd.f32 %v528, %v656
    %v785 = vadd.f32 %v529, %v657
    %v786 = vadd.f32 %v530, %v658
    %v787 = vadd.f32 %v531, %v659
    %v788 = vadd.f32 %v532, %v660
    %v789 = vadd.f32 %v533, %v661
    %v790 = vadd.f32 %v534, %v662
    %v791 = vadd.f32 %v535, %v663
    %v792 = vadd.f32 %v536, %v664
    %v793 = vadd.f32 %v537, %v665
    %v794 = vadd.f32 %v538, %v666
    %v795 = vadd.f32 %v539, %v667
    %v796 = vadd.f32 %v540, %v668
    %v797 = vadd.f32 %v541, %v669
    %v798 = vadd.f32 %v542, %v670
    %v799 = vadd.f32 %v543, %v671
    %v800 = vadd.f32 %v544, %v672
    %v801 = vadd.f32 %v545, %v673
    %v802 = vadd.f32 %v546, %v674
    %v803 = vadd.f32 %v547, %v675
    %v804 = vadd.f32 %v548, %v676
    %v805 = vadd.f32 %v549, %v677
    %v806 = vadd.f32 %v550, %v678
    %v807 = vadd.f32 %v551, %v679
    %v808 = vadd.f32 %v552, %v680
    %v809 = vadd.f32 %v553, %v681
    %v810 = vadd.f32 %v554, %v682
    %v811 = vadd.f32 %v555, %v683
    %v812 = vadd.f32 %v556, %v684
    %v813 = vadd.f32 %v557, %v685
    %v814 = vadd.f32 %v558, %v686
    %v815 = vadd.f32 %v559, %v687
    %v816 = vadd.f32 %v560, %v688
    %v817 = vadd.f32 %v561, %v689
    %v818 = vadd.f32 %v562, %v690
    %v819 = vadd.f32 %v563, %v691
    %v820 = vadd.f32 %v564, %v692
    %v821 = vadd.f32 %v565, %v693
    %v822 = vadd.f32 %v566, %v694
    %v823 = vadd.f32 %v567, %v695
    %v824 = vadd.f32 %v568, %v696
    %v825 = vadd.f32 %v569, %v697
    %v826 = vadd.f32 %v570, %v698
    %v827 = vadd.f32 %v571, %v699
    %v828 = vadd.f32 %v572, %v700
    %v829 = vadd.f32 %v573, %v701
    %v830 = vadd.f32 %v574, %v702
    %v831 = vadd.f32 %v575, %v703
    %v832 = vadd.f32 %v576, %v704
    %v833 = vadd.f32 %v577, %v705
    %v834 = vadd.f32 %v578, %v706
    %v835 = vadd.f32 %v579, %v707
    %v836 = vadd.f32 %v580, %v708
    %v837 = vadd.f32 %v581, %v709
    %v838 = vadd.f32 %v582, %v710
    %v839 = vadd.f32 %v583, %v711
    %v840 = vadd.f32 %v584, %v712
    %v841 = vadd.f32 %v585, %v713
    %v842 = vadd.f32 %v586, %v714
    %v843 = vadd.f32 %v587, %v715
    %v844 = vadd.f32 %v588, %v716
    %v845 = vadd.f32 %v589, %v717
    %v846 = vadd.f32 %v590, %v718
    %v847 = vadd.f32 %v591, %v719
    %v848 = vadd.f32 %v592, %v720
    %v849 = vadd.f32 %v593, %v721
    %v850 = vadd.f32 %v594, %v722
    %v851 = vadd.f32 %v595, %v723
    %v852 = vadd.f32 %v596, %v724
    %v853 = vadd.f32 %v597, %v725
    %v854 = vadd.f32 %v598, %v726
    %v855 = vadd.f32 %v599, %v727
    %v856 = vadd.f32 %v600, %v728
    %v857 = vadd.f32 %v601, %v729
    %v858 = vadd.f32 %v602, %v730
    %v859 = vadd.f32 %v603, %v731
    %v860 = vadd.f32 %v604, %v732
    %v861 = vadd.f32 %v605, %v733
    %v862 = vadd.f32 %v606, %v734
    %v863 = vadd.f32 %v607, %v735
    %v864 = vadd.f32 %v608, %v736
    %v865 = vadd.f32 %v609, %v737
    %v866 = vadd.f32 %v610, %v738
    %v867 = vadd.f32 %v611, %v739
    %v868 = vadd.f32 %v612, %v740
    %v869 = vadd.f32 %v613, %v741
    %v870 = vadd.f32 %v614, %v742
    %v871 = vadd.f32 %v615, %v743
    %v872 = vadd.f32 %v616, %v744
    %v873 = vadd.f32 %v617, %v745
    %v874 = vadd.f32 %v618, %v746
    %v875 = vadd.f32 %v619, %v747
    %v876 = vadd.f32 %v620, %v748
    %v877 = vadd.f32 %v621, %v749
    %v878 = vadd.f32 %v622, %v750
    %v879 = vadd.f32 %v623, %v751
    %v880 = vadd.f32 %v624, %v752
    %v881 = vadd.f32 %v625, %v753
    %v882 = vadd.f32 %v626, %v754
    %v883 = vadd.f32 %v627, %v755
    %v884 = vadd.f32 %v628, %v756
    %v885 = vadd.f32 %v629, %v757
    %v886 = vadd.f32 %v630, %v758
    %v887 = vadd.f32 %v631, %v759
    %v888 = vadd.f32 %v632, %v760
    %v889 = vld [vmem:[#allocation11] sm:$0xff]
    %v890 = vld [vmem:[#allocation11 + $0x8] sm:$0xff]
    %v891 = vld [vmem:[#allocation11 + $0x10] sm:$0xff]
    %v892 = vld [vmem:[#allocation11 + $0x18] sm:$0xff]
    %v893 = vld [vmem:[#allocation11 + $0x20] sm:$0xff]
    %v894 = vld [vmem:[#allocation11 + $0x28] sm:$0xff]
    %v895 = vld [vmem:[#allocation11 + $0x30] sm:$0xff]
    %v896 = vld [vmem:[#allocation11 + $0x38] sm:$0xff]
    %v897 = vld [vmem:[#allocation11 + $0x40] sm:$0xff]
    %v898 = vld [vmem:[#allocation11 + $0x48] sm:$0xff]
    %v899 = vld [vmem:[#allocation11 + $0x50] sm:$0xff]
    %v900 = vld [vmem:[#allocation11 + $0x58] sm:$0xff]
    %v901 = vld [vmem:[#allocation11 + $0x60] sm:$0xff]
    %v902 = vld [vmem:[#allocation11 + $0x68] sm:$0xff]
    %v903 = vld [vmem:[#allocation11 + $0x70] sm:$0xff]
    %v904 = vld [vmem:[#allocation11 + $0x78] sm:$0xff]
    %v905 = vld [vmem:[#allocation11 + $0x80] sm:$0xff]
    %v906 = vld [vmem:[#allocation11 + $0x88] sm:$0xff]
    %v907 = vld [vmem:[#allocation11 + $0x90] sm:$0xff]
    %v908 = vld [vmem:[#allocation11 + $0x98] sm:$0xff]
    %v909 = vld [vmem:[#allocation11 + $0xa0] sm:$0xff]
    %v910 = vld [vmem:[#allocation11 + $0xa8] sm:$0xff]
    %v911 = vld [vmem:[#allocation11 + $0xb0] sm:$0xff]
    %v912 = vld [vmem:[#allocation11 + $0xb8] sm:$0xff]
    %v913 = vld [vmem:[#allocation11 + $0xc0] sm:$0xff]
    %v914 = vld [vmem:[#allocation11 + $0xc8] sm:$0xff]
    %v915 = vld [vmem:[#allocation11 + $0xd0] sm:$0xff]
    %v916 = vld [vmem:[#allocation11 + $0xd8] sm:$0xff]
    %v917 = vld [vmem:[#allocation11 + $0xe0] sm:$0xff]
    %v918 = vld [vmem:[#allocation11 + $0xe8] sm:$0xff]
    %v919 = vld [vmem:[#allocation11 + $0xf0] sm:$0xff]
    %v920 = vld [vmem:[#allocation11 + $0xf8] sm:$0xff]
    %v921 = vld [vmem:[#allocation11 + $0x100] sm:$0xff]
    %v922 = vld [vmem:[#allocation11 + $0x108] sm:$0xff]
    %v923 = vld [vmem:[#allocation11 + $0x110] sm:$0xff]
    %v924 = vld [vmem:[#allocation11 + $0x118] sm:$0xff]
    %v925 = vld [vmem:[#allocation11 + $0x120] sm:$0xff]
    %v926 = vld [vmem:[#allocation11 + $0x128] sm:$0xff]
    %v927 = vld [vmem:[#allocation11 + $0x130] sm:$0xff]
    %v928 = vld [vmem:[#allocation11 + $0x138] sm:$0xff]
    %v929 = vld [vmem:[#allocation11 + $0x140] sm:$0xff]
    %v930 = vld [vmem:[#allocation11 + $0x148] sm:$0xff]
    %v931 = vld [vmem:[#allocation11 + $0x150] sm:$0xff]
    %v932 = vld [vmem:[#allocation11 + $0x158] sm:$0xff]
    %v933 = vld [vmem:[#allocation11 + $0x160] sm:$0xff]
    %v934 = vld [vmem:[#allocation11 + $0x168] sm:$0xff]
    %v935 = vld [vmem:[#allocation11 + $0x170] sm:$0xff]
    %v936 = vld [vmem:[#allocation11 + $0x178] sm:$0xff]
    %v937 = vld [vmem:[#allocation11 + $0x180] sm:$0xff]
    %v938 = vld [vmem:[#allocation11 + $0x188] sm:$0xff]
    %v939 = vld [vmem:[#allocation11 + $0x190] sm:$0xff]
    %v940 = vld [vmem:[#allocation11 + $0x198] sm:$0xff]
    %v941 = vld [vmem:[#allocation11 + $0x1a0] sm:$0xff]
    %v942 = vld [vmem:[#allocation11 + $0x1a8] sm:$0xff]
    %v943 = vld [vmem:[#allocation11 + $0x1b0] sm:$0xff]
    %v944 = vld [vmem:[#allocation11 + $0x1b8] sm:$0xff]
    %v945 = vld [vmem:[#allocation11 + $0x1c0] sm:$0xff]
    %v946 = vld [vmem:[#allocation11 + $0x1c8] sm:$0xff]
    %v947 = vld [vmem:[#allocation11 + $0x1d0] sm:$0xff]
    %v948 = vld [vmem:[#allocation11 + $0x1d8] sm:$0xff]
    %v949 = vld [vmem:[#allocation11 + $0x1e0] sm:$0xff]
    %v950 = vld [vmem:[#allocation11 + $0x1e8] sm:$0xff]
    %v951 = vld [vmem:[#allocation11 + $0x1f0] sm:$0xff]
    %v952 = vld [vmem:[#allocation11 + $0x1f8] sm:$0xff]
    %v953 = vld [vmem:[#allocation11 + $0x200] sm:$0xff]
    %v954 = vld [vmem:[#allocation11 + $0x208] sm:$0xff]
    %v955 = vld [vmem:[#allocation11 + $0x210] sm:$0xff]
    %v956 = vld [vmem:[#allocation11 + $0x218] sm:$0xff]
    %v957 = vld [vmem:[#allocation11 + $0x220] sm:$0xff]
    %v958 = vld [vmem:[#allocation11 + $0x228] sm:$0xff]
    %v959 = vld [vmem:[#allocation11 + $0x230] sm:$0xff]
    %v960 = vld [vmem:[#allocation11 + $0x238] sm:$0xff]
    %v961 = vld [vmem:[#allocation11 + $0x240] sm:$0xff]
    %v962 = vld [vmem:[#allocation11 + $0x248] sm:$0xff]
    %v963 = vld [vmem:[#allocation11 + $0x250] sm:$0xff]
    %v964 = vld [vmem:[#allocation11 + $0x258] sm:$0xff]
    %v965 = vld [vmem:[#allocation11 + $0x260] sm:$0xff]
    %v966 = vld [vmem:[#allocation11 + $0x268] sm:$0xff]
    %v967 = vld [vmem:[#allocation11 + $0x270] sm:$0xff]
    %v968 = vld [vmem:[#allocation11 + $0x278] sm:$0xff]
    %v969 = vld [vmem:[#allocation11 + $0x280] sm:$0xff]
    %v970 = vld [vmem:[#allocation11 + $0x288] sm:$0xff]
    %v971 = vld [vmem:[#allocation11 + $0x290] sm:$0xff]
    %v972 = vld [vmem:[#allocation11 + $0x298] sm:$0xff]
    %v973 = vld [vmem:[#allocation11 + $0x2a0] sm:$0xff]
    %v974 = vld [vmem:[#allocation11 + $0x2a8] sm:$0xff]
    %v975 = vld [vmem:[#allocation11 + $0x2b0] sm:$0xff]
    %v976 = vld [vmem:[#allocation11 + $0x2b8] sm:$0xff]
    %v977 = vld [vmem:[#allocation11 + $0x2c0] sm:$0xff]
    %v978 = vld [vmem:[#allocation11 + $0x2c8] sm:$0xff]
    %v979 = vld [vmem:[#allocation11 + $0x2d0] sm:$0xff]
    %v980 = vld [vmem:[#allocation11 + $0x2d8] sm:$0xff]
    %v981 = vld [vmem:[#allocation11 + $0x2e0] sm:$0xff]
    %v982 = vld [vmem:[#allocation11 + $0x2e8] sm:$0xff]
    %v983 = vld [vmem:[#allocation11 + $0x2f0] sm:$0xff]
    %v984 = vld [vmem:[#allocation11 + $0x2f8] sm:$0xff]
    %v985 = vld [vmem:[#allocation11 + $0x300] sm:$0xff]
    %v986 = vld [vmem:[#allocation11 + $0x308] sm:$0xff]
    %v987 = vld [vmem:[#allocation11 + $0x310] sm:$0xff]
    %v988 = vld [vmem:[#allocation11 + $0x318] sm:$0xff]
    %v989 = vld [vmem:[#allocation11 + $0x320] sm:$0xff]
    %v990 = vld [vmem:[#allocation11 + $0x328] sm:$0xff]
    %v991 = vld [vmem:[#allocation11 + $0x330] sm:$0xff]
    %v992 = vld [vmem:[#allocation11 + $0x338] sm:$0xff]
    %v993 = vld [vmem:[#allocation11 + $0x340] sm:$0xff]
    %v994 = vld [vmem:[#allocation11 + $0x348] sm:$0xff]
    %v995 = vld [vmem:[#allocation11 + $0x350] sm:$0xff]
    %v996 = vld [vmem:[#allocation11 + $0x358] sm:$0xff]
    %v997 = vld [vmem:[#allocation11 + $0x360] sm:$0xff]
    %v998 = vld [vmem:[#allocation11 + $0x368] sm:$0xff]
    %v999 = vld [vmem:[#allocation11 + $0x370] sm:$0xff]
    %v1000 = vld [vmem:[#allocation11 + $0x378] sm:$0xff]
    %v1001 = vld [vmem:[#allocation11 + $0x380] sm:$0xff]
    %v1002 = vld [vmem:[#allocation11 + $0x388] sm:$0xff]
    %v1003 = vld [vmem:[#allocation11 + $0x390] sm:$0xff]
    %v1004 = vld [vmem:[#allocation11 + $0x398] sm:$0xff]
    %v1005 = vld [vmem:[#allocation11 + $0x3a0] sm:$0xff]
    %v1006 = vld [vmem:[#allocation11 + $0x3a8] sm:$0xff]
    %v1007 = vld [vmem:[#allocation11 + $0x3b0] sm:$0xff]
    %v1008 = vld [vmem:[#allocation11 + $0x3b8] sm:$0xff]
    %v1009 = vld [vmem:[#allocation11 + $0x3c0] sm:$0xff]
    %v1010 = vld [vmem:[#allocation11 + $0x3c8] sm:$0xff]
    %v1011 = vld [vmem:[#allocation11 + $0x3d0] sm:$0xff]
    %v1012 = vld [vmem:[#allocation11 + $0x3d8] sm:$0xff]
    %v1013 = vld [vmem:[#allocation11 + $0x3e0] sm:$0xff]
    %v1014 = vld [vmem:[#allocation11 + $0x3e8] sm:$0xff]
    %v1015 = vld [vmem:[#allocation11 + $0x3f0] sm:$0xff]
    %v1016 = vld [vmem:[#allocation11 + $0x3f8] sm:$0xff]
    %v1017 = vmul.f32 %v889, 0.8
    %v1018 = vmul.f32 %v890, 0.8
    %v1019 = vmul.f32 %v891, 0.8
    %v1020 = vmul.f32 %v892, 0.8
    %v1021 = vmul.f32 %v893, 0.8
    %v1022 = vmul.f32 %v894, 0.8
    %v1023 = vmul.f32 %v895, 0.8
    %v1024 = vmul.f32 %v896, 0.8
    %v1025 = vmul.f32 %v897, 0.8
    %v1026 = vmul.f32 %v898, 0.8
    %v1027 = vmul.f32 %v899, 0.8
    %v1028 = vmul.f32 %v900, 0.8
    %v1029 = vmul.f32 %v901, 0.8
    %v1030 = vmul.f32 %v902, 0.8
    %v1031 = vmul.f32 %v903, 0.8
    %v1032 = vmul.f32 %v904, 0.8
    %v1033 = vmul.f32 %v905, 0.8
    %v1034 = vmul.f32 %v906, 0.8
    %v1035 = vmul.f32 %v907, 0.8
    %v1036 = vmul.f32 %v908, 0.8
    %v1037 = vmul.f32 %v909, 0.8
    %v1038 = vmul.f32 %v910, 0.8
    %v1039 = vmul.f32 %v911, 0.8
    %v1040 = vmul.f32 %v912, 0.8
    %v1041 = vmul.f32 %v913, 0.8
    %v1042 = vmul.f32 %v914, 0.8
    %v1043 = vmul.f32 %v915, 0.8
    %v1044 = vmul.f32 %v916, 0.8
    %v1045 = vmul.f32 %v917, 0.8
    %v1046 = vmul.f32 %v918, 0.8
    %v1047 = vmul.f32 %v919, 0.8
    %v1048 = vmul.f32 %v920, 0.8
    %v1049 = vmul.f32 %v921, 0.8
    %v1050 = vmul.f32 %v922, 0.8
    %v1051 = vmul.f32 %v923, 0.8
    %v1052 = vmul.f32 %v924, 0.8
    %v1053 = vmul.f32 %v925, 0.8
    %v1054 = vmul.f32 %v926, 0.8
    %v1055 = vmul.f32 %v927, 0.8
    %v1056 = vmul.f32 %v928, 0.8
    %v1057 = vmul.f32 %v929, 0.8
    %v1058 = vmul.f32 %v930, 0.8
    %v1059 = vmul.f32 %v931, 0.8
    %v1060 = vmul.f32 %v932, 0.8
    %v1061 = vmul.f32 %v933, 0.8
    %v1062 = vmul.f32 %v934, 0.8
    %v1063 = vmul.f32 %v935, 0.8
    %v1064 = vmul.f32 %v936, 0.8
    %v1065 = vmul.f32 %v937, 0.8
    %v1066 = vmul.f32 %v938, 0.8
    %v1067 = vmul.f32 %v939, 0.8
    %v1068 = vmul.f32 %v940, 0.8
    %v1069 = vmul.f32 %v941, 0.8
    %v1070 = vmul.f32 %v942, 0.8
    %v1071 = vmul.f32 %v943, 0.8
    %v1072 = vmul.f32 %v944, 0.8
    %v1073 = vmul.f32 %v945, 0.8
    %v1074 = vmul.f32 %v946, 0.8
    %v1075 = vmul.f32 %v947, 0.8
    %v1076 = vmul.f32 %v948, 0.8
    %v1077 = vmul.f32 %v949, 0.8
    %v1078 = vmul.f32 %v950, 0.8
    %v1079 = vmul.f32 %v951, 0.8
    %v1080 = vmul.f32 %v952, 0.8
    %v1081 = vmul.f32 %v953, 0.8
    %v1082 = vmul.f32 %v954, 0.8
    %v1083 = vmul.f32 %v955, 0.8
    %v1084 = vmul.f32 %v956, 0.8
    %v1085 = vmul.f32 %v957, 0.8
    %v1086 = vmul.f32 %v958, 0.8
    %v1087 = vmul.f32 %v959, 0.8
    %v1088 = vmul.f32 %v960, 0.8
    %v1089 = vmul.f32 %v961, 0.8
    %v1090 = vmul.f32 %v962, 0.8
    %v1091 = vmul.f32 %v963, 0.8
    %v1092 = vmul.f32 %v964, 0.8
    %v1093 = vmul.f32 %v965, 0.8
    %v1094 = vmul.f32 %v966, 0.8
    %v1095 = vmul.f32 %v967, 0.8
    %v1096 = vmul.f32 %v968, 0.8
    %v1097 = vmul.f32 %v969, 0.8
    %v1098 = vmul.f32 %v970, 0.8
    %v1099 = vmul.f32 %v971, 0.8
    %v1100 = vmul.f32 %v972, 0.8
    %v1101 = vmul.f32 %v973, 0.8
    %v1102 = vmul.f32 %v974, 0.8
    %v1103 = vmul.f32 %v975, 0.8
    %v1104 = vmul.f32 %v976, 0.8
    %v1105 = vmul.f32 %v977, 0.8
    %v1106 = vmul.f32 %v978, 0.8
    %v1107 = vmul.f32 %v979, 0.8
    %v1108 = vmul.f32 %v980, 0.8
    %v1109 = vmul.f32 %v981, 0.8
    %v1110 = vmul.f32 %v982, 0.8
    %v1111 = vmul.f32 %v983, 0.8
    %v1112 = vmul.f32 %v984, 0.8
    %v1113 = vmul.f32 %v985, 0.8
    %v1114 = vmul.f32 %v986, 0.8
    %v1115 = vmul.f32 %v987, 0.8
    %v1116 = vmul.f32 %v988, 0.8
    %v1117 = vmul.f32 %v989, 0.8
    %v1118 = vmul.f32 %v990, 0.8
    %v1119 = vmul.f32 %v991, 0.8
    %v1120 = vmul.f32 %v992, 0.8
    %v1121 = vmul.f32 %v993, 0.8
    %v1122 = vmul.f32 %v994, 0.8
    %v1123 = vmul.f32 %v995, 0.8
    %v1124 = vmul.f32 %v996, 0.8
    %v1125 = vmul.f32 %v997, 0.8
    %v1126 = vmul.f32 %v998, 0.8
    %v1127 = vmul.f32 %v999, 0.8
    %v1128 = vmul.f32 %v1000, 0.8
    %v1129 = vmul.f32 %v1001, 0.8
    %v1130 = vmul.f32 %v1002, 0.8
    %v1131 = vmul.f32 %v1003, 0.8
    %v1132 = vmul.f32 %v1004, 0.8
    %v1133 = vmul.f32 %v1005, 0.8
    %v1134 = vmul.f32 %v1006, 0.8
    %v1135 = vmul.f32 %v1007, 0.8
    %v1136 = vmul.f32 %v1008, 0.8
    %v1137 = vmul.f32 %v1009, 0.8
    %v1138 = vmul.f32 %v1010, 0.8
    %v1139 = vmul.f32 %v1011, 0.8
    %v1140 = vmul.f32 %v1012, 0.8
    %v1141 = vmul.f32 %v1013, 0.8
    %v1142 = vmul.f32 %v1014, 0.8
    %v1143 = vmul.f32 %v1015, 0.8
    %v1144 = vmul.f32 %v1016, 0.8
    %v1145 = vmul.f32 %v121, 0.2
    %v1146 = vmul.f32 %v122, 0.2
    %v1147 = vmul.f32 %v123, 0.2
    %v1148 = vmul.f32 %v124, 0.2
    %v1149 = vmul.f32 %v125, 0.2
    %v1150 = vmul.f32 %v126, 0.2
    %v1151 = vmul.f32 %v127, 0.2
    %v1152 = vmul.f32 %v128, 0.2
    %v1153 = vmul.f32 %v129, 0.2
    %v1154 = vmul.f32 %v130, 0.2
    %v1155 = vmul.f32 %v131, 0.2
    %v1156 = vmul.f32 %v132, 0.2
    %v1157 = vmul.f32 %v133, 0.2
    %v1158 = vmul.f32 %v134, 0.2
    %v1159 = vmul.f32 %v135, 0.2
    %v1160 = vmul.f32 %v136, 0.2
    %v1161 = vmul.f32 %v137, 0.2
    %v1162 = vmul.f32 %v138, 0.2
    %v1163 = vmul.f32 %v139, 0.2
    %v1164 = vmul.f32 %v140, 0.2
    %v1165 = vmul.f32 %v141, 0.2
    %v1166 = vmul.f32 %v142, 0.2
    %v1167 = vmul.f32 %v143, 0.2
    %v1168 = vmul.f32 %v144, 0.2
    %v1169 = vmul.f32 %v145, 0.2
    %v1170 = vmul.f32 %v146, 0.2
    %v1171 = vmul.f32 %v147, 0.2
    %v1172 = vmul.f32 %v148, 0.2
    %v1173 = vmul.f32 %v149, 0.2
    %v1174 = vmul.f32 %v150, 0.2
    %v1175 = vmul.f32 %v151, 0.2
    %v1176 = vmul.f32 %v152, 0.2
    %v1177 = vmul.f32 %v153, 0.2
    %v1178 = vmul.f32 %v154, 0.2
    %v1179 = vmul.f32 %v155, 0.2
    %v1180 = vmul.f32 %v156, 0.2
    %v1181 = vmul.f32 %v157, 0.2
    %v1182 = vmul.f32 %v158, 0.2
    %v1183 = vmul.f32 %v159, 0.2
    %v1184 = vmul.f32 %v160, 0.2
    %v1185 = vmul.f32 %v161, 0.2
    %v1186 = vmul.f32 %v162, 0.2
    %v1187 = vmul.f32 %v163, 0.2
    %v1188 = vmul.f32 %v164, 0.2
    %v1189 = vmul.f32 %v165, 0.2
    %v1190 = vmul.f32 %v166, 0.2
    %v1191 = vmul.f32 %v167, 0.2
    %v1192 = vmul.f32 %v168, 0.2
    %v1193 = vmul.f32 %v169, 0.2
    %v1194 = vmul.f32 %v170, 0.2
    %v1195 = vmul.f32 %v171, 0.2
    %v1196 = vmul.f32 %v172, 0.2
    %v1197 = vmul.f32 %v173, 0.2
    %v1198 = vmul.f32 %v174, 0.2
    %v1199 = vmul.f32 %v175, 0.2
    %v1200 = vmul.f32 %v176, 0.2
    %v1201 = vmul.f32 %v177, 0.2
    %v1202 = vmul.f32 %v178, 0.2
    %v1203 = vmul.f32 %v179, 0.2
    %v1204 = vmul.f32 %v180, 0.2
    %v1205 = vmul.f32 %v181, 0.2
    %v1206 = vmul.f32 %v182, 0.2
    %v1207 = vmul.f32 %v183, 0.2
    %v1208 = vmul.f32 %v184, 0.2
    %v1209 = vmul.f32 %v185, 0.2
    %v1210 = vmul.f32 %v186, 0.2
    %v1211 = vmul.f32 %v187, 0.2
    %v1212 = vmul.f32 %v188, 0.2
    %v1213 = vmul.f32 %v189, 0.2
    %v1214 = vmul.f32 %v190, 0.2
    %v1215 = vmul.f32 %v191, 0.2
    %v1216 = vmul.f32 %v192, 0.2
    %v1217 = vmul.f32 %v193, 0.2
    %v1218 = vmul.f32 %v194, 0.2
    %v1219 = vmul.f32 %v195, 0.2
    %v1220 = vmul.f32 %v196, 0.2
    %v1221 = vmul.f32 %v197, 0.2
    %v1222 = vmul.f32 %v198, 0.2
    %v1223 = vmul.f32 %v199, 0.2
    %v1224 = vmul.f32 %v200, 0.2
    %v1225 = vmul.f32 %v201, 0.2
    %v1226 = vmul.f32 %v202, 0.2
    %v1227 = vmul.f32 %v203, 0.2
    %v1228 = vmul.f32 %v204, 0.2
    %v1229 = vmul.f32 %v205, 0.2
    %v1230 = vmul.f32 %v206, 0.2
    %v1231 = vmul.f32 %v207, 0.2
    %v1232 = vmul.f32 %v208, 0.2
    %v1233 = vmul.f32 %v209, 0.2
    %v1234 = vmul.f32 %v210, 0.2
    %v1235 = vmul.f32 %v211, 0.2
    %v1236 = vmul.f32 %v212, 0.2
    %v1237 = vmul.f32 %v213, 0.2
    %v1238 = vmul.f32 %v214, 0.2
    %v1239 = vmul.f32 %v215, 0.2
    %v1240 = vmul.f32 %v216, 0.2
    %v1241 = vmul.f32 %v217, 0.2
    %v1242 = vmul.f32 %v218, 0.2
    %v1243 = vmul.f32 %v219, 0.2
    %v1244 = vmul.f32 %v220, 0.2
    %v1245 = vmul.f32 %v221, 0.2
    %v1246 = vmul.f32 %v222, 0.2
    %v1247 = vmul.f32 %v223, 0.2
    %v1248 = vmul.f32 %v224, 0.2
    %v1249 = vmul.f32 %v225, 0.2
    %v1250 = vmul.f32 %v226, 0.2
    %v1251 = vmul.f32 %v227, 0.2
    %v1252 = vmul.f32 %v228, 0.2
    %v1253 = vmul.f32 %v229, 0.2
    %v1254 = vmul.f32 %v230, 0.2
    %v1255 = vmul.f32 %v231, 0.2
    %v1256 = vmul.f32 %v232, 0.2
    %v1257 = vmul.f32 %v233, 0.2
    %v1258 = vmul.f32 %v234, 0.2
    %v1259 = vmul.f32 %v235, 0.2
    %v1260 = vmul.f32 %v236, 0.2
    %v1261 = vmul.f32 %v237, 0.2
    %v1262 = vmul.f32 %v238, 0.2
    %v1263 = vmul.f32 %v239, 0.2
    %v1264 = vmul.f32 %v240, 0.2
    %v1265 = vmul.f32 %v241, 0.2
    %v1266 = vmul.f32 %v242, 0.2
    %v1267 = vmul.f32 %v243, 0.2
    %v1268 = vmul.f32 %v244, 0.2
    %v1269 = vmul.f32 %v245, 0.2
    %v1270 = vmul.f32 %v246, 0.2
    %v1271 = vmul.f32 %v247, 0.2
    %v1272 = vmul.f32 %v248, 0.2
    %v1273 = vadd.f32 %v1017, %v1145
    %v1274 = vadd.f32 %v1018, %v1146
    %v1275 = vadd.f32 %v1019, %v1147
    %v1276 = vadd.f32 %v1020, %v1148
    %v1277 = vadd.f32 %v1021, %v1149
    %v1278 = vadd.f32 %v1022, %v1150
    %v1279 = vadd.f32 %v1023, %v1151
    %v1280 = vadd.f32 %v1024, %v1152
    %v1281 = vadd.f32 %v1025, %v1153
    %v1282 = vadd.f32 %v1026, %v1154
    %v1283 = vadd.f32 %v1027, %v1155
    %v1284 = vadd.f32 %v1028, %v1156
    %v1285 = vadd.f32 %v1029, %v1157
    %v1286 = vadd.f32 %v1030, %v1158
    %v1287 = vadd.f32 %v1031, %v1159
    %v1288 = vadd.f32 %v1032, %v1160
    %v1289 = vadd.f32 %v1033, %v1161
    %v1290 = vadd.f32 %v1034, %v1162
    %v1291 = vadd.f32 %v1035, %v1163
    %v1292 = vadd.f32 %v1036, %v1164
    %v1293 = vadd.f32 %v1037, %v1165
    %v1294 = vadd.f32 %v1038, %v1166
    %v1295 = vadd.f32 %v1039, %v1167
    %v1296 = vadd.f32 %v1040, %v1168
    %v1297 = vadd.f32 %v1041, %v1169
    %v1298 = vadd.f32 %v1042, %v1170
    %v1299 = vadd.f32 %v1043, %v1171
    %v1300 = vadd.f32 %v1044, %v1172
    %v1301 = vadd.f32 %v1045, %v1173
    %v1302 = vadd.f32 %v1046, %v1174
    %v1303 = vadd.f32 %v1047, %v1175
    %v1304 = vadd.f32 %v1048, %v1176
    %v1305 = vadd.f32 %v1049, %v1177
    %v1306 = vadd.f32 %v1050, %v1178
    %v1307 = vadd.f32 %v1051, %v1179
    %v1308 = vadd.f32 %v1052, %v1180
    %v1309 = vadd.f32 %v1053, %v1181
    %v1310 = vadd.f32 %v1054, %v1182
    %v1311 = vadd.f32 %v1055, %v1183
    %v1312 = vadd.f32 %v1056, %v1184
    %v1313 = vadd.f32 %v1057, %v1185
    %v1314 = vadd.f32 %v1058, %v1186
    %v1315 = vadd.f32 %v1059, %v1187
    %v1316 = vadd.f32 %v1060, %v1188
    %v1317 = vadd.f32 %v1061, %v1189
    %v1318 = vadd.f32 %v1062, %v1190
    %v1319 = vadd.f32 %v1063, %v1191
    %v1320 = vadd.f32 %v1064, %v1192
    %v1321 = vadd.f32 %v1065, %v1193
    %v1322 = vadd.f32 %v1066, %v1194
    %v1323 = vadd.f32 %v1067, %v1195
    %v1324 = vadd.f32 %v1068, %v1196
    %v1325 = vadd.f32 %v1069, %v1197
    %v1326 = vadd.f32 %v1070, %v1198
    %v1327 = vadd.f32 %v1071, %v1199
    %v1328 = vadd.f32 %v1072, %v1200
    %v1329 = vadd.f32 %v1073, %v1201
    %v1330 = vadd.f32 %v1074, %v1202
    %v1331 = vadd.f32 %v1075, %v1203
    %v1332 = vadd.f32 %v1076, %v1204
    %v1333 = vadd.f32 %v1077, %v1205
    %v1334 = vadd.f32 %v1078, %v1206
    %v1335 = vadd.f32 %v1079, %v1207
    %v1336 = vadd.f32 %v1080, %v1208
    %v1337 = vadd.f32 %v1081, %v1209
    %v1338 = vadd.f32 %v1082, %v1210
    %v1339 = vadd.f32 %v1083, %v1211
    %v1340 = vadd.f32 %v1084, %v1212
    %v1341 = vadd.f32 %v1085, %v1213
    %v1342 = vadd.f32 %v1086, %v1214
    %v1343 = vadd.f32 %v1087, %v1215
    %v1344 = vadd.f32 %v1088, %v1216
    %v1345 = vadd.f32 %v1089, %v1217
    %v1346 = vadd.f32 %v1090, %v1218
    %v1347 = vadd.f32 %v1091, %v1219
    %v1348 = vadd.f32 %v1092, %v1220
    %v1349 = vadd.f32 %v1093, %v1221
    %v1350 = vadd.f32 %v1094, %v1222
    %v1351 = vadd.f32 %v1095, %v1223
    %v1352 = vadd.f32 %v1096, %v1224
    %v1353 = vadd.f32 %v1097, %v1225
    %v1354 = vadd.f32 %v1098, %v1226
    %v1355 = vadd.f32 %v1099, %v1227
    %v1356 = vadd.f32 %v1100, %v1228
    %v1357 = vadd.f32 %v1101, %v1229
    %v1358 = vadd.f32 %v1102, %v1230
    %v1359 = vadd.f32 %v1103, %v1231
    %v1360 = vadd.f32 %v1104, %v1232
    %v1361 = vadd.f32 %v1105, %v1233
    %v1362 = vadd.f32 %v1106, %v1234
    %v1363 = vadd.f32 %v1107, %v1235
    %v1364 = vadd.f32 %v1108, %v1236
    %v1365 = vadd.f32 %v1109, %v1237
    %v1366 = vadd.f32 %v1110, %v1238
    %v1367 = vadd.f32 %v1111, %v1239
    %v1368 = vadd.f32 %v1112, %v1240
    %v1369 = vadd.f32 %v1113, %v1241
    %v1370 = vadd.f32 %v1114, %v1242
    %v1371 = vadd.f32 %v1115, %v1243
    %v1372 = vadd.f32 %v1116, %v1244
    %v1373 = vadd.f32 %v1117, %v1245
    %v1374 = vadd.f32 %v1118, %v1246
    %v1375 = vadd.f32 %v1119, %v1247
    %v1376 = vadd.f32 %v1120, %v1248
    %v1377 = vadd.f32 %v1121, %v1249
    %v1378 = vadd.f32 %v1122, %v1250
    %v1379 = vadd.f32 %v1123, %v1251
    %v1380 = vadd.f32 %v1124, %v1252
    %v1381 = vadd.f32 %v1125, %v1253
    %v1382 = vadd.f32 %v1126, %v1254
    %v1383 = vadd.f32 %v1127, %v1255
    %v1384 = vadd.f32 %v1128, %v1256
    %v1385 = vadd.f32 %v1129, %v1257
    %v1386 = vadd.f32 %v1130, %v1258
    %v1387 = vadd.f32 %v1131, %v1259
    %v1388 = vadd.f32 %v1132, %v1260
    %v1389 = vadd.f32 %v1133, %v1261
    %v1390 = vadd.f32 %v1134, %v1262
    %v1391 = vadd.f32 %v1135, %v1263
    %v1392 = vadd.f32 %v1136, %v1264
    %v1393 = vadd.f32 %v1137, %v1265
    %v1394 = vadd.f32 %v1138, %v1266
    %v1395 = vadd.f32 %v1139, %v1267
    %v1396 = vadd.f32 %v1140, %v1268
    %v1397 = vadd.f32 %v1141, %v1269
    %v1398 = vadd.f32 %v1142, %v1270
    %v1399 = vadd.f32 %v1143, %v1271
    %v1400 = vadd.f32 %v1144, %v1272
    %1401 = vst [vmem:[#allocation15] sm:$0xff] %v1273
    %1402 = vst [vmem:[#allocation15 + $0x8] sm:$0xff] %v1274
    %1403 = vst [vmem:[#allocation15 + $0x10] sm:$0xff] %v1275
    %1404 = vst [vmem:[#allocation15 + $0x18] sm:$0xff] %v1276
    %1405 = vst [vmem:[#allocation15 + $0x20] sm:$0xff] %v1277
    %1406 = vst [vmem:[#allocation15 + $0x28] sm:$0xff] %v1278
    %1407 = vst [vmem:[#allocation15 + $0x30] sm:$0xff] %v1279
    %1408 = vst [vmem:[#allocation15 + $0x38] sm:$0xff] %v1280
    %1409 = vst [vmem:[#allocation15 + $0x40] sm:$0xff] %v1281
    %1410 = vst [vmem:[#allocation15 + $0x48] sm:$0xff] %v1282
    %1411 = vst [vmem:[#allocation15 + $0x50] sm:$0xff] %v1283
    %1412 = vst [vmem:[#allocation15 + $0x58] sm:$0xff] %v1284
    %1413 = vst [vmem:[#allocation15 + $0x60] sm:$0xff] %v1285
    %1414 = vst [vmem:[#allocation15 + $0x68] sm:$0xff] %v1286
    %1415 = vst [vmem:[#allocation15 + $0x70] sm:$0xff] %v1287
    %1416 = vst [vmem:[#allocation15 + $0x78] sm:$0xff] %v1288
    %1417 = vst [vmem:[#allocation15 + $0x80] sm:$0xff] %v1289
    %1418 = vst [vmem:[#allocation15 + $0x88] sm:$0xff] %v1290
    %1419 = vst [vmem:[#allocation15 + $0x90] sm:$0xff] %v1291
    %1420 = vst [vmem:[#allocation15 + $0x98] sm:$0xff] %v1292
    %1421 = vst [vmem:[#allocation15 + $0xa0] sm:$0xff] %v1293
    %1422 = vst [vmem:[#allocation15 + $0xa8] sm:$0xff] %v1294
    %1423 = vst [vmem:[#allocation15 + $0xb0] sm:$0xff] %v1295
    %1424 = vst [vmem:[#allocation15 + $0xb8] sm:$0xff] %v1296
    %1425 = vst [vmem:[#allocation15 + $0xc0] sm:$0xff] %v1297
    %1426 = vst [vmem:[#allocation15 + $0xc8] sm:$0xff] %v1298
    %1427 = vst [vmem:[#allocation15 + $0xd0] sm:$0xff] %v1299
    %1428 = vst [vmem:[#allocation15 + $0xd8] sm:$0xff] %v1300
    %1429 = vst [vmem:[#allocation15 + $0xe0] sm:$0xff] %v1301
    %1430 = vst [vmem:[#allocation15 + $0xe8] sm:$0xff] %v1302
    %1431 = vst [vmem:[#allocation15 + $0xf0] sm:$0xff] %v1303
    %1432 = vst [vmem:[#allocation15 + $0xf8] sm:$0xff] %v1304
    %1433 = vst [vmem:[#allocation15 + $0x100] sm:$0xff] %v1305
    %1434 = vst [vmem:[#allocation15 + $0x108] sm:$0xff] %v1306
    %1435 = vst [vmem:[#allocation15 + $0x110] sm:$0xff] %v1307
    %1436 = vst [vmem:[#allocation15 + $0x118] sm:$0xff] %v1308
    %1437 = vst [vmem:[#allocation15 + $0x120] sm:$0xff] %v1309
    %1438 = vst [vmem:[#allocation15 + $0x128] sm:$0xff] %v1310
    %1439 = vst [vmem:[#allocation15 + $0x130] sm:$0xff] %v1311
    %1440 = vst [vmem:[#allocation15 + $0x138] sm:$0xff] %v1312
    %1441 = vst [vmem:[#allocation15 + $0x140] sm:$0xff] %v1313
    %1442 = vst [vmem:[#allocation15 + $0x148] sm:$0xff] %v1314
    %1443 = vst [vmem:[#allocation15 + $0x150] sm:$0xff] %v1315
    %1444 = vst [vmem:[#allocation15 + $0x158] sm:$0xff] %v1316
    %1445 = vst [vmem:[#allocation15 + $0x160] sm:$0xff] %v1317
    %1446 = vst [vmem:[#allocation15 + $0x168] sm:$0xff] %v1318
    %1447 = vst [vmem:[#allocation15 + $0x170] sm:$0xff] %v1319
    %1448 = vst [vmem:[#allocation15 + $0x178] sm:$0xff] %v1320
    %1449 = vst [vmem:[#allocation15 + $0x180] sm:$0xff] %v1321
    %1450 = vst [vmem:[#allocation15 + $0x188] sm:$0xff] %v1322
    %1451 = vst [vmem:[#allocation15 + $0x190] sm:$0xff] %v1323
    %1452 = vst [vmem:[#allocation15 + $0x198] sm:$0xff] %v1324
    %1453 = vst [vmem:[#allocation15 + $0x1a0] sm:$0xff] %v1325
    %1454 = vst [vmem:[#allocation15 + $0x1a8] sm:$0xff] %v1326
    %1455 = vst [vmem:[#allocation15 + $0x1b0] sm:$0xff] %v1327
    %1456 = vst [vmem:[#allocation15 + $0x1b8] sm:$0xff] %v1328
    %1457 = vst [vmem:[#allocation15 + $0x1c0] sm:$0xff] %v1329
    %1458 = vst [vmem:[#allocation15 + $0x1c8] sm:$0xff] %v1330
    %1459 = vst [vmem:[#allocation15 + $0x1d0] sm:$0xff] %v1331
    %1460 = vst [vmem:[#allocation15 + $0x1d8] sm:$0xff] %v1332
    %1461 = vst [vmem:[#allocation15 + $0x1e0] sm:$0xff] %v1333
    %1462 = vst [vmem:[#allocation15 + $0x1e8] sm:$0xff] %v1334
    %1463 = vst [vmem:[#allocation15 + $0x1f0] sm:$0xff] %v1335
    %1464 = vst [vmem:[#allocation15 + $0x1f8] sm:$0xff] %v1336
    %1465 = vst [vmem:[#allocation15 + $0x200] sm:$0xff] %v1337
    %1466 = vst [vmem:[#allocation15 + $0x208] sm:$0xff] %v1338
    %1467 = vst [vmem:[#allocation15 + $0x210] sm:$0xff] %v1339
    %1468 = vst [vmem:[#allocation15 + $0x218] sm:$0xff] %v1340
    %1469 = vst [vmem:[#allocation15 + $0x220] sm:$0xff] %v1341
    %1470 = vst [vmem:[#allocation15 + $0x228] sm:$0xff] %v1342
    %1471 = vst [vmem:[#allocation15 + $0x230] sm:$0xff] %v1343
    %1472 = vst [vmem:[#allocation15 + $0x238] sm:$0xff] %v1344
    %1473 = vst [vmem:[#allocation15 + $0x240] sm:$0xff] %v1345
    %1474 = vst [vmem:[#allocation15 + $0x248] sm:$0xff] %v1346
    %1475 = vst [vmem:[#allocation15 + $0x250] sm:$0xff] %v1347
    %1476 = vst [vmem:[#allocation15 + $0x258] sm:$0xff] %v1348
    %1477 = vst [vmem:[#allocation15 + $0x260] sm:$0xff] %v1349
    %1478 = vst [vmem:[#allocation15 + $0x268] sm:$0xff] %v1350
    %1479 = vst [vmem:[#allocation15 + $0x270] sm:$0xff] %v1351
    %1480 = vst [vmem:[#allocation15 + $0x278] sm:$0xff] %v1352
    %1481 = vst [vmem:[#allocation15 + $0x280] sm:$0xff] %v1353
    %1482 = vst [vmem:[#allocation15 + $0x288] sm:$0xff] %v1354
    %1483 = vst [vmem:[#allocation15 + $0x290] sm:$0xff] %v1355
    %1484 = vst [vmem:[#allocation15 + $0x298] sm:$0xff] %v1356
    %1485 = vst [vmem:[#allocation15 + $0x2a0] sm:$0xff] %v1357
    %1486 = vst [vmem:[#allocation15 + $0x2a8] sm:$0xff] %v1358
    %1487 = vst [vmem:[#allocation15 + $0x2b0] sm:$0xff] %v1359
    %1488 = vst [vmem:[#allocation15 + $0x2b8] sm:$0xff] %v1360
    %1489 = vst [vmem:[#allocation15 + $0x2c0] sm:$0xff] %v1361
    %1490 = vst [vmem:[#allocation15 + $0x2c8] sm:$0xff] %v1362
    %1491 = vst [vmem:[#allocation15 + $0x2d0] sm:$0xff] %v1363
    %1492 = vst [vmem:[#allocation15 + $0x2d8] sm:$0xff] %v1364
    %1493 = vst [vmem:[#allocation15 + $0x2e0] sm:$0xff] %v1365
    %1494 = vst [vmem:[#allocation15 + $0x2e8] sm:$0xff] %v1366
    %1495 = vst [vmem:[#allocation15 + $0x2f0] sm:$0xff] %v1367
    %1496 = vst [vmem:[#allocation15 + $0x2f8] sm:$0xff] %v1368
    %1497 = vst [vmem:[#allocation15 + $0x300] sm:$0xff] %v1369
    %1498 = vst [vmem:[#allocation15 + $0x308] sm:$0xff] %v1370
    %1499 = vst [vmem:[#allocation15 + $0x310] sm:$0xff] %v1371
    %1500 = vst [vmem:[#allocation15 + $0x318] sm:$0xff] %v1372
    %1501 = vst [vmem:[#allocation15 + $0x320] sm:$0xff] %v1373
    %1502 = vst [vmem:[#allocation15 + $0x328] sm:$0xff] %v1374
    %1503 = vst [vmem:[#allocation15 + $0x330] sm:$0xff] %v1375
    %1504 = vst [vmem:[#allocation15 + $0x338] sm:$0xff] %v1376
    %1505 = vst [vmem:[#allocation15 + $0x340] sm:$0xff] %v1377
    %1506 = vst [vmem:[#allocation15 + $0x348] sm:$0xff] %v1378
    %1507 = vst [vmem:[#allocation15 + $0x350] sm:$0xff] %v1379
    %1508 = vst [vmem:[#allocation15 + $0x358] sm:$0xff] %v1380
    %1509 = vst [vmem:[#allocation15 + $0x360] sm:$0xff] %v1381
    %1510 = vst [vmem:[#allocation15 + $0x368] sm:$0xff] %v1382
    %1511 = vst [vmem:[#allocation15 + $0x370] sm:$0xff] %v1383
    %1512 = vst [vmem:[#allocation15 + $0x378] sm:$0xff] %v1384
    %1513 = vst [vmem:[#allocation15 + $0x380] sm:$0xff] %v1385
    %1514 = vst [vmem:[#allocation15 + $0x388] sm:$0xff] %v1386
    %1515 = vst [vmem:[#allocation15 + $0x390] sm:$0xff] %v1387
    %1516 = vst [vmem:[#allocation15 + $0x398] sm:$0xff] %v1388
    %1517 = vst [vmem:[#allocation15 + $0x3a0] sm:$0xff] %v1389
    %1518 = vst [vmem:[#allocation15 + $0x3a8] sm:$0xff] %v1390
    %1519 = vst [vmem:[#allocation15 + $0x3b0] sm:$0xff] %v1391
    %1520 = vst [vmem:[#allocation15 + $0x3b8] sm:$0xff] %v1392
    %1521 = vst [vmem:[#allocation15 + $0x3c0] sm:$0xff] %v1393
    %1522 = vst [vmem:[#allocation15 + $0x3c8] sm:$0xff] %v1394
    %1523 = vst [vmem:[#allocation15 + $0x3d0] sm:$0xff] %v1395
    %1524 = vst [vmem:[#allocation15 + $0x3d8] sm:$0xff] %v1396
    %1525 = vst [vmem:[#allocation15 + $0x3e0] sm:$0xff] %v1397
    %1526 = vst [vmem:[#allocation15 + $0x3e8] sm:$0xff] %v1398
    %1527 = vst [vmem:[#allocation15 + $0x3f0] sm:$0xff] %v1399
    %1528 = vst [vmem:[#allocation15 + $0x3f8] sm:$0xff] %v1400
    %1529 = vst [vmem:[#allocation17] sm:$0xff] %v761
    %1530 = vst [vmem:[#allocation17 + $0x8] sm:$0xff] %v762
    %1531 = vst [vmem:[#allocation17 + $0x10] sm:$0xff] %v763
    %1532 = vst [vmem:[#allocation17 + $0x18] sm:$0xff] %v764
    %1533 = vst [vmem:[#allocation17 + $0x20] sm:$0xff] %v765
    %1534 = vst [vmem:[#allocation17 + $0x28] sm:$0xff] %v766
    %1535 = vst [vmem:[#allocation17 + $0x30] sm:$0xff] %v767
    %1536 = vst [vmem:[#allocation17 + $0x38] sm:$0xff] %v768
    %1537 = vst [vmem:[#allocation17 + $0x40] sm:$0xff] %v769
    %1538 = vst [vmem:[#allocation17 + $0x48] sm:$0xff] %v770
    %1539 = vst [vmem:[#allocation17 + $0x50] sm:$0xff] %v771
    %1540 = vst [vmem:[#allocation17 + $0x58] sm:$0xff] %v772
    %1541 = vst [vmem:[#allocation17 + $0x60] sm:$0xff] %v773
    %1542 = vst [vmem:[#allocation17 + $0x68] sm:$0xff] %v774
    %1543 = vst [vmem:[#allocation17 + $0x70] sm:$0xff] %v775
    %1544 = vst [vmem:[#allocation17 + $0x78] sm:$0xff] %v776
    %1545 = vst [vmem:[#allocation17 + $0x80] sm:$0xff] %v777
    %1546 = vst [vmem:[#allocation17 + $0x88] sm:$0xff] %v778
    %1547 = vst [vmem:[#allocation17 + $0x90] sm:$0xff] %v779
    %1548 = vst [vmem:[#allocation17 + $0x98] sm:$0xff] %v780
    %1549 = vst [vmem:[#allocation17 + $0xa0] sm:$0xff] %v781
    %1550 = vst [vmem:[#allocation17 + $0xa8] sm:$0xff] %v782
    %1551 = vst [vmem:[#allocation17 + $0xb0] sm:$0xff] %v783
    %1552 = vst [vmem:[#allocation17 + $0xb8] sm:$0xff] %v784
    %1553 = vst [vmem:[#allocation17 + $0xc0] sm:$0xff] %v785
    %1554 = vst [vmem:[#allocation17 + $0xc8] sm:$0xff] %v786
    %1555 = vst [vmem:[#allocation17 + $0xd0] sm:$0xff] %v787
    %1556 = vst [vmem:[#allocation17 + $0xd8] sm:$0xff] %v788
    %1557 = vst [vmem:[#allocation17 + $0xe0] sm:$0xff] %v789
    %1558 = vst [vmem:[#allocation17 + $0xe8] sm:$0xff] %v790
    %1559 = vst [vmem:[#allocation17 + $0xf0] sm:$0xff] %v791
    %1560 = vst [vmem:[#allocation17 + $0xf8] sm:$0xff] %v792
    %1561 = vst [vmem:[#allocation17 + $0x100] sm:$0xff] %v793
    %1562 = vst [vmem:[#allocation17 + $0x108] sm:$0xff] %v794
    %1563 = vst [vmem:[#allocation17 + $0x110] sm:$0xff] %v795
    %1564 = vst [vmem:[#allocation17 + $0x118] sm:$0xff] %v796
    %1565 = vst [vmem:[#allocation17 + $0x120] sm:$0xff] %v797
    %1566 = vst [vmem:[#allocation17 + $0x128] sm:$0xff] %v798
    %1567 = vst [vmem:[#allocation17 + $0x130] sm:$0xff] %v799
    %1568 = vst [vmem:[#allocation17 + $0x138] sm:$0xff] %v800
    %1569 = vst [vmem:[#allocation17 + $0x140] sm:$0xff] %v801
    %1570 = vst [vmem:[#allocation17 + $0x148] sm:$0xff] %v802
    %1571 = vst [vmem:[#allocation17 + $0x150] sm:$0xff] %v803
    %1572 = vst [vmem:[#allocation17 + $0x158] sm:$0xff] %v804
    %1573 = vst [vmem:[#allocation17 + $0x160] sm:$0xff] %v805
    %1574 = vst [vmem:[#allocation17 + $0x168] sm:$0xff] %v806
    %1575 = vst [vmem:[#allocation17 + $0x170] sm:$0xff] %v807
    %1576 = vst [vmem:[#allocation17 + $0x178] sm:$0xff] %v808
    %1577 = vst [vmem:[#allocation17 + $0x180] sm:$0xff] %v809
    %1578 = vst [vmem:[#allocation17 + $0x188] sm:$0xff] %v810
    %1579 = vst [vmem:[#allocation17 + $0x190] sm:$0xff] %v811
    %1580 = vst [vmem:[#allocation17 + $0x198] sm:$0xff] %v812
    %1581 = vst [vmem:[#allocation17 + $0x1a0] sm:$0xff] %v813
    %1582 = vst [vmem:[#allocation17 + $0x1a8] sm:$0xff] %v814
    %1583 = vst [vmem:[#allocation17 + $0x1b0] sm:$0xff] %v815
    %1584 = vst [vmem:[#allocation17 + $0x1b8] sm:$0xff] %v816
    %1585 = vst [vmem:[#allocation17 + $0x1c0] sm:$0xff] %v817
    %1586 = vst [vmem:[#allocation17 + $0x1c8] sm:$0xff] %v818
    %1587 = vst [vmem:[#allocation17 + $0x1d0] sm:$0xff] %v819
    %1588 = vst [vmem:[#allocation17 + $0x1d8] sm:$0xff] %v820
    %1589 = vst [vmem:[#allocation17 + $0x1e0] sm:$0xff] %v821
    %1590 = vst [vmem:[#allocation17 + $0x1e8] sm:$0xff] %v822
    %1591 = vst [vmem:[#allocation17 + $0x1f0] sm:$0xff] %v823
    %1592 = vst [vmem:[#allocation17 + $0x1f8] sm:$0xff] %v824
    %1593 = vst [vmem:[#allocation17 + $0x200] sm:$0xff] %v825
    %1594 = vst [vmem:[#allocation17 + $0x208] sm:$0xff] %v826
    %1595 = vst [vmem:[#allocation17 + $0x210] sm:$0xff] %v827
    %1596 = vst [vmem:[#allocation17 + $0x218] sm:$0xff] %v828
    %1597 = vst [vmem:[#allocation17 + $0x220] sm:$0xff] %v829
    %1598 = vst [vmem:[#allocation17 + $0x228] sm:$0xff] %v830
    %1599 = vst [vmem:[#allocation17 + $0x230] sm:$0xff] %v831
    %1600 = vst [vmem:[#allocation17 + $0x238] sm:$0xff] %v832
    %1601 = vst [vmem:[#allocation17 + $0x240] sm:$0xff] %v833
    %1602 = vst [vmem:[#allocation17 + $0x248] sm:$0xff] %v834
    %1603 = vst [vmem:[#allocation17 + $0x250] sm:$0xff] %v835
    %1604 = vst [vmem:[#allocation17 + $0x258] sm:$0xff] %v836
    %1605 = vst [vmem:[#allocation17 + $0x260] sm:$0xff] %v837
    %1606 = vst [vmem:[#allocation17 + $0x268] sm:$0xff] %v838
    %1607 = vst [vmem:[#allocation17 + $0x270] sm:$0xff] %v839
    %1608 = vst [vmem:[#allocation17 + $0x278] sm:$0xff] %v840
    %1609 = vst [vmem:[#allocation17 + $0x280] sm:$0xff] %v841
    %1610 = vst [vmem:[#allocation17 + $0x288] sm:$0xff] %v842
    %1611 = vst [vmem:[#allocation17 + $0x290] sm:$0xff] %v843
    %1612 = vst [vmem:[#allocation17 + $0x298] sm:$0xff] %v844
    %1613 = vst [vmem:[#allocation17 + $0x2a0] sm:$0xff] %v845
    %1614 = vst [vmem:[#allocation17 + $0x2a8] sm:$0xff] %v846
    %1615 = vst [vmem:[#allocation17 + $0x2b0] sm:$0xff] %v847
    %1616 = vst [vmem:[#allocation17 + $0x2b8] sm:$0xff] %v848
    %1617 = vst [vmem:[#allocation17 + $0x2c0] sm:$0xff] %v849
    %1618 = vst [vmem:[#allocation17 + $0x2c8] sm:$0xff] %v850
    %1619 = vst [vmem:[#allocation17 + $0x2d0] sm:$0xff] %v851
    %1620 = vst [vmem:[#allocation17 + $0x2d8] sm:$0xff] %v852
    %1621 = vst [vmem:[#allocation17 + $0x2e0] sm:$0xff] %v853
    %1622 = vst [vmem:[#allocation17 + $0x2e8] sm:$0xff] %v854
    %1623 = vst [vmem:[#allocation17 + $0x2f0] sm:$0xff] %v855
    %1624 = vst [vmem:[#allocation17 + $0x2f8] sm:$0xff] %v856
    %1625 = vst [vmem:[#allocation17 + $0x300] sm:$0xff] %v857
    %1626 = vst [vmem:[#allocation17 + $0x308] sm:$0xff] %v858
    %1627 = vst [vmem:[#allocation17 + $0x310] sm:$0xff] %v859
    %1628 = vst [vmem:[#allocation17 + $0x318] sm:$0xff] %v860
    %1629 = vst [vmem:[#allocation17 + $0x320] sm:$0xff] %v861
    %1630 = vst [vmem:[#allocation17 + $0x328] sm:$0xff] %v862
    %1631 = vst [vmem:[#allocation17 + $0x330] sm:$0xff] %v863
    %1632 = vst [vmem:[#allocation17 + $0x338] sm:$0xff] %v864
    %1633 = vst [vmem:[#allocation17 + $0x340] sm:$0xff] %v865
    %1634 = vst [vmem:[#allocation17 + $0x348] sm:$0xff] %v866
    %1635 = vst [vmem:[#allocation17 + $0x350] sm:$0xff] %v867
    %1636 = vst [vmem:[#allocation17 + $0x358] sm:$0xff] %v868
    %1637 = vst [vmem:[#allocation17 + $0x360] sm:$0xff] %v869
    %1638 = vst [vmem:[#allocation17 + $0x368] sm:$0xff] %v870
    %1639 = vst [vmem:[#allocation17 + $0x370] sm:$0xff] %v871
    %1640 = vst [vmem:[#allocation17 + $0x378] sm:$0xff] %v872
    %1641 = vst [vmem:[#allocation17 + $0x380] sm:$0xff] %v873
    %1642 = vst [vmem:[#allocation17 + $0x388] sm:$0xff] %v874
    %1643 = vst [vmem:[#allocation17 + $0x390] sm:$0xff] %v875
    %1644 = vst [vmem:[#allocation17 + $0x398] sm:$0xff] %v876
    %1645 = vst [vmem:[#allocation17 + $0x3a0] sm:$0xff] %v877
    %1646 = vst [vmem:[#allocation17 + $0x3a8] sm:$0xff] %v878
    %1647 = vst [vmem:[#allocation17 + $0x3b0] sm:$0xff] %v879
    %1648 = vst [vmem:[#allocation17 + $0x3b8] sm:$0xff] %v880
    %1649 = vst [vmem:[#allocation17 + $0x3c0] sm:$0xff] %v881
    %1650 = vst [vmem:[#allocation17 + $0x3c8] sm:$0xff] %v882
    %1651 = vst [vmem:[#allocation17 + $0x3d0] sm:$0xff] %v883
    %1652 = vst [vmem:[#allocation17 + $0x3d8] sm:$0xff] %v884
    %1653 = vst [vmem:[#allocation17 + $0x3e0] sm:$0xff] %v885
    %1654 = vst [vmem:[#allocation17 + $0x3e8] sm:$0xff] %v886
    %1655 = vst [vmem:[#allocation17 + $0x3f0] sm:$0xff] %v887
    %1656 = vst [vmem:[#allocation17 + $0x3f8] sm:$0xff] %v888
    %v1657 = vld [vmem:[#allocation3] sm:$0xff]
    %v1658 = vld [vmem:[#allocation3 + $0x8] sm:$0xff]
    %v1659 = vld [vmem:[#allocation3 + $0x10] sm:$0xff]
    %v1660 = vld [vmem:[#allocation3 + $0x18] sm:$0xff]
    %v1661 = vld [vmem:[#allocation3 + $0x20] sm:$0xff]
    %v1662 = vld [vmem:[#allocation3 + $0x28] sm:$0xff]
    %v1663 = vld [vmem:[#allocation3 + $0x30] sm:$0xff]
    %v1664 = vld [vmem:[#allocation3 + $0x38] sm:$0xff]
    %v1665 = vld [vmem:[#allocation6] sm:$0xff]
    %v1666 = vld [vmem:[#allocation6 + $0x8] sm:$0xff]
    %v1667 = vld [vmem:[#allocation6 + $0x10] sm:$0xff]
    %v1668 = vld [vmem:[#allocation6 + $0x18] sm:$0xff]
    %v1669 = vld [vmem:[#allocation6 + $0x20] sm:$0xff]
    %v1670 = vld [vmem:[#allocation6 + $0x28] sm:$0xff]
    %v1671 = vld [vmem:[#allocation6 + $0x30] sm:$0xff]
    %v1672 = vld [vmem:[#allocation6 + $0x38] sm:$0xff]
    %v1673 = vpack.c.bf16 %v1665, %v1657
    %v1674 = vpack.c.bf16 %v1666, %v1658
    %v1675 = vpack.c.bf16 %v1667, %v1659
    %v1676 = vpack.c.bf16 %v1668, %v1660
    %v1677 = vpack.c.bf16 %v1669, %v1661
    %v1678 = vpack.c.bf16 %v1670, %v1662
    %v1679 = vpack.c.bf16 %v1671, %v1663
    %v1680 = vpack.c.bf16 %v1672, %v1664
    %v1681 = vpack.c.bf16 %v129, %v121
    %v1682 = vpack.c.bf16 %v130, %v122
    %v1683 = vpack.c.bf16 %v131, %v123
    %v1684 = vpack.c.bf16 %v132, %v124
    %v1685 = vpack.c.bf16 %v133, %v125
    %v1686 = vpack.c.bf16 %v134, %v126
    %v1687 = vpack.c.bf16 %v135, %v127
    %v1688 = vpack.c.bf16 %v136, %v128
    %v1689 = vpack.c.bf16 %v145, %v137
    %v1690 = vpack.c.bf16 %v146, %v138
    %v1691 = vpack.c.bf16 %v147, %v139
    %v1692 = vpack.c.bf16 %v148, %v140
    %v1693 = vpack.c.bf16 %v149, %v141
    %v1694 = vpack.c.bf16 %v150, %v142
    %v1695 = vpack.c.bf16 %v151, %v143
    %v1696 = vpack.c.bf16 %v152, %v144
    %v1697 = vpack.c.bf16 %v161, %v153
    %v1698 = vpack.c.bf16 %v162, %v154
    %v1699 = vpack.c.bf16 %v163, %v155
    %v1700 = vpack.c.bf16 %v164, %v156
    %v1701 = vpack.c.bf16 %v165, %v157
    %v1702 = vpack.c.bf16 %v166, %v158
    %v1703 = vpack.c.bf16 %v167, %v159
    %v1704 = vpack.c.bf16 %v168, %v160
    %v1705 = vpack.c.bf16 %v177, %v169
    %v1706 = vpack.c.bf16 %v178, %v170
    %v1707 = vpack.c.bf16 %v179, %v171
    %v1708 = vpack.c.bf16 %v180, %v172
    %v1709 = vpack.c.bf16 %v181, %v173
    %v1710 = vpack.c.bf16 %v182, %v174
    %v1711 = vpack.c.bf16 %v183, %v175
    %v1712 = vpack.c.bf16 %v184, %v176
    %v1713 = vpack.c.bf16 %v193, %v185
    %v1714 = vpack.c.bf16 %v194, %v186
    %v1715 = vpack.c.bf16 %v195, %v187
    %v1716 = vpack.c.bf16 %v196, %v188
    %v1717 = vpack.c.bf16 %v197, %v189
    %v1718 = vpack.c.bf16 %v198, %v190
    %v1719 = vpack.c.bf16 %v199, %v191
    %v1720 = vpack.c.bf16 %v200, %v192
    %v1721 = vpack.c.bf16 %v209, %v201
    %v1722 = vpack.c.bf16 %v210, %v202
    %v1723 = vpack.c.bf16 %v211, %v203
    %v1724 = vpack.c.bf16 %v212, %v204
    %v1725 = vpack.c.bf16 %v213, %v205
    %v1726 = vpack.c.bf16 %v214, %v206
    %v1727 = vpack.c.bf16 %v215, %v207
    %v1728 = vpack.c.bf16 %v216, %v208
    %v1729 = vpack.c.bf16 %v225, %v217
    %v1730 = vpack.c.bf16 %v226, %v218
    %v1731 = vpack.c.bf16 %v227, %v219
    %v1732 = vpack.c.bf16 %v228, %v220
    %v1733 = vpack.c.bf16 %v229, %v221
    %v1734 = vpack.c.bf16 %v230, %v222
    %v1735 = vpack.c.bf16 %v231, %v223
    %v1736 = vpack.c.bf16 %v232, %v224
    %v1737 = vpack.c.bf16 %v241, %v233
    %v1738 = vpack.c.bf16 %v242, %v234
    %v1739 = vpack.c.bf16 %v243, %v235
    %v1740 = vpack.c.bf16 %v244, %v236
    %v1741 = vpack.c.bf16 %v245, %v237
    %v1742 = vpack.c.bf16 %v246, %v238
    %v1743 = vpack.c.bf16 %v247, %v239
    %v1744 = vpack.c.bf16 %v248, %v240
    %v1745 = vpack.c.bf16 %v257, %v249
    %v1746 = vpack.c.bf16 %v258, %v250
    %v1747 = vpack.c.bf16 %v259, %v251
    %v1748 = vpack.c.bf16 %v260, %v252
    %v1749 = vpack.c.bf16 %v261, %v253
    %v1750 = vpack.c.bf16 %v262, %v254
    %v1751 = vpack.c.bf16 %v263, %v255
    %v1752 = vpack.c.bf16 %v264, %v256
    %v1753 = vpack.c.bf16 %v273, %v265
    %v1754 = vpack.c.bf16 %v274, %v266
    %v1755 = vpack.c.bf16 %v275, %v267
    %v1756 = vpack.c.bf16 %v276, %v268
    %v1757 = vpack.c.bf16 %v277, %v269
    %v1758 = vpack.c.bf16 %v278, %v270
    %v1759 = vpack.c.bf16 %v279, %v271
    %v1760 = vpack.c.bf16 %v280, %v272
    %v1761 = vpack.c.bf16 %v289, %v281
    %v1762 = vpack.c.bf16 %v290, %v282
    %v1763 = vpack.c.bf16 %v291, %v283
    %v1764 = vpack.c.bf16 %v292, %v284
    %v1765 = vpack.c.bf16 %v293, %v285
    %v1766 = vpack.c.bf16 %v294, %v286
    %v1767 = vpack.c.bf16 %v295, %v287
    %v1768 = vpack.c.bf16 %v296, %v288
    %v1769 = vpack.c.bf16 %v305, %v297
    %v1770 = vpack.c.bf16 %v306, %v298
    %v1771 = vpack.c.bf16 %v307, %v299
    %v1772 = vpack.c.bf16 %v308, %v300
    %v1773 = vpack.c.bf16 %v309, %v301
    %v1774 = vpack.c.bf16 %v310, %v302
    %v1775 = vpack.c.bf16 %v311, %v303
    %v1776 = vpack.c.bf16 %v312, %v304
    %v1777 = vpack.c.bf16 %v321, %v313
    %v1778 = vpack.c.bf16 %v322, %v314
    %v1779 = vpack.c.bf16 %v323, %v315
    %v1780 = vpack.c.bf16 %v324, %v316
    %v1781 = vpack.c.bf16 %v325, %v317
    %v1782 = vpack.c.bf16 %v326, %v318
    %v1783 = vpack.c.bf16 %v327, %v319
    %v1784 = vpack.c.bf16 %v328, %v320
    %v1785 = vpack.c.bf16 %v337, %v329
    %v1786 = vpack.c.bf16 %v338, %v330
    %v1787 = vpack.c.bf16 %v339, %v331
    %v1788 = vpack.c.bf16 %v340, %v332
    %v1789 = vpack.c.bf16 %v341, %v333
    %v1790 = vpack.c.bf16 %v342, %v334
    %v1791 = vpack.c.bf16 %v343, %v335
    %v1792 = vpack.c.bf16 %v344, %v336
    %v1793 = vpack.c.bf16 %v353, %v345
    %v1794 = vpack.c.bf16 %v354, %v346
    %v1795 = vpack.c.bf16 %v355, %v347
    %v1796 = vpack.c.bf16 %v356, %v348
    %v1797 = vpack.c.bf16 %v357, %v349
    %v1798 = vpack.c.bf16 %v358, %v350
    %v1799 = vpack.c.bf16 %v359, %v351
    %v1800 = vpack.c.bf16 %v360, %v352
    %v1801 = vpack.c.bf16 %v369, %v361
    %v1802 = vpack.c.bf16 %v370, %v362
    %v1803 = vpack.c.bf16 %v371, %v363
    %v1804 = vpack.c.bf16 %v372, %v364
    %v1805 = vpack.c.bf16 %v373, %v365
    %v1806 = vpack.c.bf16 %v374, %v366
    %v1807 = vpack.c.bf16 %v375, %v367
    %v1808 = vpack.c.bf16 %v376, %v368
    %v1809 = vpack.c.bf16 %v769, %v761
    %v1810 = vpack.c.bf16 %v770, %v762
    %v1811 = vpack.c.bf16 %v771, %v763
    %v1812 = vpack.c.bf16 %v772, %v764
    %v1813 = vpack.c.bf16 %v773, %v765
    %v1814 = vpack.c.bf16 %v774, %v766
    %v1815 = vpack.c.bf16 %v775, %v767
    %v1816 = vpack.c.bf16 %v776, %v768
    %v1817 = vpack.c.bf16 %v785, %v777
    %v1818 = vpack.c.bf16 %v786, %v778
    %v1819 = vpack.c.bf16 %v787, %v779
    %v1820 = vpack.c.bf16 %v788, %v780
    %v1821 = vpack.c.bf16 %v789, %v781
    %v1822 = vpack.c.bf16 %v790, %v782
    %v1823 = vpack.c.bf16 %v791, %v783
    %v1824 = vpack.c.bf16 %v792, %v784
    %v1825 = vpack.c.bf16 %v801, %v793
    %v1826 = vpack.c.bf16 %v802, %v794
    %v1827 = vpack.c.bf16 %v803, %v795
    %v1828 = vpack.c.bf16 %v804, %v796
    %v1829 = vpack.c.bf16 %v805, %v797
    %v1830 = vpack.c.bf16 %v806, %v798
    %v1831 = vpack.c.bf16 %v807, %v799
    %v1832 = vpack.c.bf16 %v808, %v800
    %v1833 = vpack.c.bf16 %v817, %v809
    %v1834 = vpack.c.bf16 %v818, %v810
    %v1835 = vpack.c.bf16 %v819, %v811
    %v1836 = vpack.c.bf16 %v820, %v812
    %v1837 = vpack.c.bf16 %v821, %v813
    %v1838 = vpack.c.bf16 %v822, %v814
    %v1839 = vpack.c.bf16 %v823, %v815
    %v1840 = vpack.c.bf16 %v824, %v816
    %v1841 = vpack.c.bf16 %v833, %v825
    %v1842 = vpack.c.bf16 %v834, %v826
    %v1843 = vpack.c.bf16 %v835, %v827
    %v1844 = vpack.c.bf16 %v836, %v828
    %v1845 = vpack.c.bf16 %v837, %v829
    %v1846 = vpack.c.bf16 %v838, %v830
    %v1847 = vpack.c.bf16 %v839, %v831
    %v1848 = vpack.c.bf16 %v840, %v832
    %v1849 = vpack.c.bf16 %v849, %v841
    %v1850 = vpack.c.bf16 %v850, %v842
    %v1851 = vpack.c.bf16 %v851, %v843
    %v1852 = vpack.c.bf16 %v852, %v844
    %v1853 = vpack.c.bf16 %v853, %v845
    %v1854 = vpack.c.bf16 %v854, %v846
    %v1855 = vpack.c.bf16 %v855, %v847
    %v1856 = vpack.c.bf16 %v856, %v848
    %v1857 = vpack.c.bf16 %v865, %v857
    %v1858 = vpack.c.bf16 %v866, %v858
    %v1859 = vpack.c.bf16 %v867, %v859
    %v1860 = vpack.c.bf16 %v868, %v860
    %v1861 = vpack.c.bf16 %v869, %v861
    %v1862 = vpack.c.bf16 %v870, %v862
    %v1863 = vpack.c.bf16 %v871, %v863
    %v1864 = vpack.c.bf16 %v872, %v864
    %v1865 = vpack.c.bf16 %v881, %v873
    %v1866 = vpack.c.bf16 %v882, %v874
    %v1867 = vpack.c.bf16 %v883, %v875
    %v1868 = vpack.c.bf16 %v884, %v876
    %v1869 = vpack.c.bf16 %v885, %v877
    %v1870 = vpack.c.bf16 %v886, %v878
    %v1871 = vpack.c.bf16 %v887, %v879
    %v1872 = vpack.c.bf16 %v888, %v880
    %v1873 = vpack.c.bf16 %v1281, %v1273
    %v1874 = vpack.c.bf16 %v1282, %v1274
    %v1875 = vpack.c.bf16 %v1283, %v1275
    %v1876 = vpack.c.bf16 %v1284, %v1276
    %v1877 = vpack.c.bf16 %v1285, %v1277
    %v1878 = vpack.c.bf16 %v1286, %v1278
    %v1879 = vpack.c.bf16 %v1287, %v1279
    %v1880 = vpack.c.bf16 %v1288, %v1280
    %v1881 = vpack.c.bf16 %v1297, %v1289
    %v1882 = vpack.c.bf16 %v1298, %v1290
    %v1883 = vpack.c.bf16 %v1299, %v1291
    %v1884 = vpack.c.bf16 %v1300, %v1292
    %v1885 = vpack.c.bf16 %v1301, %v1293
    %v1886 = vpack.c.bf16 %v1302, %v1294
    %v1887 = vpack.c.bf16 %v1303, %v1295
    %v1888 = vpack.c.bf16 %v1304, %v1296
    %v1889 = vpack.c.bf16 %v1313, %v1305
    %v1890 = vpack.c.bf16 %v1314, %v1306
    %v1891 = vpack.c.bf16 %v1315, %v1307
    %v1892 = vpack.c.bf16 %v1316, %v1308
    %v1893 = vpack.c.bf16 %v1317, %v1309
    %v1894 = vpack.c.bf16 %v1318, %v1310
    %v1895 = vpack.c.bf16 %v1319, %v1311
    %v1896 = vpack.c.bf16 %v1320, %v1312
    %v1897 = vpack.c.bf16 %v1329, %v1321
    %v1898 = vpack.c.bf16 %v1330, %v1322
    %v1899 = vpack.c.bf16 %v1331, %v1323
    %v1900 = vpack.c.bf16 %v1332, %v1324
    %v1901 = vpack.c.bf16 %v1333, %v1325
    %v1902 = vpack.c.bf16 %v1334, %v1326
    %v1903 = vpack.c.bf16 %v1335, %v1327
    %v1904 = vpack.c.bf16 %v1336, %v1328
    %v1905 = vpack.c.bf16 %v1345, %v1337
    %v1906 = vpack.c.bf16 %v1346, %v1338
    %v1907 = vpack.c.bf16 %v1347, %v1339
    %v1908 = vpack.c.bf16 %v1348, %v1340
    %v1909 = vpack.c.bf16 %v1349, %v1341
    %v1910 = vpack.c.bf16 %v1350, %v1342
    %v1911 = vpack.c.bf16 %v1351, %v1343
    %v1912 = vpack.c.bf16 %v1352, %v1344
    %v1913 = vpack.c.bf16 %v1361, %v1353
    %v1914 = vpack.c.bf16 %v1362, %v1354
    %v1915 = vpack.c.bf16 %v1363, %v1355
    %v1916 = vpack.c.bf16 %v1364, %v1356
    %v1917 = vpack.c.bf16 %v1365, %v1357
    %v1918 = vpack.c.bf16 %v1366, %v1358
    %v1919 = vpack.c.bf16 %v1367, %v1359
    %v1920 = vpack.c.bf16 %v1368, %v1360
    %v1921 = vpack.c.bf16 %v1377, %v1369
    %v1922 = vpack.c.bf16 %v1378, %v1370
    %v1923 = vpack.c.bf16 %v1379, %v1371
    %v1924 = vpack.c.bf16 %v1380, %v1372
    %v1925 = vpack.c.bf16 %v1381, %v1373
    %v1926 = vpack.c.bf16 %v1382, %v1374
    %v1927 = vpack.c.bf16 %v1383, %v1375
    %v1928 = vpack.c.bf16 %v1384, %v1376
    %v1929 = vpack.c.bf16 %v1393, %v1385
    %v1930 = vpack.c.bf16 %v1394, %v1386
    %v1931 = vpack.c.bf16 %v1395, %v1387
    %v1932 = vpack.c.bf16 %v1396, %v1388
    %v1933 = vpack.c.bf16 %v1397, %v1389
    %v1934 = vpack.c.bf16 %v1398, %v1390
    %v1935 = vpack.c.bf16 %v1399, %v1391
    %v1936 = vpack.c.bf16 %v1400, %v1392
    %v1937 = vld [vmem:[#allocation2] sm:$0xff]
    %v1938 = vld [vmem:[#allocation2 + $0x8] sm:$0xff]
    %v1939 = vld [vmem:[#allocation2 + $0x10] sm:$0xff]
    %v1940 = vld [vmem:[#allocation2 + $0x18] sm:$0xff]
    %v1941 = vld [vmem:[#allocation2 + $0x20] sm:$0xff]
    %v1942 = vld [vmem:[#allocation2 + $0x28] sm:$0xff]
    %v1943 = vld [vmem:[#allocation2 + $0x30] sm:$0xff]
    %v1944 = vld [vmem:[#allocation2 + $0x38] sm:$0xff]
    %1945 = vmatprep.subr.bf16.mxu0 %v1682
    %1946 = vmatpush1.bf16.xpose.msra.mxu0 %v1681
    %1947 = vmatprep.subr.bf16.mxu0 %v1690
    %1948 = vmatpush1.bf16.xpose.msra.mxu0 %v1689
    %1949 = vmatprep.subr.bf16.mxu0 %v1698
    %1950 = vmatpush1.bf16.xpose.msra.mxu0 %v1697
    %1951 = vmatprep.subr.bf16.mxu0 %v1706
    %1952 = vmatpush1.bf16.xpose.msra.mxu0 %v1705
    %1953 = vmatprep.subr.bf16.mxu0 %v1714
    %1954 = vmatpush1.bf16.xpose.msra.mxu0 %v1713
    %1955 = vmatprep.subr.bf16.mxu0 %v1722
    %1956 = vmatpush1.bf16.xpose.msra.mxu0 %v1721
    %1957 = vmatprep.subr.bf16.mxu0 %v1730
    %1958 = vmatpush1.bf16.xpose.msra.mxu0 %v1729
    %1959 = vmatprep.subr.bf16.mxu0 %v1738
    %1960 = vmatpush1.bf16.xpose.msra.mxu0 %v1737
    %1961 = vmatprep.subr.bf16.mxu0 %v1746
    %1962 = vmatpush1.bf16.xpose.msra.mxu0 %v1745
    %1963 = vmatprep.subr.bf16.mxu0 %v1754
    %1964 = vmatpush1.bf16.xpose.msra.mxu0 %v1753
    %1965 = vmatprep.subr.bf16.mxu0 %v1762
    %1966 = vmatpush1.bf16.xpose.msra.mxu0 %v1761
    %1967 = vmatprep.subr.bf16.mxu0 %v1770
    %1968 = vmatpush1.bf16.xpose.msra.mxu0 %v1769
    %1969 = vmatprep.subr.bf16.mxu0 %v1778
    %1970 = vmatpush1.bf16.xpose.msra.mxu0 %v1777
    %1971 = vmatprep.subr.bf16.mxu0 %v1786
    %1972 = vmatpush1.bf16.xpose.msra.mxu0 %v1785
    %1973 = vmatprep.subr.bf16.mxu0 %v1794
    %1974 = vmatpush1.bf16.xpose.msra.mxu0 %v1793
    %1975 = vmatprep.subr.bf16.mxu0 %v1802
    %1976 = vmatpush1.bf16.xpose.msra.mxu0 %v1801
    %1977 = vmatprep.mubr.bf16.mxu0 %v1674
    %1978 = vmatmul.mubr.bf16.gmra.mrb[0].mxu0 %v1673
    %v1979 = vpop.f32.mrb[0].mxu0
    %v1980 = vadd.f32 0.0, %v1979
    %v1981 = vpop.f32.mrb[0].mxu0
    %v1982 = vadd.f32 0.0, %v1981
    %v1983 = vpop.f32.mrb[0].mxu0
    %v1984 = vadd.f32 0.0, %v1983
    %v1985 = vpop.f32.mrb[0].mxu0
    %v1986 = vadd.f32 0.0, %v1985
    %1987 = vdwg.mxu0
    %1988 = vmatprep.subr.bf16.mxu0 %v1684
    %1989 = vmatpush1.bf16.xpose.msra.mxu0 %v1683
    %1990 = vmatprep.subr.bf16.mxu0 %v1692
    %1991 = vmatpush1.bf16.xpose.msra.mxu0 %v1691
    %1992 = vmatprep.subr.bf16.mxu0 %v1700
    %1993 = vmatpush1.bf16.xpose.msra.mxu0 %v1699
    %1994 = vmatprep.subr.bf16.mxu0 %v1708
    %1995 = vmatpush1.bf16.xpose.msra.mxu0 %v1707
    %1996 = vmatprep.subr.bf16.mxu0 %v1716
    %1997 = vmatpush1.bf16.xpose.msra.mxu0 %v1715
    %1998 = vmatprep.subr.bf16.mxu0 %v1724
    %1999 = vmatpush1.bf16.xpose.msra.mxu0 %v1723
    %2000 = vmatprep.subr.bf16.mxu0 %v1732
    %2001 = vmatpush1.bf16.xpose.msra.mxu0 %v1731
    %2002 = vmatprep.subr.bf16.mxu0 %v1740
    %2003 = vmatpush1.bf16.xpose.msra.mxu0 %v1739
    %2004 = vmatprep.subr.bf16.mxu0 %v1748
    %2005 = vmatpush1.bf16.xpose.msra.mxu0 %v1747
    %2006 = vmatprep.subr.bf16.mxu0 %v1756
    %2007 = vmatpush1.bf16.xpose.msra.mxu0 %v1755
    %2008 = vmatprep.subr.bf16.mxu0 %v1764
    %2009 = vmatpush1.bf16.xpose.msra.mxu0 %v1763
    %2010 = vmatprep.subr.bf16.mxu0 %v1772
    %2011 = vmatpush1.bf16.xpose.msra.mxu0 %v1771
    %2012 = vmatprep.subr.bf16.mxu0 %v1780
    %2013 = vmatpush1.bf16.xpose.msra.mxu0 %v1779
    %2014 = vmatprep.subr.bf16.mxu0 %v1788
    %2015 = vmatpush1.bf16.xpose.msra.mxu0 %v1787
    %2016 = vmatprep.subr.bf16.mxu0 %v1796
    %2017 = vmatpush1.bf16.xpose.msra.mxu0 %v1795
    %2018 = vmatprep.subr.bf16.mxu0 %v1804
    %2019 = vmatpush1.bf16.xpose.msra.mxu0 %v1803
    %2020 = vmatprep.mubr.bf16.mxu0 %v1676
    %2021 = vmatmul.mubr.bf16.gmra.mrb[0].mxu0 %v1675
    %v2022 = vpop.f32.mrb[0].mxu0
    %v2023 = vadd.f32 %v1980, %v2022
    %v2024 = vpop.f32.mrb[0].mxu0
    %v2025 = vadd.f32 %v1982, %v2024
    %v2026 = vpop.f32.mrb[0].mxu0
    %v2027 = vadd.f32 %v1984, %v2026
    %v2028 = vpop.f32.mrb[0].mxu0
    %v2029 = vadd.f32 %v1986, %v2028
    %2030 = vdwg.mxu0
    %2031 = vmatprep.subr.bf16.mxu0 %v1686
    %2032 = vmatpush1.bf16.xpose.msra.mxu0 %v1685
    %2033 = vmatprep.subr.bf16.mxu0 %v1694
    %2034 = vmatpush1.bf16.xpose.msra.mxu0 %v1693
    %2035 = vmatprep.subr.bf16.mxu0 %v1702
    %2036 = vmatpush1.bf16.xpose.msra.mxu0 %v1701
    %2037 = vmatprep.subr.bf16.mxu0 %v1710
    %2038 = vmatpush1.bf16.xpose.msra.mxu0 %v1709
    %2039 = vmatprep.subr.bf16.mxu0 %v1718
    %2040 = vmatpush1.bf16.xpose.msra.mxu0 %v1717
    %2041 = vmatprep.subr.bf16.mxu0 %v1726
    %2042 = vmatpush1.bf16.xpose.msra.mxu0 %v1725
    %2043 = vmatprep.subr.bf16.mxu0 %v1734
    %2044 = vmatpush1.bf16.xpose.msra.mxu0 %v1733
    %2045 = vmatprep.subr.bf16.mxu0 %v1742
    %2046 = vmatpush1.bf16.xpose.msra.mxu0 %v1741
    %2047 = vmatprep.subr.bf16.mxu0 %v1750
    %2048 = vmatpush1.bf16.xpose.msra.mxu0 %v1749
    %2049 = vmatprep.subr.bf16.mxu0 %v1758
    %2050 = vmatpush1.bf16.xpose.msra.mxu0 %v1757
    %2051 = vmatprep.subr.bf16.mxu0 %v1766
    %2052 = vmatpush1.bf16.xpose.msra.mxu0 %v1765
    %2053 = vmatprep.subr.bf16.mxu0 %v1774
    %2054 = vmatpush1.bf16.xpose.msra.mxu0 %v1773
    %2055 = vmatprep.subr.bf16.mxu0 %v1782
    %2056 = vmatpush1.bf16.xpose.msra.mxu0 %v1781
    %2057 = vmatprep.subr.bf16.mxu0 %v1790
    %2058 = vmatpush1.bf16.xpose.msra.mxu0 %v1789
    %2059 = vmatprep.subr.bf16.mxu0 %v1798
    %2060 = vmatpush1.bf16.xpose.msra.mxu0 %v1797
    %2061 = vmatprep.subr.bf16.mxu0 %v1806
    %2062 = vmatpush1.bf16.xpose.msra.mxu0 %v1805
    %2063 = vmatprep.mubr.bf16.mxu0 %v1678
    %2064 = vmatmul.mubr.bf16.gmra.mrb[0].mxu0 %v1677
    %v2065 = vpop.f32.mrb[0].mxu0
    %v2066 = vadd.f32 %v2023, %v2065
    %v2067 = vpop.f32.mrb[0].mxu0
    %v2068 = vadd.f32 %v2025, %v2067
    %v2069 = vpop.f32.mrb[0].mxu0
    %v2070 = vadd.f32 %v2027, %v2069
    %v2071 = vpop.f32.mrb[0].mxu0
    %v2072 = vadd.f32 %v2029, %v2071
    %2073 = vdwg.mxu0
    %2074 = vmatprep.subr.bf16.mxu0 %v1688
    %2075 = vmatpush1.bf16.xpose.msra.mxu0 %v1687
    %2076 = vmatprep.subr.bf16.mxu0 %v1696
    %2077 = vmatpush1.bf16.xpose.msra.mxu0 %v1695
    %2078 = vmatprep.subr.bf16.mxu0 %v1704
    %2079 = vmatpush1.bf16.xpose.msra.mxu0 %v1703
    %2080 = vmatprep.subr.bf16.mxu0 %v1712
    %2081 = vmatpush1.bf16.xpose.msra.mxu0 %v1711
    %2082 = vmatprep.subr.bf16.mxu0 %v1720
    %2083 = vmatpush1.bf16.xpose.msra.mxu0 %v1719
    %2084 = vmatprep.subr.bf16.mxu0 %v1728
    %2085 = vmatpush1.bf16.xpose.msra.mxu0 %v1727
    %2086 = vmatprep.subr.bf16.mxu0 %v1736
    %2087 = vmatpush1.bf16.xpose.msra.mxu0 %v1735
    %2088 = vmatprep.subr.bf16.mxu0 %v1744
    %2089 = vmatpush1.bf16.xpose.msra.mxu0 %v1743
    %2090 = vmatprep.subr.bf16.mxu0 %v1752
    %2091 = vmatpush1.bf16.xpose.msra.mxu0 %v1751
    %2092 = vmatprep.subr.bf16.mxu0 %v1760
    %2093 = vmatpush1.bf16.xpose.msra.mxu0 %v1759
    %2094 = vmatprep.subr.bf16.mxu0 %v1768
    %2095 = vmatpush1.bf16.xpose.msra.mxu0 %v1767
    %2096 = vmatprep.subr.bf16.mxu0 %v1776
    %2097 = vmatpush1.bf16.xpose.msra.mxu0 %v1775
    %2098 = vmatprep.subr.bf16.mxu0 %v1784
    %2099 = vmatpush1.bf16.xpose.msra.mxu0 %v1783
    %2100 = vmatprep.subr.bf16.mxu0 %v1792
    %2101 = vmatpush1.bf16.xpose.msra.mxu0 %v1791
    %2102 = vmatprep.subr.bf16.mxu0 %v1800
    %2103 = vmatpush1.bf16.xpose.msra.mxu0 %v1799
    %2104 = vmatprep.subr.bf16.mxu0 %v1808
    %2105 = vmatpush1.bf16.xpose.msra.mxu0 %v1807
    %2106 = vmatprep.mubr.bf16.mxu0 %v1680
    %2107 = vmatmul.mubr.bf16.gmra.mrb[0].mxu0 %v1679
    %v2108 = vpop.f32.mrb[0].mxu0
    %v2109 = vadd.f32 %v2066, %v2108
    %v2110 = vpop.f32.mrb[0].mxu0
    %v2111 = vadd.f32 %v2068, %v2110
    %v2112 = vpop.f32.mrb[0].mxu0
    %v2113 = vadd.f32 %v2070, %v2112
    %v2114 = vpop.f32.mrb[0].mxu0
    %v2115 = vadd.f32 %v2072, %v2114
    %2116 = vdwg.mxu0
    %2117 = vmatprep.subr.bf16.mxu0 %v1810
    %2118 = vmatpush1.bf16.xpose.msra.mxu0 %v1809
    %2119 = vmatprep.subr.bf16.mxu0 %v1818
    %2120 = vmatpush1.bf16.xpose.msra.mxu0 %v1817
    %2121 = vmatprep.subr.bf16.mxu0 %v1826
    %2122 = vmatpush1.bf16.xpose.msra.mxu0 %v1825
    %2123 = vmatprep.subr.bf16.mxu0 %v1834
    %2124 = vmatpush1.bf16.xpose.msra.mxu0 %v1833
    %2125 = vmatprep.subr.bf16.mxu0 %v1842
    %2126 = vmatpush1.bf16.xpose.msra.mxu0 %v1841
    %2127 = vmatprep.subr.bf16.mxu0 %v1850
    %2128 = vmatpush1.bf16.xpose.msra.mxu0 %v1849
    %2129 = vmatprep.subr.bf16.mxu0 %v1858
    %2130 = vmatpush1.bf16.xpose.msra.mxu0 %v1857
    %2131 = vmatprep.subr.bf16.mxu0 %v1866
    %2132 = vmatpush1.bf16.xpose.msra.mxu0 %v1865
    %2133 = vmatprep.subr.bf16.mxu0 %v1874
    %2134 = vmatpush1.bf16.xpose.msra.mxu0 %v1873
    %2135 = vmatprep.subr.bf16.mxu0 %v1882
    %2136 = vmatpush1.bf16.xpose.msra.mxu0 %v1881
    %2137 = vmatprep.subr.bf16.mxu0 %v1890
    %2138 = vmatpush1.bf16.xpose.msra.mxu0 %v1889
    %2139 = vmatprep.subr.bf16.mxu0 %v1898
    %2140 = vmatpush1.bf16.xpose.msra.mxu0 %v1897
    %2141 = vmatprep.subr.bf16.mxu0 %v1906
    %2142 = vmatpush1.bf16.xpose.msra.mxu0 %v1905
    %2143 = vmatprep.subr.bf16.mxu0 %v1914
    %2144 = vmatpush1.bf16.xpose.msra.mxu0 %v1913
    %2145 = vmatprep.subr.bf16.mxu0 %v1922
    %2146 = vmatpush1.bf16.xpose.msra.mxu0 %v1921
    %2147 = vmatprep.subr.bf16.mxu0 %v1930
    %2148 = vmatpush1.bf16.xpose.msra.mxu0 %v1929
    %2149 = vmatprep.mubr.bf16.mxu0 %v1674
    %2150 = vmatmul.mubr.bf16.gmra.mrb[0].mxu0 %v1673
    %v2151 = vpop.f32.mrb[0].mxu0
    %v2152 = vadd.f32 0.0, %v2151
    %v2153 = vpop.f32.mrb[0].mxu0
    %v2154 = vadd.f32 0.0, %v2153
    %v2155 = vpop.f32.mrb[0].mxu0
    %v2156 = vadd.f32 0.0, %v2155
    %v2157 = vpop.f32.mrb[0].mxu0
    %v2158 = vadd.f32 0.0, %v2157
    %2159 = vdwg.mxu0
    %2160 = vmatprep.subr.bf16.mxu0 %v1812
    %2161 = vmatpush1.bf16.xpose.msra.mxu0 %v1811
    %2162 = vmatprep.subr.bf16.mxu0 %v1820
    %2163 = vmatpush1.bf16.xpose.msra.mxu0 %v1819
    %2164 = vmatprep.subr.bf16.mxu0 %v1828
    %2165 = vmatpush1.bf16.xpose.msra.mxu0 %v1827
    %2166 = vmatprep.subr.bf16.mxu0 %v1836
    %2167 = vmatpush1.bf16.xpose.msra.mxu0 %v1835
    %2168 = vmatprep.subr.bf16.mxu0 %v1844
    %2169 = vmatpush1.bf16.xpose.msra.mxu0 %v1843
    %2170 = vmatprep.subr.bf16.mxu0 %v1852
    %2171 = vmatpush1.bf16.xpose.msra.mxu0 %v1851
    %2172 = vmatprep.subr.bf16.mxu0 %v1860
    %2173 = vmatpush1.bf16.xpose.msra.mxu0 %v1859
    %2174 = vmatprep.subr.bf16.mxu0 %v1868
    %2175 = vmatpush1.bf16.xpose.msra.mxu0 %v1867
    %2176 = vmatprep.subr.bf16.mxu0 %v1876
    %2177 = vmatpush1.bf16.xpose.msra.mxu0 %v1875
    %2178 = vmatprep.subr.bf16.mxu0 %v1884
    %2179 = vmatpush1.bf16.xpose.msra.mxu0 %v1883
    %2180 = vmatprep.subr.bf16.mxu0 %v1892
    %2181 = vmatpush1.bf16.xpose.msra.mxu0 %v1891
    %2182 = vmatprep.subr.bf16.mxu0 %v1900
    %2183 = vmatpush1.bf16.xpose.msra.mxu0 %v1899
    %2184 = vmatprep.subr.bf16.mxu0 %v1908
    %2185 = vmatpush1.bf16.xpose.msra.mxu0 %v1907
    %2186 = vmatprep.subr.bf16.mxu0 %v1916
    %2187 = vmatpush1.bf16.xpose.msra.mxu0 %v1915
    %2188 = vmatprep.subr.bf16.mxu0 %v1924
    %2189 = vmatpush1.bf16.xpose.msra.mxu0 %v1923
    %2190 = vmatprep.subr.bf16.mxu0 %v1932
    %2191 = vmatpush1.bf16.xpose.msra.mxu0 %v1931
    %2192 = vmatprep.mubr.bf16.mxu0 %v1676
    %2193 = vmatmul.mubr.bf16.gmra.mrb[0].mxu0 %v1675
    %v2194 = vpop.f32.mrb[0].mxu0
    %v2195 = vadd.f32 %v2152, %v2194
    %v2196 = vpop.f32.mrb[0].mxu0
    %v2197 = vadd.f32 %v2154, %v2196
    %v2198 = vpop.f32.mrb[0].mxu0
    %v2199 = vadd.f32 %v2156, %v2198
    %v2200 = vpop.f32.mrb[0].mxu0
    %v2201 = vadd.f32 %v2158, %v2200
    %2202 = vdwg.mxu0
    %2203 = vmatprep.subr.bf16.mxu0 %v1814
    %2204 = vmatpush1.bf16.xpose.msra.mxu0 %v1813
    %2205 = vmatprep.subr.bf16.mxu0 %v1822
    %2206 = vmatpush1.bf16.xpose.msra.mxu0 %v1821
    %2207 = vmatprep.subr.bf16.mxu0 %v1830
    %2208 = vmatpush1.bf16.xpose.msra.mxu0 %v1829
    %2209 = vmatprep.subr.bf16.mxu0 %v1838
    %2210 = vmatpush1.bf16.xpose.msra.mxu0 %v1837
    %2211 = vmatprep.subr.bf16.mxu0 %v1846
    %2212 = vmatpush1.bf16.xpose.msra.mxu0 %v1845
    %2213 = vmatprep.subr.bf16.mxu0 %v1854
    %2214 = vmatpush1.bf16.xpose.msra.mxu0 %v1853
    %2215 = vmatprep.subr.bf16.mxu0 %v1862
    %2216 = vmatpush1.bf16.xpose.msra.mxu0 %v1861
    %2217 = vmatprep.subr.bf16.mxu0 %v1870
    %2218 = vmatpush1.bf16.xpose.msra.mxu0 %v1869
    %2219 = vmatprep.subr.bf16.mxu0 %v1878
    %2220 = vmatpush1.bf16.xpose.msra.mxu0 %v1877
    %2221 = vmatprep.subr.bf16.mxu0 %v1886
    %2222 = vmatpush1.bf16.xpose.msra.mxu0 %v1885
    %2223 = vmatprep.subr.bf16.mxu0 %v1894
    %2224 = vmatpush1.bf16.xpose.msra.mxu0 %v1893
    %2225 = vmatprep.subr.bf16.mxu0 %v1902
    %2226 = vmatpush1.bf16.xpose.msra.mxu0 %v1901
    %2227 = vmatprep.subr.bf16.mxu0 %v1910
    %2228 = vmatpush1.bf16.xpose.msra.mxu0 %v1909
    %2229 = vmatprep.subr.bf16.mxu0 %v1918
    %2230 = vmatpush1.bf16.xpose.msra.mxu0 %v1917
    %2231 = vmatprep.subr.bf16.mxu0 %v1926
    %2232 = vmatpush1.bf16.xpose.msra.mxu0 %v1925
    %2233 = vmatprep.subr.bf16.mxu0 %v1934
    %2234 = vmatpush1.bf16.xpose.msra.mxu0 %v1933
    %2235 = vmatprep.mubr.bf16.mxu0 %v1678
    %2236 = vmatmul.mubr.bf16.gmra.mrb[0].mxu0 %v1677
    %v2237 = vpop.f32.mrb[0].mxu0
    %v2238 = vadd.f32 %v2195, %v2237
    %v2239 = vpop.f32.mrb[0].mxu0
    %v2240 = vadd.f32 %v2197, %v2239
    %v2241 = vpop.f32.mrb[0].mxu0
    %v2242 = vadd.f32 %v2199, %v2241
    %v2243 = vpop.f32.mrb[0].mxu0
    %v2244 = vadd.f32 %v2201, %v2243
    %2245 = vdwg.mxu0
    %2246 = vmatprep.subr.bf16.mxu0 %v1816
    %2247 = vmatpush1.bf16.xpose.msra.mxu0 %v1815
    %2248 = vmatprep.subr.bf16.mxu0 %v1824
    %2249 = vmatpush1.bf16.xpose.msra.mxu0 %v1823
    %2250 = vmatprep.subr.bf16.mxu0 %v1832
    %2251 = vmatpush1.bf16.xpose.msra.mxu0 %v1831
    %2252 = vmatprep.subr.bf16.mxu0 %v1840
    %2253 = vmatpush1.bf16.xpose.msra.mxu0 %v1839
    %2254 = vmatprep.subr.bf16.mxu0 %v1848
    %2255 = vmatpush1.bf16.xpose.msra.mxu0 %v1847
    %2256 = vmatprep.subr.bf16.mxu0 %v1856
    %2257 = vmatpush1.bf16.xpose.msra.mxu0 %v1855
    %2258 = vmatprep.subr.bf16.mxu0 %v1864
    %2259 = vmatpush1.bf16.xpose.msra.mxu0 %v1863
    %2260 = vmatprep.subr.bf16.mxu0 %v1872
    %2261 = vmatpush1.bf16.xpose.msra.mxu0 %v1871
    %2262 = vmatprep.subr.bf16.mxu0 %v1880
    %2263 = vmatpush1.bf16.xpose.msra.mxu0 %v1879
    %2264 = vmatprep.subr.bf16.mxu0 %v1888
    %2265 = vmatpush1.bf16.xpose.msra.mxu0 %v1887
    %2266 = vmatprep.subr.bf16.mxu0 %v1896
    %2267 = vmatpush1.bf16.xpose.msra.mxu0 %v1895
    %2268 = vmatprep.subr.bf16.mxu0 %v1904
    %2269 = vmatpush1.bf16.xpose.msra.mxu0 %v1903
    %2270 = vmatprep.subr.bf16.mxu0 %v1912
    %2271 = vmatpush1.bf16.xpose.msra.mxu0 %v1911
    %2272 = vmatprep.subr.bf16.mxu0 %v1920
    %2273 = vmatpush1.bf16.xpose.msra.mxu0 %v1919
    %2274 = vmatprep.subr.bf16.mxu0 %v1928
    %2275 = vmatpush1.bf16.xpose.msra.mxu0 %v1927
    %2276 = vmatprep.subr.bf16.mxu0 %v1936
    %2277 = vmatpush1.bf16.xpose.msra.mxu0 %v1935
    %2278 = vmatprep.mubr.bf16.mxu0 %v1680
    %2279 = vmatmul.mubr.bf16.gmra.mrb[0].mxu0 %v1679
    %v2280 = vpop.f32.mrb[0].mxu0
    %v2281 = vadd.f32 %v2238, %v2280
    %v2282 = vpop.f32.mrb[0].mxu0
    %v2283 = vadd.f32 %v2240, %v2282
    %v2284 = vpop.f32.mrb[0].mxu0
    %v2285 = vadd.f32 %v2242, %v2284
    %v2286 = vpop.f32.mrb[0].mxu0
    %v2287 = vadd.f32 %v2244, %v2286
    %2288 = vdwg.mxu0
    %v2289 = vadd.f32 %v1937, %v2109
    %v2290 = vadd.f32 %v1938, %v2111
    %v2291 = vadd.f32 %v1939, %v2281
    %v2292 = vadd.f32 %v1940, %v2283
    %v2293 = vadd.f32 %v1941, %v2113
    %v2294 = vadd.f32 %v1942, %v2115
    %v2295 = vadd.f32 %v1943, %v2285
    %v2296 = vadd.f32 %v1944, %v2287
    %2297 = vst [vmem:[#allocation2] sm:$0xff] %v2289
    %2298 = vst [vmem:[#allocation2 + $0x8] sm:$0xff] %v2290
    %2299 = vst [vmem:[#allocation2 + $0x10] sm:$0xff] %v2291
    %2300 = vst [vmem:[#allocation2 + $0x18] sm:$0xff] %v2292
    %2301 = vst [vmem:[#allocation2 + $0x20] sm:$0xff] %v2293
    %2302 = vst [vmem:[#allocation2 + $0x28] sm:$0xff] %v2294
    %2303 = vst [vmem:[#allocation2 + $0x30] sm:$0xff] %v2295
    %2304 = vst [vmem:[#allocation2 + $0x38] sm:$0xff] %v2296
    // Predicated region
    $region58: #{tpu_custom_call.1} parent=1 // pred_check
      %p2305 = pneg %p109
    $region59: #{tpu_custom_call.1} parent=1 // pred_check_branch
      %2307 = sbr.rel (%p2305) target = $region61
    $region60: #{tpu_custom_call.1} parent=1 // pred_region
      %v2308 = vld [vmem:[#allocation2] sm:$0xff]
      %v2309 = vld [vmem:[#allocation2 + $0x8] sm:$0xff]
      %v2310 = vld [vmem:[#allocation2 + $0x10] sm:$0xff]
      %v2311 = vld [vmem:[#allocation2 + $0x18] sm:$0xff]
      %v2312 = vld [vmem:[#allocation2 + $0x20] sm:$0xff]
      %v2313 = vld [vmem:[#allocation2 + $0x28] sm:$0xff]
      %v2314 = vld [vmem:[#allocation2 + $0x30] sm:$0xff]
      %v2315 = vld [vmem:[#allocation2 + $0x38] sm:$0xff]
      %v2316 = vlaneseq
      %v2317 = vand.u32 %v2316, 127
      %v2318 = vld [vmem:[%s2] sm:$0xf]
      %2319 = vset.pattern.permute.xlu0 0
      %2320 = vperm.xlu0 %2319, %v2318
      %v2321 = vpop.permute.xlu0 %2320
      %vm2322 = vcmp.eq.s32.totalorder %v2317, %v2321
      %vm2323 = vcmask 1043456
      %v2324 = vsel %vm2323, %v2308, -inf
      %2325 = vmax.xlane.f32.xlu0 %v2324
      %v2326 = vpop.xlane.xlu0 %2325
      %v2327 = vsub.f32 %v2308, %v2326
      %v2328 = vmul.f32 %v2327, 1.442695
      %v2329 = vpow.pop %v2328
      %v2330 = vsel %vm2323, %v2329, 0.0
      %2331 = vadd.xlane.f32.xlu0 %v2330
      %v2332 = vpop.xlane.xlu0 %2331
      %v2333 = vlog2.pop %v2332
      %v2334 = vmul.f32 %v2333, 0.6931472
      %v2335 = vsub.f32 %v2327, %v2334
      %v2336 = vrcp.pop %v2332
      %v2337 = vmul.f32 %v2329, %v2336
      %v2338 = vsel %vm2323, %v2310, -inf
      %2339 = vmax.xlane.f32.xlu0 %v2338
      %v2340 = vpop.xlane.xlu0 %2339
      %v2341 = vsub.f32 %v2310, %v2340
      %v2342 = vmul.f32 %v2341, 1.442695
      %v2343 = vpow.pop %v2342
      %v2344 = vsel %vm2323, %v2343, 0.0
      %2345 = vadd.xlane.f32.xlu0 %v2344
      %v2346 = vpop.xlane.xlu0 %2345
      %v2347 = vlog2.pop %v2346
      %v2348 = vmul.f32 %v2347, 0.6931472
      %v2349 = vsub.f32 %v2341, %v2348
      %v2350 = vsub.f32 %v2335, %v2349
      %v2351 = vmul.f32 %v2337, %v2350
      %v2352 = vsel %vm2323, %v2351, 0.0
      %2353 = vadd.xlane.f32.xlu0 %v2352
      %v2354 = vpop.xlane.xlu0 %2353
      %v2355 = vsel %vm2323, %v2354, 0.0
      %v2356 = vrot.slane %v2355, 4
      %v2357 = vadd.f32 %v2355, %v2356
      %v2358 = vrot.slane %v2357, 2
      %v2359 = vadd.f32 %v2357, %v2358
      %v2360 = vrot.slane %v2359, 1
      %v2361 = vadd.f32 %v2359, %v2360
      %v2362 = vsel %vm2322, %v2335, 0.0
      %v2363 = vsel %vm2323, %v2362, 0.0
      %2364 = vadd.xlane.f32.xlu0 %v2363
      %v2365 = vpop.xlane.xlu0 %2364
      %v2366 = vsel %vm2323, %v2365, 0.0
      %v2367 = vrot.slane %v2366, 4
      %v2368 = vadd.f32 %v2366, %v2367
      %v2369 = vrot.slane %v2368, 2
      %v2370 = vadd.f32 %v2368, %v2369
      %v2371 = vrot.slane %v2370, 1
      %v2372 = vadd.f32 %v2370, %v2371
      %v2373 = vsub.f32 0.0, %v2372
      %v2374 = vmul.f32 %v2361, 0.125
      %v2375 = vadd.f32 %v2374, 0.0
      %v2376 = vmul.f32 %v2373, 0.0625
      %v2377 = vadd.f32 %v2375, %v2376
      %v2378 = vsel %vm2323, %v2312, -inf
      %2379 = vmax.xlane.f32.xlu0 %v2378
      %v2380 = vpop.xlane.xlu0 %2379
      %v2381 = vsub.f32 %v2312, %v2380
      %v2382 = vmul.f32 %v2381, 1.442695
      %v2383 = vpow.pop %v2382
      %v2384 = vsel %vm2323, %v2383, 0.0
      %2385 = vadd.xlane.f32.xlu0 %v2384
      %v2386 = vpop.xlane.xlu0 %2385
      %v2387 = vlog2.pop %v2386
      %v2388 = vmul.f32 %v2387, 0.6931472
      %v2389 = vsub.f32 %v2381, %v2388
      %v2390 = vrcp.pop %v2386
      %v2391 = vmul.f32 %v2383, %v2390
      %v2392 = vsel %vm2323, %v2314, -inf
      %2393 = vmax.xlane.f32.xlu0 %v2392
      %v2394 = vpop.xlane.xlu0 %2393
      %v2395 = vsub.f32 %v2314, %v2394
      %v2396 = vmul.f32 %v2395, 1.442695
      %v2397 = vpow.pop %v2396
      %v2398 = vsel %vm2323, %v2397, 0.0
      %2399 = vadd.xlane.f32.xlu0 %v2398
      %v2400 = vpop.xlane.xlu0 %2399
      %v2401 = vlog2.pop %v2400
      %v2402 = vmul.f32 %v2401, 0.6931472
      %v2403 = vsub.f32 %v2395, %v2402
      %v2404 = vsub.f32 %v2389, %v2403
      %v2405 = vmul.f32 %v2391, %v2404
      %v2406 = vsel %vm2323, %v2405, 0.0
      %2407 = vadd.xlane.f32.xlu0 %v2406
      %v2408 = vpop.xlane.xlu0 %2407
      %v2409 = vsel %vm2323, %v2408, 0.0
      %v2410 = vrot.slane %v2409, 4
      %v2411 = vadd.f32 %v2409, %v2410
      %v2412 = vrot.slane %v2411, 2
      %v2413 = vadd.f32 %v2411, %v2412
      %v2414 = vrot.slane %v2413, 1
      %v2415 = vadd.f32 %v2413, %v2414
      %v2416 = vsel %vm2322, %v2389, 0.0
      %v2417 = vsel %vm2323, %v2416, 0.0
      %2418 = vadd.xlane.f32.xlu0 %v2417
      %v2419 = vpop.xlane.xlu0 %2418
      %v2420 = vsel %vm2323, %v2419, 0.0
      %v2421 = vrot.slane %v2420, 4
      %v2422 = vadd.f32 %v2420, %v2421
      %v2423 = vrot.slane %v2422, 2
      %v2424 = vadd.f32 %v2422, %v2423
      %v2425 = vrot.slane %v2424, 1
      %v2426 = vadd.f32 %v2424, %v2425
      %v2427 = vsub.f32 0.0, %v2426
      %v2428 = vmul.f32 %v2415, 0.125
      %v2429 = vadd.f32 %v2377, %v2428
      %v2430 = vmul.f32 %v2427, 0.0625
      %v2431 = vadd.f32 %v2429, %v2430
      %s2432 = scalar_lea.vmem %s2, 4
      %v2433 = vld [vmem:[%s2432] sm:$0xf]
      %2434 = vset.pattern.permute.xlu0 0
      %2435 = vperm.xlu0 %2434, %v2433
      %v2436 = vpop.permute.xlu0 %2435
      %vm2437 = vcmp.eq.s32.totalorder %v2317, %v2436
      %vm2438 = vcmask 1047556
      %v2439 = vsel %vm2438, %v2309, -inf
      %2440 = vmax.xlane.f32.xlu0 %v2439
      %v2441 = vpop.xlane.xlu0 %2440
      %v2442 = vsub.f32 %v2309, %v2441
      %v2443 = vmul.f32 %v2442, 1.442695
      %v2444 = vpow.pop %v2443
      %v2445 = vsel %vm2438, %v2444, 0.0
      %2446 = vadd.xlane.f32.xlu0 %v2445
      %v2447 = vpop.xlane.xlu0 %2446
      %v2448 = vlog2.pop %v2447
      %v2449 = vmul.f32 %v2448, 0.6931472
      %v2450 = vsub.f32 %v2442, %v2449
      %v2451 = vrcp.pop %v2447
      %v2452 = vmul.f32 %v2444, %v2451
      %v2453 = vsel %vm2438, %v2311, -inf
      %2454 = vmax.xlane.f32.xlu0 %v2453
      %v2455 = vpop.xlane.xlu0 %2454
      %v2456 = vsub.f32 %v2311, %v2455
      %v2457 = vmul.f32 %v2456, 1.442695
      %v2458 = vpow.pop %v2457
      %v2459 = vsel %vm2438, %v2458, 0.0
      %2460 = vadd.xlane.f32.xlu0 %v2459
      %v2461 = vpop.xlane.xlu0 %2460
      %v2462 = vlog2.pop %v2461
      %v2463 = vmul.f32 %v2462, 0.6931472
      %v2464 = vsub.f32 %v2456, %v2463
      %v2465 = vsub.f32 %v2450, %v2464
      %v2466 = vmul.f32 %v2452, %v2465
      %v2467 = vsel %vm2438, %v2466, 0.0
      %2468 = vadd.xlane.f32.xlu0 %v2467
      %v2469 = vpop.xlane.xlu0 %2468
      %v2471 = vrot.slane %v2469, 4
      %v2473 = vsel %vm2323, %v2471, 0.0
      %v2474 = vrot.slane %v2473, 4
      %v2475 = vadd.f32 %v2473, %v2474
      %v2476 = vrot.slane %v2475, 2
      %v2477 = vadd.f32 %v2475, %v2476
      %v2478 = vrot.slane %v2477, 1
      %v2479 = vadd.f32 %v2477, %v2478
      %v2481 = vrot.slane %v2450, 4
      %v2483 = vsel %vm2437, %v2481, 0.0
      %v2484 = vsel %vm2323, %v2483, 0.0
      %2485 = vadd.xlane.f32.xlu0 %v2484
      %v2486 = vpop.xlane.xlu0 %2485
      %v2487 = vsel %vm2323, %v2486, 0.0
      %v2488 = vrot.slane %v2487, 4
      %v2489 = vadd.f32 %v2487, %v2488
      %v2490 = vrot.slane %v2489, 2
      %v2491 = vadd.f32 %v2489, %v2490
      %v2492 = vrot.slane %v2491, 1
      %v2493 = vadd.f32 %v2491, %v2492
      %v2494 = vsub.f32 0.0, %v2493
      %v2495 = vmul.f32 %v2479, 0.125
      %v2496 = vadd.f32 %v2431, %v2495
      %v2497 = vmul.f32 %v2494, 0.0625
      %v2498 = vadd.f32 %v2496, %v2497
      %v2499 = vsel %vm2438, %v2313, -inf
      %2500 = vmax.xlane.f32.xlu0 %v2499
      %v2501 = vpop.xlane.xlu0 %2500
      %v2502 = vsub.f32 %v2313, %v2501
      %v2503 = vmul.f32 %v2502, 1.442695
      %v2504 = vpow.pop %v2503
      %v2505 = vsel %vm2438, %v2504, 0.0
      %2506 = vadd.xlane.f32.xlu0 %v2505
      %v2507 = vpop.xlane.xlu0 %2506
      %v2508 = vlog2.pop %v2507
      %v2509 = vmul.f32 %v2508, 0.6931472
      %v2510 = vsub.f32 %v2502, %v2509
      %v2511 = vrcp.pop %v2507
      %v2512 = vmul.f32 %v2504, %v2511
      %v2513 = vsel %vm2438, %v2315, -inf
      %2514 = vmax.xlane.f32.xlu0 %v2513
      %v2515 = vpop.xlane.xlu0 %2514
      %v2516 = vsub.f32 %v2315, %v2515
      %v2517 = vmul.f32 %v2516, 1.442695
      %v2518 = vpow.pop %v2517
      %v2519 = vsel %vm2438, %v2518, 0.0
      %2520 = vadd.xlane.f32.xlu0 %v2519
      %v2521 = vpop.xlane.xlu0 %2520
      %v2522 = vlog2.pop %v2521
      %v2523 = vmul.f32 %v2522, 0.6931472
      %v2524 = vsub.f32 %v2516, %v2523
      %v2525 = vsub.f32 %v2510, %v2524
      %v2526 = vmul.f32 %v2512, %v2525
      %v2527 = vsel %vm2438, %v2526, 0.0
      %2528 = vadd.xlane.f32.xlu0 %v2527
      %v2529 = vpop.xlane.xlu0 %2528
      %v2531 = vrot.slane %v2529, 4
      %v2533 = vsel %vm2323, %v2531, 0.0
      %v2534 = vrot.slane %v2533, 4
      %v2535 = vadd.f32 %v2533, %v2534
      %v2536 = vrot.slane %v2535, 2
      %v2537 = vadd.f32 %v2535, %v2536
      %v2538 = vrot.slane %v2537, 1
      %v2539 = vadd.f32 %v2537, %v2538
      %v2541 = vrot.slane %v2510, 4
      %v2543 = vsel %vm2437, %v2541, 0.0
      %v2544 = vsel %vm2323, %v2543, 0.0
      %2545 = vadd.xlane.f32.xlu0 %v2544
      %v2546 = vpop.xlane.xlu0 %2545
      %v2547 = vsel %vm2323, %v2546, 0.0
      %v2548 = vrot.slane %v2547, 4
      %v2549 = vadd.f32 %v2547, %v2548
      %v2550 = vrot.slane %v2549, 2
      %v2551 = vadd.f32 %v2549, %v2550
      %v2552 = vrot.slane %v2551, 1
      %v2553 = vadd.f32 %v2551, %v2552
      %v2554 = vsub.f32 0.0, %v2553
      %v2555 = vmul.f32 %v2539, 0.125
      %v2556 = vadd.f32 %v2498, %v2555
      %v2557 = vmul.f32 %v2554, 0.0625
      %v2558 = vadd.f32 %v2556, %v2557
      %2559 = vst [vmem:[#allocation14] sm:$0x1] %v2558
    $region61: #{tpu_custom_call.1} parent=1 // pred_fallthru
      _
    // Predicated region
    $region62: #{tpu_custom_call.1} parent=1 // pred_check
      _
    $region63: #{tpu_custom_call.1} parent=1 // pred_check_branch
      %2561 = sbr.rel (0) target = $region65
    $region64: #{tpu_custom_call.1} parent=1 // pred_region
      %s2563 = ssub.s32 16, 16
      %2564 = vsyncadd [#allocation5], %s2563
      %s2566 = sshll.u32 [#allocation14], 4
      %s2567 = int_to_ptr.vmem [resolvable:$true] %s2566
      %2569 = dma.vmem_to_hbm [thread:$0]  %s2567, 16, %s7, [#allocation5]
    $region65: #{tpu_custom_call.1} parent=1 // pred_fallthru
      _
    // Predicated region
    $region66: #{tpu_custom_call.1} parent=1 // pred_check
      _
    $region67: #{tpu_custom_call.1} parent=1 // pred_check_branch
      %2571 = sbr.rel (0) target = $region69
    $region68: #{tpu_custom_call.1} parent=1 // pred_region
      %s2573 = ssub.s32 16384, 16384
      %2574 = vsyncadd [#allocation16], %s2573
      %s2575 = sshll.u32 [#allocation15], 4
      %s2576 = int_to_ptr.vmem [resolvable:$true] %s2575
      %2581 = dma.vmem_to_hbm [thread:$0]  %s2576, 16384, %s8, [#allocation16], 1024, 1024, 64
    $region69: #{tpu_custom_call.1} parent=1 // pred_fallthru
      _
    // Predicated region
    $region70: #{tpu_custom_call.1} parent=1 // pred_check
      _
    $region71: #{tpu_custom_call.1} parent=1 // pred_check_branch
      %2583 = sbr.rel (0) target = $region73
    $region72: #{tpu_custom_call.1} parent=1 // pred_region
      %s2585 = ssub.s32 16384, 16384
      %2586 = vsyncadd [#allocation16], %s2585
      %s2587 = sshll.u32 [#allocation17], 4
      %s2588 = int_to_ptr.vmem [resolvable:$true] %s2587
      %2593 = dma.vmem_to_hbm [thread:$0]  %s2588, 16384, %s9, [#allocation16], 1024, 1024, 64
    $region73: #{tpu_custom_call.1} parent=1 // pred_fallthru
      _
    // Predicated region
    $region74: #{tpu_custom_call.1} parent=1 // pred_check
      _
    $region75: #{tpu_custom_call.1} parent=1 // pred_check_branch
      %2595 = sbr.rel (0) target = $region77
    $region76: #{tpu_custom_call.1} parent=1 // pred_region
      %2596 = dma.done [#allocation5], 16
    $region77: #{tpu_custom_call.1} parent=1 // pred_fallthru
      _
    // Predicated region
    $region78: #{tpu_custom_call.1} parent=1 // pred_check
      _
    $region79: #{tpu_custom_call.1} parent=1 // pred_check_branch
      %2598 = sbr.rel (0) target = $region81
    $region80: #{tpu_custom_call.1} parent=1 // pred_region
      %2599 = dma.done [#allocation16], 16384
    $region81: #{tpu_custom_call.1} parent=1 // pred_fallthru
      _
    // Predicated region
    $region82: #{tpu_custom_call.1} parent=1 // pred_check
      _
    $region83: #{tpu_custom_call.1} parent=1 // pred_check_branch
      %2601 = sbr.rel (0) target = $region85
    $region84: #{tpu_custom_call.1} parent=1 // pred_region
      %2602 = dma.done [#allocation16], 16384
    $region85: #{tpu_custom_call.1} parent=1 // pred_fallthru
      _
    %2603 = vsyncpa [#allocation4], 1
    %2604 = vsyncpa [#allocation7], 1
    %2605 = vsyncpa [#allocation10], 1
    %2606 = vsyncpa [#allocation13], 1
    %2607 = vsyncpa [#allocation5], 1
    %2608 = vsyncpa [#allocation16], 1

</llo_original>
